<compile_context>
chip_gen: v7x
topology: tpu7x:2x2x1
jax: 0.10.0
libtpu: 0.0.40
codegen_flags: <defaults>
</compile_context>

<pallas_src>
import functools

import jax
import jax.numpy as jnp
from jax.experimental import pallas as pl
from jax.experimental.pallas import tpu as pltpu


# ----------------------------------------------------------------------------
# Pallas kernel: node_vector -> encode() (num_layers of SLSTM+GLSTM) -> w_out
# ----------------------------------------------------------------------------
def glstm_kernel(tvne_ref, adj_ref, w1_ref, w2_ref, b_ref, out_ref,
                 *, Hp, rel, layers, out_pad, c1, c2, cb):
    N = tvne_ref.shape[0]
    n_out = out_ref.shape[0]
    bf16 = jnp.bfloat16

    def mm(a, b):
        return jnp.dot(a, b, preferred_element_type=jnp.float32)

    # Ref-sliced weight access (128-lane-aligned views, loaded at point of use;
    # avoids holding the whole slab live in vregs across the unrolled loop).
    def w1(name, width):
        o = c1[name]
        return w1_ref[:, o:o + width]

    def w2(name, width):
        o = c2[name]
        return w2_ref[:, o:o + width]

    def bias(name, width):
        o = cb[name]
        return b_ref[:, o:o + width]                       # (1, width) f32

    ap_b1 = bias("ap_b1", Hp)
    ap_u = bias("ap_u", Hp)

    def softmax_nodes(score):
        # Softmax over the node (sublane) axis; approx reciprocal (EUP) is fine
        # for inference, won't bit-match a PyTorch reference.
        score = score - jnp.max(score, axis=0, keepdims=True)
        e = jnp.exp(score)
        return e * pl.reciprocal(jnp.sum(e, axis=0, keepdims=True), approx=True)

    def attn_pool(mem, hh_pre):
        # Attentive_Pooling with query=None: hh_pre = mem @ w_1 (precomputed).
        hh = jnp.tanh(hh_pre + ap_b1)                      # (N, Hp)
        score = jnp.sum(hh * ap_u, axis=-1, keepdims=True)  # (N, 1)
        alpha = softmax_nodes(score)
        return jnp.sum(alpha * mem, axis=0, keepdims=True)  # (1, Hp)

    # feature_combine: x = [text_vector | node_emb] @ fc_W + fc_b
    tvne = tvne_ref[...]                                   # (N, 2Hp) bf16
    x = mm(tvne, w2("fc_W", Hp)) + bias("fc_b", Hp)        # (N, Hp) f32
    x_bf = x.astype(bf16)

    # Loop-invariant SLSTM term hoisted: U(x) + V-bias.
    xU_b = mm(x_bf, w1("s_U", 4 * Hp)) + bias("s_Vb", 4 * Hp)   # (N, 4Hp)

    # encode() init: hs == cs == x, so one attention pooling serves g and c_g.
    hs = x
    cs = x
    gv = attn_pool(x, mm(x_bf, w1("ap_g", Hp)))            # ap_g[:, :Hp] == w_1
    cg = gv

    for _ in range(layers):
        hs_bf = hs.astype(bf16)
        gv_bf = gv.astype(bf16)

        # ---- SLSTMCell ----
        # Wh(h) + V(g) and h @ W_r (all relations) in one wide MXU push:
        # [h | broadcast(g)] (N,2Hp) @ [[Wh | W_0..W_{R-1}]; [V | 0..0]].
        lhs1 = jnp.concatenate(
            [hs_bf, jnp.broadcast_to(gv_bf, (N, Hp))], axis=-1)       # (N, 2Hp)
        big = mm(lhs1, w2("W_big", (4 + rel) * Hp))                   # (N, (4+R)Hp)

        # TODO(synk): RGCN class is not defined in the reference source; standard
        # relational-GCN stand-in relu(sum_r adj_r @ h @ W_r + b), accumulated
        # per relation (no lane->sublane restack).
        acc = mm(adj_ref[0], big[:, 4 * Hp:5 * Hp].astype(bf16))
        for r in range(1, rel):
            acc += mm(adj_ref[r], big[:, (4 + r) * Hp:(5 + r) * Hp].astype(bf16))
        hn = jnp.maximum(acc + bias("rb", Hp), 0.0)                   # (N, Hp)

        gates = big[:, :4 * Hp] + mm(hn.astype(bf16), w1("s_Wn", 4 * Hp)) + xU_b
        i_g = gates[:, 0 * Hp:1 * Hp]
        f_g = gates[:, 1 * Hp:2 * Hp]
        o_g = gates[:, 2 * Hp:3 * Hp]
        u_g = gates[:, 3 * Hp:4 * Hp]
        cs = jax.nn.sigmoid(f_g) * cs + jax.nn.sigmoid(i_g) * jnp.tanh(u_g)
        hs = jax.nn.sigmoid(o_g) * jnp.tanh(cs)
        hs_bf = hs.astype(bf16)

        # ---- GLSTMCell ----
        # new_h @ [w_1 | u] in one matmul (pooling pre-activation + write gate).
        pooled = mm(hs_bf, w1("ap_g", 2 * Hp))                        # (N, 2Hp)
        h_avg = attn_pool(hs, pooled[:, :Hp])                         # (1, Hp)
        # [g | h_avg] @ [[W | w]; [U | 0]] + [U_b | 0] -> [f,o pre-act | w(g)]
        lhs2 = jnp.concatenate([gv_bf, h_avg.astype(bf16)], axis=-1)  # (1, 2Hp)
        fused = mm(lhs2, w2("g_fW", 3 * Hp)) + bias("g_fb", 3 * Hp)   # (1, 3Hp)
        f_go = jax.nn.sigmoid(fused[:, 0:Hp])
        o_go = jax.nn.sigmoid(fused[:, Hp:2 * Hp])
        wv = fused[:, 2 * Hp:3 * Hp]                                  # w(g), no bias
        fw = jax.nn.sigmoid(wv + pooled[:, Hp:2 * Hp] + bias("g_ub", Hp))  # (N, Hp)
        fw = softmax_nodes(fw)
        cg = f_go * cg + jnp.sum(cs * fw, axis=0, keepdims=True)      # (1, Hp)
        gv = o_go * jnp.tanh(cg)
        # self.dropout(...) is identity in eval mode.

    # w_out on [node states ; global state ; zero pad]: one matmul, one
    # full-sublane-tile lane-dense store.
    pad_rows = n_out - N - 1
    blocks = [hs, gv]
    if pad_rows:
        blocks.append(jnp.zeros((pad_rows, Hp), jnp.float32))
    hg = jnp.concatenate(blocks, axis=0).astype(bf16)                 # (n_out, Hp)
    out_ref[...] = mm(hg, w1("oW", out_pad)) + bias("ob", out_pad)


# ----------------------------------------------------------------------------
# Parameters (deterministic init, torch-Linear shapes transposed to (in, out))
# ----------------------------------------------------------------------------
def init_params(key, vocab_size, node_num, H, R, L):
    keys = jax.random.split(key, 32)
    it = iter(keys)

    def w(shape, scale=0.1):
        return (scale * jax.random.normal(next(it), shape)).astype(jnp.float32)

    return dict(
        word_emb=w((vocab_size, H)),
        node_emb=w((node_num, H)),
        # Attentive_Pooling
        ap_w1=w((H, H)), ap_b1=w((1, H)),
        ap_w2=w((H, H)), ap_b2=w((1, H)),
        ap_u=w((H, 1)),
        # feature_combine
        fc_W=w((2 * H, H)), fc_b=w((1, H)),
        # SLSTMCell
        s_Wh=w((H, 4 * H)), s_Wn=w((H, 4 * H)), s_U=w((H, 4 * H)),
        s_VW=w((H, 4 * H)), s_Vb=w((1, 4 * H)),
        r_W=w((R, H, H)), r_b=w((1, H)),
        # GLSTMCell
        g_W=w((H, 2 * H)), g_w=w((H, H)),
        g_UW=w((H, 2 * H)), g_Ub=w((1, 2 * H)),
        g_uW=w((H, H)), g_ub=w((1, H)),
        # w_out
        o_W=w((H, L)), o_b=w((1, L)),
    )


# ----------------------------------------------------------------------------
# Weight packing (done ONCE, outside the per-call forward):
#   * hidden dim padded to Hp = roundup(H, 128); each HxH logical block is
#     zero-padded to HpxHp so every slice / concat in the kernel is tile-aligned
#   * two width-grouped weight slabs (Hp rows / 2Hp rows) -> no max-width waste
#   * one (1, total) f32 bias row with 128-aligned column offsets
# ----------------------------------------------------------------------------
def pack_weights(params, H, R, L):
    Hp = ((H + 127) // 128) * 128
    OP = ((L + 127) // 128) * 128

    def pblk(a, ib, ob):
        a = a.reshape(ib, H, ob, H)
        a = jnp.pad(a, ((0, 0), (0, Hp - H), (0, 0), (0, Hp - H)))
        return a.reshape(ib * Hp, ob * Hp)

    def pbias(b, nb):
        b = b.reshape(nb, H)
        b = jnp.pad(b, ((0, 0), (0, Hp - H)))
        return b.reshape(1, nb * Hp)

    def hstack(entries, dtype):
        ofs, col, pieces = {}, 0, []
        for name, a in entries:
            ofs[name] = col
            col += a.shape[1]
            pieces.append(a)
        return jnp.concatenate(pieces, axis=1).astype(dtype), ofs

    # --- slab 1: Hp-row weights ---
    oW = jnp.pad(params["o_W"], ((0, Hp - H), (0, OP - L)))
    ap_g = jnp.concatenate([pblk(params["ap_w1"], 1, 1),
                            pblk(params["g_uW"], 1, 1)], axis=1)        # [w_1 | u]
    w1_slab, c1 = hstack([("oW", oW),
                          ("ap_g", ap_g),
                          ("s_U", pblk(params["s_U"], 1, 4)),
                          ("s_Wn", pblk(params["s_Wn"], 1, 4))], jnp.bfloat16)

    # --- slab 2: 2Hp-row weights ---
    fc_W = pblk(params["fc_W"], 2, 1)
    g_fW = jnp.concatenate([
        jnp.concatenate([pblk(params["g_W"], 1, 2), pblk(params["g_w"], 1, 1)], axis=1),
        jnp.concatenate([pblk(params["g_UW"], 1, 2),
                         jnp.zeros((Hp, Hp), jnp.float32)], axis=1),
    ], axis=0)                                                          # (2Hp, 3Hp)
    W_big = jnp.concatenate([
        jnp.concatenate([pblk(params["s_Wh"], 1, 4)]
                        + [pblk(params["r_W"][r], 1, 1) for r in range(R)], axis=1),
        jnp.concatenate([pblk(params["s_VW"], 1, 4),
                         jnp.zeros((Hp, R * Hp), jnp.float32)], axis=1),
    ], axis=0)                                                          # (2Hp, (4+R)Hp)
    w2_slab, c2 = hstack([("fc_W", fc_W), ("g_fW", g_fW), ("W_big", W_big)],
                         jnp.bfloat16)

    # --- bias row ---
    g_fb = jnp.concatenate([pbias(params["g_Ub"], 2),
                            jnp.zeros((1, Hp), jnp.float32)], axis=1)
    ob = jnp.pad(params["o_b"], ((0, 0), (0, OP - L)))
    b_slab, cb = hstack([
        ("fc_b", pbias(params["fc_b"], 1)),
        ("ap_b1", pbias(params["ap_b1"], 1)),
        ("ap_u", pbias(params["ap_u"].T, 1)),        # u stored as a row vector
        ("s_Vb", pbias(params["s_Vb"], 4)),
        ("rb", pbias(params["r_b"], 1)),
        ("g_fb", g_fb),
        ("g_ub", pbias(params["g_ub"], 1)),
        ("ob", ob),
    ], jnp.float32)

    return dict(Hp=Hp, OP=OP, w1=w1_slab, w2=w2_slab, b=b_slab,
                c1=c1, c2=c2, cb=cb)


# ----------------------------------------------------------------------------
# Forward wrapper (glue in plain JAX + one pallas_call for the hot path)
# ----------------------------------------------------------------------------
def glstm_forward(packed, params, span_nodes, node_text, word_mask, adj,
                  *, hidden, rel, layers, labels):
    Hp, OP = packed["Hp"], packed["OP"]
    N = node_text.shape[0]
    n_out = ((N + 1 + 7) // 8) * 8          # full-sublane-tile output store

    # Embedding lookups (dropout is identity in eval mode).
    node_emb = params["node_emb"][span_nodes]            # (N, H)
    word_emb = params["word_emb"][node_text]             # (N, S, H)

    # TODO(synk): models.CNN_Encoder / models.RNN_Encoder are not provided in the
    # reference; use Attentive_Pooling(word_emb, query=node_emb, mask) as the
    # text_encoder stand-in (emb_size == hidden_size).
    hh = jnp.tanh(word_emb @ params["ap_w1"] + params["ap_b1"]
                  + (node_emb @ params["ap_w2"] + params["ap_b2"])[:, None, :])
    score = jnp.squeeze(hh @ params["ap_u"], -1)          # (N, S)
    score = jnp.where(word_mask == 0, -1e9, score)
    alpha = jax.nn.softmax(score, axis=-1)
    text_vector = jnp.sum(alpha[..., None] * word_emb, axis=-2)   # (N, H)

    pad = Hp - hidden
    tvne = jnp.concatenate([
        jnp.pad(text_vector, ((0, 0), (0, pad))),
        jnp.pad(node_emb, ((0, 0), (0, pad))),
    ], axis=-1).astype(jnp.bfloat16)                      # (N, 2Hp)
    adj_b = adj.astype(jnp.bfloat16)                      # (R, N, N), exact in bf16

    kernel = functools.partial(
        glstm_kernel, Hp=Hp, rel=rel, layers=layers, out_pad=OP,
        c1=packed["c1"], c2=packed["c2"], cb=packed["cb"])

    # TODO(synk): for large N on v7x (64 MiB VMEM), move adj to memory_space=pl.ANY
    # and tile the RGCN matmul instead of keeping it fully VMEM-resident.
    operand_bytes = (tvne.size * 2 + adj_b.size * 2 + packed["w1"].size * 2
                     + packed["w2"].size * 2 + packed["b"].size * 4
                     + n_out * OP * 4)
    vmem_limit = min(int(2 * operand_bytes + (16 << 20)), 120 << 20)

    flops = (2 * N * (2 * Hp) * Hp                        # feature_combine
             + 2 * N * Hp * (4 * Hp)                      # x @ U (hoisted)
             + 2 * N * Hp * Hp                            # init pooling
             + layers * (2 * N * (2 * Hp) * ((4 + rel) * Hp)   # W_big
                         + 2 * rel * N * N * Hp                # adj accumulation
                         + 2 * N * Hp * (4 * Hp)               # Wn
                         + 2 * N * Hp * (2 * Hp)               # [w_1 | u]
                         + 2 * (2 * Hp) * (3 * Hp))            # g_fW (M=1)
             + 2 * n_out * Hp * OP)                       # w_out
    transcendentals = layers * (10 * N * Hp + 4 * N) + 3 * N * Hp

    out = pl.pallas_call(
        kernel,
        out_shape=jax.ShapeDtypeStruct((n_out, OP), jnp.float32),
        in_specs=[pl.BlockSpec(memory_space=pltpu.MemorySpace.VMEM)] * 5,
        out_specs=pl.BlockSpec(memory_space=pltpu.MemorySpace.VMEM),
        compiler_params=pltpu.CompilerParams(vmem_limit_bytes=vmem_limit),
        cost_estimate=pl.CostEstimate(flops=int(flops),
                                      transcendentals=int(transcendentals),
                                      bytes_accessed=int(operand_bytes)),
    )(tvne, adj_b, packed["w1"], packed["w2"], packed["b"])

    # torch returns (w_out(output) -> (node, label), w_out(g_output) -> (label,))
    logits_h = out[:N, :labels]
    logits_g = out[N, :labels]
    return logits_h, logits_g


if __name__ == "__main__":
    N, S, H, R, L = 16, 8, 32, 2, 4          # nodes, seq, hidden, relations, labels
    NUM_LAYERS = 2
    VOCAB, NODE_NUM = 50, 20

    key = jax.random.PRNGKey(0)
    kp, k1, k2, k3, k4 = jax.random.split(key, 5)

    params = init_params(kp, VOCAB, NODE_NUM, H, R, L)
    packed = pack_weights(params, H, R, L)   # hoisted out of the per-call forward

    span_nodes = jax.random.randint(k1, (N,), 0, NODE_NUM)
    node_text = jax.random.randint(k2, (N, S), 0, VOCAB)
    word_mask = (jax.random.uniform(k3, (N, S)) > 0.3).astype(jnp.float32)
    word_mask = word_mask.at[:, 0].set(1.0)   # guarantee text_length.min() > 0
    adj = (jax.random.uniform(k4, (R, N, N)) > 0.5).astype(jnp.float32)

    logits_h, logits_g = glstm_forward(
        packed, params, span_nodes, node_text, word_mask, adj,
        hidden=H, rel=R, layers=NUM_LAYERS, labels=L)
    jax.block_until_ready((logits_h, logits_g))

    assert logits_h.shape == (N, L), logits_h.shape
    assert logits_g.shape == (L,), logits_g.shape
    assert bool(jnp.all(jnp.isfinite(logits_h))) and bool(jnp.all(jnp.isfinite(logits_g)))
    print("KERNEL_OK")
</pallas_src>

<mosaic_0001>
module attributes {stable_mosaic.version = 11 : i64} {
  func.func @glstm_kernel(%arg0: memref<16x256xbf16, #tpu.memory_space<vmem>>, %arg1: memref<2x16x16xbf16, #tpu.memory_space<vmem>>, %arg2: memref<128x1408xbf16, #tpu.memory_space<vmem>>, %arg3: memref<256x1280xbf16, #tpu.memory_space<vmem>>, %arg4: memref<1x1664xf32, #tpu.memory_space<vmem>>, %arg5: memref<24x128xf32, #tpu.memory_space<vmem>>) attributes {dimension_semantics = [], scalar_prefetch = 0 : i64, scratch_operands = 0 : i64, tpu.core_type = #tpu.core_type<tc>} {
    %c0 = arith.constant 0 : index
    %c128 = arith.constant 128 : index
    %0 = vector.load %arg4[%c0, %c128] : memref<1x1664xf32, #tpu.memory_space<vmem>>, vector<1x128xf32>
    %c0_0 = arith.constant 0 : index
    %c256 = arith.constant 256 : index
    %1 = vector.load %arg4[%c0_0, %c256] : memref<1x1664xf32, #tpu.memory_space<vmem>>, vector<1x128xf32>
    %c0_1 = arith.constant 0 : index
    %c0_2 = arith.constant 0 : index
    %2 = vector.load %arg0[%c0_1, %c0_2] : memref<16x256xbf16, #tpu.memory_space<vmem>>, vector<16x256xbf16>
    %c0_3 = arith.constant 0 : index
    %c0_4 = arith.constant 0 : index
    %3 = vector.load %arg3[%c0_3, %c0_4] : memref<256x1280xbf16, #tpu.memory_space<vmem>>, vector<256x128xbf16>
    %cst = arith.constant dense<0.000000e+00> : vector<16x128xf32>
    %4 = tpu.matmul %2, %3, %cst {dimension_numbers = #tpu.dot_dimension_numbers<[1], [0], [0], [1], [0, 0, 1, 1], [], []>} : vector<16x256xbf16>, vector<256x128xbf16>, vector<16x128xf32> -> vector<16x128xf32>
    %c0_5 = arith.constant 0 : index
    %c0_6 = arith.constant 0 : index
    %5 = vector.load %arg4[%c0_5, %c0_6] : memref<1x1664xf32, #tpu.memory_space<vmem>>, vector<1x128xf32>
    %6 = vector.broadcast %5 : vector<1x128xf32> to vector<16x128xf32>
    %7 = arith.addf %4, %6 : vector<16x128xf32>
    %8 = arith.truncf %7 : vector<16x128xf32> to vector<16x128xbf16>
    %c0_7 = arith.constant 0 : index
    %c384 = arith.constant 384 : index
    %9 = vector.load %arg2[%c0_7, %c384] : memref<128x1408xbf16, #tpu.memory_space<vmem>>, vector<128x512xbf16>
    %cst_8 = arith.constant dense<0.000000e+00> : vector<16x512xf32>
    %10 = tpu.matmul %8, %9, %cst_8 {dimension_numbers = #tpu.dot_dimension_numbers<[1], [0], [0], [1], [0, 0, 1, 1], [], []>} : vector<16x128xbf16>, vector<128x512xbf16>, vector<16x512xf32> -> vector<16x512xf32>
    %c0_9 = arith.constant 0 : index
    %c384_10 = arith.constant 384 : index
    %11 = vector.load %arg4[%c0_9, %c384_10] : memref<1x1664xf32, #tpu.memory_space<vmem>>, vector<1x512xf32>
    %12 = vector.broadcast %11 : vector<1x512xf32> to vector<16x512xf32>
    %13 = arith.addf %10, %12 : vector<16x512xf32>
    %c0_11 = arith.constant 0 : index
    %c128_12 = arith.constant 128 : index
    %14 = vector.load %arg2[%c0_11, %c128_12] : memref<128x1408xbf16, #tpu.memory_space<vmem>>, vector<128x128xbf16>
    %cst_13 = arith.constant dense<0.000000e+00> : vector<16x128xf32>
    %15 = tpu.matmul %8, %14, %cst_13 {dimension_numbers = #tpu.dot_dimension_numbers<[1], [0], [0], [1], [0, 0, 1, 1], [], []>} : vector<16x128xbf16>, vector<128x128xbf16>, vector<16x128xf32> -> vector<16x128xf32>
    %16 = vector.broadcast %0 : vector<1x128xf32> to vector<16x128xf32>
    %17 = arith.addf %15, %16 : vector<16x128xf32>
    %18 = math.tanh %17 : vector<16x128xf32>
    %19 = vector.broadcast %1 : vector<1x128xf32> to vector<16x128xf32>
    %20 = arith.mulf %18, %19 : vector<16x128xf32>
    %cst_14 = arith.constant dense<0.000000e+00> : vector<16xf32>
    %21 = vector.multi_reduction <add>, %20, %cst_14 [1] : vector<16x128xf32> to vector<16xf32>
    %22 = vector.shape_cast %21 : vector<16xf32> to vector<16x1xf32>
    %cst_15 = arith.constant dense<0xFF800000> : vector<1xf32>
    %23 = vector.multi_reduction <maximumf>, %22, %cst_15 [0] : vector<16x1xf32> to vector<1xf32>
    %24 = vector.shape_cast %23 : vector<1xf32> to vector<1x1xf32>
    %25 = vector.broadcast %24 : vector<1x1xf32> to vector<16x1xf32>
    %26 = arith.subf %22, %25 : vector<16x1xf32>
    %27 = math.exp %26 : vector<16x1xf32>
    %cst_16 = arith.constant dense<0.000000e+00> : vector<1xf32>
    %28 = vector.multi_reduction <add>, %27, %cst_16 [0] : vector<16x1xf32> to vector<1xf32>
    %29 = vector.shape_cast %28 : vector<1xf32> to vector<1x1xf32>
    %30 = tpu.reciprocal %29 {approx = true} : vector<1x1xf32> -> vector<1x1xf32>
    %31 = vector.broadcast %30 : vector<1x1xf32> to vector<16x1xf32>
    %32 = arith.mulf %27, %31 : vector<16x1xf32>
    %33 = vector.broadcast %32 : vector<16x1xf32> to vector<16x128xf32>
    %34 = arith.mulf %33, %7 : vector<16x128xf32>
    %cst_17 = arith.constant dense<0.000000e+00> : vector<128xf32>
    %35 = vector.multi_reduction <add>, %34, %cst_17 [0] : vector<16x128xf32> to vector<128xf32>
    %36 = vector.shape_cast %35 : vector<128xf32> to vector<1x128xf32>
    %37 = arith.truncf %7 : vector<16x128xf32> to vector<16x128xbf16>
    %38 = arith.truncf %36 : vector<1x128xf32> to vector<1x128xbf16>
    %39 = vector.shape_cast %38 : vector<1x128xbf16> to vector<1x128xbf16>
    %40 = vector.broadcast %39 : vector<1x128xbf16> to vector<16x128xbf16>
    %41 = tpu.concatenate %37, %40 in 1 : vector<16x128xbf16>, vector<16x128xbf16> -> vector<16x256xbf16>
    %c0_18 = arith.constant 0 : index
    %c512 = arith.constant 512 : index
    %42 = vector.load %arg3[%c0_18, %c512] : memref<256x1280xbf16, #tpu.memory_space<vmem>>, vector<256x768xbf16>
    %cst_19 = arith.constant dense<0.000000e+00> : vector<16x768xf32>
    %43 = tpu.matmul %41, %42, %cst_19 {dimension_numbers = #tpu.dot_dimension_numbers<[1], [0], [0], [1], [0, 0, 1, 1], [], []>} : vector<16x256xbf16>, vector<256x768xbf16>, vector<16x768xf32> -> vector<16x768xf32>
    %c0_20 = arith.constant 0 : index
    %c0_21 = arith.constant 0 : index
    %c0_22 = arith.constant 0 : index
    %44 = vector.load %arg1[%c0_20, %c0_21, %c0_22] : memref<2x16x16xbf16, #tpu.memory_space<vmem>>, vector<1x16x16xbf16>
    %45 = vector.shape_cast %44 : vector<1x16x16xbf16> to vector<16x16xbf16>
    %46 = vector.extract_strided_slice %43 {offsets = [0, 512], sizes = [16, 128], strides = [1, 1]} : vector<16x768xf32> to vector<16x128xf32>
    %47 = arith.truncf %46 : vector<16x128xf32> to vector<16x128xbf16>
    %cst_23 = arith.constant dense<0.000000e+00> : vector<16x128xf32>
    %48 = tpu.matmul %45, %47, %cst_23 {dimension_numbers = #tpu.dot_dimension_numbers<[1], [0], [0], [1], [0, 0, 1, 1], [], []>} : vector<16x16xbf16>, vector<16x128xbf16>, vector<16x128xf32> -> vector<16x128xf32>
    %c1 = arith.constant 1 : index
    %c0_24 = arith.constant 0 : index
    %c0_25 = arith.constant 0 : index
    %49 = vector.load %arg1[%c1, %c0_24, %c0_25] : memref<2x16x16xbf16, #tpu.memory_space<vmem>>, vector<1x16x16xbf16>
    %50 = vector.shape_cast %49 : vector<1x16x16xbf16> to vector<16x16xbf16>
    %51 = vector.extract_strided_slice %43 {offsets = [0, 640], sizes = [16, 128], strides = [1, 1]} : vector<16x768xf32> to vector<16x128xf32>
    %52 = arith.truncf %51 : vector<16x128xf32> to vector<16x128xbf16>
    %cst_26 = arith.constant dense<0.000000e+00> : vector<16x128xf32>
    %53 = tpu.matmul %50, %52, %cst_26 {dimension_numbers = #tpu.dot_dimension_numbers<[1], [0], [0], [1], [0, 0, 1, 1], [], []>} : vector<16x16xbf16>, vector<16x128xbf16>, vector<16x128xf32> -> vector<16x128xf32>
    %54 = arith.addf %48, %53 : vector<16x128xf32>
    %c0_27 = arith.constant 0 : index
    %c896 = arith.constant 896 : index
    %55 = vector.load %arg4[%c0_27, %c896] : memref<1x1664xf32, #tpu.memory_space<vmem>>, vector<1x128xf32>
    %56 = vector.broadcast %55 : vector<1x128xf32> to vector<16x128xf32>
    %57 = arith.addf %54, %56 : vector<16x128xf32>
    %cst_28 = arith.constant 0.000000e+00 : f32
    %58 = vector.broadcast %cst_28 : f32 to vector<16x128xf32>
    %59 = arith.maximumf %57, %58 : vector<16x128xf32>
    %60 = vector.extract_strided_slice %43 {offsets = [0, 0], sizes = [16, 512], strides = [1, 1]} : vector<16x768xf32> to vector<16x512xf32>
    %61 = arith.truncf %59 : vector<16x128xf32> to vector<16x128xbf16>
    %c0_29 = arith.constant 0 : index
    %c896_30 = arith.constant 896 : index
    %62 = vector.load %arg2[%c0_29, %c896_30] : memref<128x1408xbf16, #tpu.memory_space<vmem>>, vector<128x512xbf16>
    %cst_31 = arith.constant dense<0.000000e+00> : vector<16x512xf32>
    %63 = tpu.matmul %61, %62, %cst_31 {dimension_numbers = #tpu.dot_dimension_numbers<[1], [0], [0], [1], [0, 0, 1, 1], [], []>} : vector<16x128xbf16>, vector<128x512xbf16>, vector<16x512xf32> -> vector<16x512xf32>
    %64 = arith.addf %60, %63 : vector<16x512xf32>
    %65 = arith.addf %64, %13 : vector<16x512xf32>
    %66 = vector.extract_strided_slice %65 {offsets = [0, 0], sizes = [16, 128], strides = [1, 1]} : vector<16x512xf32> to vector<16x128xf32>
    %67 = vector.extract_strided_slice %65 {offsets = [0, 128], sizes = [16, 128], strides = [1, 1]} : vector<16x512xf32> to vector<16x128xf32>
    %68 = vector.extract_strided_slice %65 {offsets = [0, 256], sizes = [16, 128], strides = [1, 1]} : vector<16x512xf32> to vector<16x128xf32>
    %69 = vector.extract_strided_slice %65 {offsets = [0, 384], sizes = [16, 128], strides = [1, 1]} : vector<16x512xf32> to vector<16x128xf32>
    %70 = arith.negf %67 : vector<16x128xf32>
    %71 = math.exp %70 : vector<16x128xf32>
    %cst_32 = arith.constant 1.000000e+00 : f32
    %72 = vector.broadcast %cst_32 : f32 to vector<16x128xf32>
    %73 = arith.addf %72, %71 : vector<16x128xf32>
    %74 = arith.divf %72, %73 : vector<16x128xf32>
    %75 = arith.mulf %74, %7 : vector<16x128xf32>
    %76 = arith.negf %66 : vector<16x128xf32>
    %77 = math.exp %76 : vector<16x128xf32>
    %cst_33 = arith.constant 1.000000e+00 : f32
    %78 = vector.broadcast %cst_33 : f32 to vector<16x128xf32>
    %79 = arith.addf %78, %77 : vector<16x128xf32>
    %80 = arith.divf %78, %79 : vector<16x128xf32>
    %81 = math.tanh %69 : vector<16x128xf32>
    %82 = arith.mulf %80, %81 : vector<16x128xf32>
    %83 = arith.addf %75, %82 : vector<16x128xf32>
    %84 = arith.negf %68 : vector<16x128xf32>
    %85 = math.exp %84 : vector<16x128xf32>
    %cst_34 = arith.constant 1.000000e+00 : f32
    %86 = vector.broadcast %cst_34 : f32 to vector<16x128xf32>
    %87 = arith.addf %86, %85 : vector<16x128xf32>
    %88 = arith.divf %86, %87 : vector<16x128xf32>
    %89 = math.tanh %83 : vector<16x128xf32>
    %90 = arith.mulf %88, %89 : vector<16x128xf32>
    %91 = arith.truncf %90 : vector<16x128xf32> to vector<16x128xbf16>
    %c0_35 = arith.constant 0 : index
    %c128_36 = arith.constant 128 : index
    %92 = vector.load %arg2[%c0_35, %c128_36] : memref<128x1408xbf16, #tpu.memory_space<vmem>>, vector<128x256xbf16>
    %cst_37 = arith.constant dense<0.000000e+00> : vector<16x256xf32>
    %93 = tpu.matmul %91, %92, %cst_37 {dimension_numbers = #tpu.dot_dimension_numbers<[1], [0], [0], [1], [0, 0, 1, 1], [], []>} : vector<16x128xbf16>, vector<128x256xbf16>, vector<16x256xf32> -> vector<16x256xf32>
    %94 = vector.extract_strided_slice %93 {offsets = [0, 0], sizes = [16, 128], strides = [1, 1]} : vector<16x256xf32> to vector<16x128xf32>
    %95 = vector.broadcast %0 : vector<1x128xf32> to vector<16x128xf32>
    %96 = arith.addf %94, %95 : vector<16x128xf32>
    %97 = math.tanh %96 : vector<16x128xf32>
    %98 = vector.broadcast %1 : vector<1x128xf32> to vector<16x128xf32>
    %99 = arith.mulf %97, %98 : vector<16x128xf32>
    %cst_38 = arith.constant dense<0.000000e+00> : vector<16xf32>
    %100 = vector.multi_reduction <add>, %99, %cst_38 [1] : vector<16x128xf32> to vector<16xf32>
    %101 = vector.shape_cast %100 : vector<16xf32> to vector<16x1xf32>
    %cst_39 = arith.constant dense<0xFF800000> : vector<1xf32>
    %102 = vector.multi_reduction <maximumf>, %101, %cst_39 [0] : vector<16x1xf32> to vector<1xf32>
    %103 = vector.shape_cast %102 : vector<1xf32> to vector<1x1xf32>
    %104 = vector.broadcast %103 : vector<1x1xf32> to vector<16x1xf32>
    %105 = arith.subf %101, %104 : vector<16x1xf32>
    %106 = math.exp %105 : vector<16x1xf32>
    %cst_40 = arith.constant dense<0.000000e+00> : vector<1xf32>
    %107 = vector.multi_reduction <add>, %106, %cst_40 [0] : vector<16x1xf32> to vector<1xf32>
    %108 = vector.shape_cast %107 : vector<1xf32> to vector<1x1xf32>
    %109 = tpu.reciprocal %108 {approx = true} : vector<1x1xf32> -> vector<1x1xf32>
    %110 = vector.broadcast %109 : vector<1x1xf32> to vector<16x1xf32>
    %111 = arith.mulf %106, %110 : vector<16x1xf32>
    %112 = vector.broadcast %111 : vector<16x1xf32> to vector<16x128xf32>
    %113 = arith.mulf %112, %90 : vector<16x128xf32>
    %cst_41 = arith.constant dense<0.000000e+00> : vector<128xf32>
    %114 = vector.multi_reduction <add>, %113, %cst_41 [0] : vector<16x128xf32> to vector<128xf32>
    %115 = vector.shape_cast %114 : vector<128xf32> to vector<1x128xf32>
    %116 = arith.truncf %115 : vector<1x128xf32> to vector<1x128xbf16>
    %117 = tpu.concatenate %38, %116 in 1 : vector<1x128xbf16>, vector<1x128xbf16> -> vector<1x256xbf16>
    %c0_42 = arith.constant 0 : index
    %c128_43 = arith.constant 128 : index
    %118 = vector.load %arg3[%c0_42, %c128_43] : memref<256x1280xbf16, #tpu.memory_space<vmem>>, vector<256x384xbf16>
    %cst_44 = arith.constant dense<0.000000e+00> : vector<1x384xf32>
    %119 = tpu.matmul %117, %118, %cst_44 {dimension_numbers = #tpu.dot_dimension_numbers<[1], [0], [0], [1], [0, 0, 1, 1], [], []>} : vector<1x256xbf16>, vector<256x384xbf16>, vector<1x384xf32> -> vector<1x384xf32>
    %c0_45 = arith.constant 0 : index
    %c1024 = arith.constant 1024 : index
    %120 = vector.load %arg4[%c0_45, %c1024] : memref<1x1664xf32, #tpu.memory_space<vmem>>, vector<1x384xf32>
    %121 = arith.addf %119, %120 : vector<1x384xf32>
    %122 = vector.extract_strided_slice %121 {offsets = [0, 0], sizes = [1, 128], strides = [1, 1]} : vector<1x384xf32> to vector<1x128xf32>
    %123 = arith.negf %122 : vector<1x128xf32>
    %124 = math.exp %123 : vector<1x128xf32>
    %cst_46 = arith.constant 1.000000e+00 : f32
    %125 = vector.broadcast %cst_46 : f32 to vector<1x128xf32>
    %126 = arith.addf %125, %124 : vector<1x128xf32>
    %127 = arith.divf %125, %126 : vector<1x128xf32>
    %128 = vector.extract_strided_slice %121 {offsets = [0, 128], sizes = [1, 128], strides = [1, 1]} : vector<1x384xf32> to vector<1x128xf32>
    %129 = arith.negf %128 : vector<1x128xf32>
    %130 = math.exp %129 : vector<1x128xf32>
    %cst_47 = arith.constant 1.000000e+00 : f32
    %131 = vector.broadcast %cst_47 : f32 to vector<1x128xf32>
    %132 = arith.addf %131, %130 : vector<1x128xf32>
    %133 = arith.divf %131, %132 : vector<1x128xf32>
    %134 = vector.extract_strided_slice %121 {offsets = [0, 256], sizes = [1, 128], strides = [1, 1]} : vector<1x384xf32> to vector<1x128xf32>
    %135 = vector.extract_strided_slice %93 {offsets = [0, 128], sizes = [16, 128], strides = [1, 1]} : vector<16x256xf32> to vector<16x128xf32>
    %136 = vector.broadcast %134 : vector<1x128xf32> to vector<16x128xf32>
    %137 = arith.addf %136, %135 : vector<16x128xf32>
    %c0_48 = arith.constant 0 : index
    %c1408 = arith.constant 1408 : index
    %138 = vector.load %arg4[%c0_48, %c1408] : memref<1x1664xf32, #tpu.memory_space<vmem>>, vector<1x128xf32>
    %139 = vector.broadcast %138 : vector<1x128xf32> to vector<16x128xf32>
    %140 = arith.addf %137, %139 : vector<16x128xf32>
    %141 = arith.negf %140 : vector<16x128xf32>
    %142 = math.exp %141 : vector<16x128xf32>
    %cst_49 = arith.constant 1.000000e+00 : f32
    %143 = vector.broadcast %cst_49 : f32 to vector<16x128xf32>
    %144 = arith.addf %143, %142 : vector<16x128xf32>
    %145 = arith.divf %143, %144 : vector<16x128xf32>
    %cst_50 = arith.constant dense<0xFF800000> : vector<128xf32>
    %146 = vector.multi_reduction <maximumf>, %145, %cst_50 [0] : vector<16x128xf32> to vector<128xf32>
    %147 = vector.shape_cast %146 : vector<128xf32> to vector<1x128xf32>
    %148 = vector.broadcast %147 : vector<1x128xf32> to vector<16x128xf32>
    %149 = arith.subf %145, %148 : vector<16x128xf32>
    %150 = math.exp %149 : vector<16x128xf32>
    %cst_51 = arith.constant dense<0.000000e+00> : vector<128xf32>
    %151 = vector.multi_reduction <add>, %150, %cst_51 [0] : vector<16x128xf32> to vector<128xf32>
    %152 = vector.shape_cast %151 : vector<128xf32> to vector<1x128xf32>
    %153 = tpu.reciprocal %152 {approx = true} : vector<1x128xf32> -> vector<1x128xf32>
    %154 = vector.broadcast %153 : vector<1x128xf32> to vector<16x128xf32>
    %155 = arith.mulf %150, %154 : vector<16x128xf32>
    %156 = arith.mulf %127, %36 : vector<1x128xf32>
    %157 = arith.mulf %83, %155 : vector<16x128xf32>
    %cst_52 = arith.constant dense<0.000000e+00> : vector<128xf32>
    %158 = vector.multi_reduction <add>, %157, %cst_52 [0] : vector<16x128xf32> to vector<128xf32>
    %159 = vector.shape_cast %158 : vector<128xf32> to vector<1x128xf32>
    %160 = arith.addf %156, %159 : vector<1x128xf32>
    %161 = math.tanh %160 : vector<1x128xf32>
    %162 = arith.mulf %133, %161 : vector<1x128xf32>
    %163 = arith.truncf %90 : vector<16x128xf32> to vector<16x128xbf16>
    %164 = arith.truncf %162 : vector<1x128xf32> to vector<1x128xbf16>
    %165 = vector.shape_cast %164 : vector<1x128xbf16> to vector<1x128xbf16>
    %166 = vector.broadcast %165 : vector<1x128xbf16> to vector<16x128xbf16>
    %167 = tpu.concatenate %163, %166 in 1 : vector<16x128xbf16>, vector<16x128xbf16> -> vector<16x256xbf16>
    %c0_53 = arith.constant 0 : index
    %c512_54 = arith.constant 512 : index
    %168 = vector.load %arg3[%c0_53, %c512_54] : memref<256x1280xbf16, #tpu.memory_space<vmem>>, vector<256x768xbf16>
    %cst_55 = arith.constant dense<0.000000e+00> : vector<16x768xf32>
    %169 = tpu.matmul %167, %168, %cst_55 {dimension_numbers = #tpu.dot_dimension_numbers<[1], [0], [0], [1], [0, 0, 1, 1], [], []>} : vector<16x256xbf16>, vector<256x768xbf16>, vector<16x768xf32> -> vector<16x768xf32>
    %c0_56 = arith.constant 0 : index
    %c0_57 = arith.constant 0 : index
    %c0_58 = arith.constant 0 : index
    %170 = vector.load %arg1[%c0_56, %c0_57, %c0_58] : memref<2x16x16xbf16, #tpu.memory_space<vmem>>, vector<1x16x16xbf16>
    %171 = vector.shape_cast %170 : vector<1x16x16xbf16> to vector<16x16xbf16>
    %172 = vector.extract_strided_slice %169 {offsets = [0, 512], sizes = [16, 128], strides = [1, 1]} : vector<16x768xf32> to vector<16x128xf32>
    %173 = arith.truncf %172 : vector<16x128xf32> to vector<16x128xbf16>
    %cst_59 = arith.constant dense<0.000000e+00> : vector<16x128xf32>
    %174 = tpu.matmul %171, %173, %cst_59 {dimension_numbers = #tpu.dot_dimension_numbers<[1], [0], [0], [1], [0, 0, 1, 1], [], []>} : vector<16x16xbf16>, vector<16x128xbf16>, vector<16x128xf32> -> vector<16x128xf32>
    %c1_60 = arith.constant 1 : index
    %c0_61 = arith.constant 0 : index
    %c0_62 = arith.constant 0 : index
    %175 = vector.load %arg1[%c1_60, %c0_61, %c0_62] : memref<2x16x16xbf16, #tpu.memory_space<vmem>>, vector<1x16x16xbf16>
    %176 = vector.shape_cast %175 : vector<1x16x16xbf16> to vector<16x16xbf16>
    %177 = vector.extract_strided_slice %169 {offsets = [0, 640], sizes = [16, 128], strides = [1, 1]} : vector<16x768xf32> to vector<16x128xf32>
    %178 = arith.truncf %177 : vector<16x128xf32> to vector<16x128xbf16>
    %cst_63 = arith.constant dense<0.000000e+00> : vector<16x128xf32>
    %179 = tpu.matmul %176, %178, %cst_63 {dimension_numbers = #tpu.dot_dimension_numbers<[1], [0], [0], [1], [0, 0, 1, 1], [], []>} : vector<16x16xbf16>, vector<16x128xbf16>, vector<16x128xf32> -> vector<16x128xf32>
    %180 = arith.addf %174, %179 : vector<16x128xf32>
    %c0_64 = arith.constant 0 : index
    %c896_65 = arith.constant 896 : index
    %181 = vector.load %arg4[%c0_64, %c896_65] : memref<1x1664xf32, #tpu.memory_space<vmem>>, vector<1x128xf32>
    %182 = vector.broadcast %181 : vector<1x128xf32> to vector<16x128xf32>
    %183 = arith.addf %180, %182 : vector<16x128xf32>
    %cst_66 = arith.constant 0.000000e+00 : f32
    %184 = vector.broadcast %cst_66 : f32 to vector<16x128xf32>
    %185 = arith.maximumf %183, %184 : vector<16x128xf32>
    %186 = vector.extract_strided_slice %169 {offsets = [0, 0], sizes = [16, 512], strides = [1, 1]} : vector<16x768xf32> to vector<16x512xf32>
    %187 = arith.truncf %185 : vector<16x128xf32> to vector<16x128xbf16>
    %c0_67 = arith.constant 0 : index
    %c896_68 = arith.constant 896 : index
    %188 = vector.load %arg2[%c0_67, %c896_68] : memref<128x1408xbf16, #tpu.memory_space<vmem>>, vector<128x512xbf16>
    %cst_69 = arith.constant dense<0.000000e+00> : vector<16x512xf32>
    %189 = tpu.matmul %187, %188, %cst_69 {dimension_numbers = #tpu.dot_dimension_numbers<[1], [0], [0], [1], [0, 0, 1, 1], [], []>} : vector<16x128xbf16>, vector<128x512xbf16>, vector<16x512xf32> -> vector<16x512xf32>
    %190 = arith.addf %186, %189 : vector<16x512xf32>
    %191 = arith.addf %190, %13 : vector<16x512xf32>
    %192 = vector.extract_strided_slice %191 {offsets = [0, 0], sizes = [16, 128], strides = [1, 1]} : vector<16x512xf32> to vector<16x128xf32>
    %193 = vector.extract_strided_slice %191 {offsets = [0, 128], sizes = [16, 128], strides = [1, 1]} : vector<16x512xf32> to vector<16x128xf32>
    %194 = vector.extract_strided_slice %191 {offsets = [0, 256], sizes = [16, 128], strides = [1, 1]} : vector<16x512xf32> to vector<16x128xf32>
    %195 = vector.extract_strided_slice %191 {offsets = [0, 384], sizes = [16, 128], strides = [1, 1]} : vector<16x512xf32> to vector<16x128xf32>
    %196 = arith.negf %193 : vector<16x128xf32>
    %197 = math.exp %196 : vector<16x128xf32>
    %cst_70 = arith.constant 1.000000e+00 : f32
    %198 = vector.broadcast %cst_70 : f32 to vector<16x128xf32>
    %199 = arith.addf %198, %197 : vector<16x128xf32>
    %200 = arith.divf %198, %199 : vector<16x128xf32>
    %201 = arith.mulf %200, %83 : vector<16x128xf32>
    %202 = arith.negf %192 : vector<16x128xf32>
    %203 = math.exp %202 : vector<16x128xf32>
    %cst_71 = arith.constant 1.000000e+00 : f32
    %204 = vector.broadcast %cst_71 : f32 to vector<16x128xf32>
    %205 = arith.addf %204, %203 : vector<16x128xf32>
    %206 = arith.divf %204, %205 : vector<16x128xf32>
    %207 = math.tanh %195 : vector<16x128xf32>
    %208 = arith.mulf %206, %207 : vector<16x128xf32>
    %209 = arith.addf %201, %208 : vector<16x128xf32>
    %210 = arith.negf %194 : vector<16x128xf32>
    %211 = math.exp %210 : vector<16x128xf32>
    %cst_72 = arith.constant 1.000000e+00 : f32
    %212 = vector.broadcast %cst_72 : f32 to vector<16x128xf32>
    %213 = arith.addf %212, %211 : vector<16x128xf32>
    %214 = arith.divf %212, %213 : vector<16x128xf32>
    %215 = math.tanh %209 : vector<16x128xf32>
    %216 = arith.mulf %214, %215 : vector<16x128xf32>
    %217 = arith.truncf %216 : vector<16x128xf32> to vector<16x128xbf16>
    %c0_73 = arith.constant 0 : index
    %c128_74 = arith.constant 128 : index
    %218 = vector.load %arg2[%c0_73, %c128_74] : memref<128x1408xbf16, #tpu.memory_space<vmem>>, vector<128x256xbf16>
    %cst_75 = arith.constant dense<0.000000e+00> : vector<16x256xf32>
    %219 = tpu.matmul %217, %218, %cst_75 {dimension_numbers = #tpu.dot_dimension_numbers<[1], [0], [0], [1], [0, 0, 1, 1], [], []>} : vector<16x128xbf16>, vector<128x256xbf16>, vector<16x256xf32> -> vector<16x256xf32>
    %220 = vector.extract_strided_slice %219 {offsets = [0, 0], sizes = [16, 128], strides = [1, 1]} : vector<16x256xf32> to vector<16x128xf32>
    %221 = vector.broadcast %0 : vector<1x128xf32> to vector<16x128xf32>
    %222 = arith.addf %220, %221 : vector<16x128xf32>
    %223 = math.tanh %222 : vector<16x128xf32>
    %224 = vector.broadcast %1 : vector<1x128xf32> to vector<16x128xf32>
    %225 = arith.mulf %223, %224 : vector<16x128xf32>
    %cst_76 = arith.constant dense<0.000000e+00> : vector<16xf32>
    %226 = vector.multi_reduction <add>, %225, %cst_76 [1] : vector<16x128xf32> to vector<16xf32>
    %227 = vector.shape_cast %226 : vector<16xf32> to vector<16x1xf32>
    %cst_77 = arith.constant dense<0xFF800000> : vector<1xf32>
    %228 = vector.multi_reduction <maximumf>, %227, %cst_77 [0] : vector<16x1xf32> to vector<1xf32>
    %229 = vector.shape_cast %228 : vector<1xf32> to vector<1x1xf32>
    %230 = vector.broadcast %229 : vector<1x1xf32> to vector<16x1xf32>
    %231 = arith.subf %227, %230 : vector<16x1xf32>
    %232 = math.exp %231 : vector<16x1xf32>
    %cst_78 = arith.constant dense<0.000000e+00> : vector<1xf32>
    %233 = vector.multi_reduction <add>, %232, %cst_78 [0] : vector<16x1xf32> to vector<1xf32>
    %234 = vector.shape_cast %233 : vector<1xf32> to vector<1x1xf32>
    %235 = tpu.reciprocal %234 {approx = true} : vector<1x1xf32> -> vector<1x1xf32>
    %236 = vector.broadcast %235 : vector<1x1xf32> to vector<16x1xf32>
    %237 = arith.mulf %232, %236 : vector<16x1xf32>
    %238 = vector.broadcast %237 : vector<16x1xf32> to vector<16x128xf32>
    %239 = arith.mulf %238, %216 : vector<16x128xf32>
    %cst_79 = arith.constant dense<0.000000e+00> : vector<128xf32>
    %240 = vector.multi_reduction <add>, %239, %cst_79 [0] : vector<16x128xf32> to vector<128xf32>
    %241 = vector.shape_cast %240 : vector<128xf32> to vector<1x128xf32>
    %242 = arith.truncf %241 : vector<1x128xf32> to vector<1x128xbf16>
    %243 = tpu.concatenate %164, %242 in 1 : vector<1x128xbf16>, vector<1x128xbf16> -> vector<1x256xbf16>
    %c0_80 = arith.constant 0 : index
    %c128_81 = arith.constant 128 : index
    %244 = vector.load %arg3[%c0_80, %c128_81] : memref<256x1280xbf16, #tpu.memory_space<vmem>>, vector<256x384xbf16>
    %cst_82 = arith.constant dense<0.000000e+00> : vector<1x384xf32>
    %245 = tpu.matmul %243, %244, %cst_82 {dimension_numbers = #tpu.dot_dimension_numbers<[1], [0], [0], [1], [0, 0, 1, 1], [], []>} : vector<1x256xbf16>, vector<256x384xbf16>, vector<1x384xf32> -> vector<1x384xf32>
    %c0_83 = arith.constant 0 : index
    %c1024_84 = arith.constant 1024 : index
    %246 = vector.load %arg4[%c0_83, %c1024_84] : memref<1x1664xf32, #tpu.memory_space<vmem>>, vector<1x384xf32>
    %247 = arith.addf %245, %246 : vector<1x384xf32>
    %248 = vector.extract_strided_slice %247 {offsets = [0, 0], sizes = [1, 128], strides = [1, 1]} : vector<1x384xf32> to vector<1x128xf32>
    %249 = arith.negf %248 : vector<1x128xf32>
    %250 = math.exp %249 : vector<1x128xf32>
    %cst_85 = arith.constant 1.000000e+00 : f32
    %251 = vector.broadcast %cst_85 : f32 to vector<1x128xf32>
    %252 = arith.addf %251, %250 : vector<1x128xf32>
    %253 = arith.divf %251, %252 : vector<1x128xf32>
    %254 = vector.extract_strided_slice %247 {offsets = [0, 128], sizes = [1, 128], strides = [1, 1]} : vector<1x384xf32> to vector<1x128xf32>
    %255 = arith.negf %254 : vector<1x128xf32>
    %256 = math.exp %255 : vector<1x128xf32>
    %cst_86 = arith.constant 1.000000e+00 : f32
    %257 = vector.broadcast %cst_86 : f32 to vector<1x128xf32>
    %258 = arith.addf %257, %256 : vector<1x128xf32>
    %259 = arith.divf %257, %258 : vector<1x128xf32>
    %260 = vector.extract_strided_slice %247 {offsets = [0, 256], sizes = [1, 128], strides = [1, 1]} : vector<1x384xf32> to vector<1x128xf32>
    %261 = vector.extract_strided_slice %219 {offsets = [0, 128], sizes = [16, 128], strides = [1, 1]} : vector<16x256xf32> to vector<16x128xf32>
    %262 = vector.broadcast %260 : vector<1x128xf32> to vector<16x128xf32>
    %263 = arith.addf %262, %261 : vector<16x128xf32>
    %c0_87 = arith.constant 0 : index
    %c1408_88 = arith.constant 1408 : index
    %264 = vector.load %arg4[%c0_87, %c1408_88] : memref<1x1664xf32, #tpu.memory_space<vmem>>, vector<1x128xf32>
    %265 = vector.broadcast %264 : vector<1x128xf32> to vector<16x128xf32>
    %266 = arith.addf %263, %265 : vector<16x128xf32>
    %267 = arith.negf %266 : vector<16x128xf32>
    %268 = math.exp %267 : vector<16x128xf32>
    %cst_89 = arith.constant 1.000000e+00 : f32
    %269 = vector.broadcast %cst_89 : f32 to vector<16x128xf32>
    %270 = arith.addf %269, %268 : vector<16x128xf32>
    %271 = arith.divf %269, %270 : vector<16x128xf32>
    %cst_90 = arith.constant dense<0xFF800000> : vector<128xf32>
    %272 = vector.multi_reduction <maximumf>, %271, %cst_90 [0] : vector<16x128xf32> to vector<128xf32>
    %273 = vector.shape_cast %272 : vector<128xf32> to vector<1x128xf32>
    %274 = vector.broadcast %273 : vector<1x128xf32> to vector<16x128xf32>
    %275 = arith.subf %271, %274 : vector<16x128xf32>
    %276 = math.exp %275 : vector<16x128xf32>
    %cst_91 = arith.constant dense<0.000000e+00> : vector<128xf32>
    %277 = vector.multi_reduction <add>, %276, %cst_91 [0] : vector<16x128xf32> to vector<128xf32>
    %278 = vector.shape_cast %277 : vector<128xf32> to vector<1x128xf32>
    %279 = tpu.reciprocal %278 {approx = true} : vector<1x128xf32> -> vector<1x128xf32>
    %280 = vector.broadcast %279 : vector<1x128xf32> to vector<16x128xf32>
    %281 = arith.mulf %276, %280 : vector<16x128xf32>
    %282 = arith.mulf %253, %160 : vector<1x128xf32>
    %283 = arith.mulf %209, %281 : vector<16x128xf32>
    %cst_92 = arith.constant dense<0.000000e+00> : vector<128xf32>
    %284 = vector.multi_reduction <add>, %283, %cst_92 [0] : vector<16x128xf32> to vector<128xf32>
    %285 = vector.shape_cast %284 : vector<128xf32> to vector<1x128xf32>
    %286 = arith.addf %282, %285 : vector<1x128xf32>
    %287 = math.tanh %286 : vector<1x128xf32>
    %288 = arith.mulf %259, %287 : vector<1x128xf32>
    %cst_93 = arith.constant 0.000000e+00 : f32
    %289 = vector.broadcast %cst_93 : f32 to vector<7x128xf32>
    %290 = tpu.concatenate %216, %288, %289 in 0 : vector<16x128xf32>, vector<1x128xf32>, vector<7x128xf32> -> vector<24x128xf32>
    %291 = arith.truncf %290 : vector<24x128xf32> to vector<24x128xbf16>
    %c0_94 = arith.constant 0 : index
    %c0_95 = arith.constant 0 : index
    %292 = vector.load %arg2[%c0_94, %c0_95] : memref<128x1408xbf16, #tpu.memory_space<vmem>>, vector<128x128xbf16>
    %cst_96 = arith.constant dense<0.000000e+00> : vector<24x128xf32>
    %293 = tpu.matmul %291, %292, %cst_96 {dimension_numbers = #tpu.dot_dimension_numbers<[1], [0], [0], [1], [0, 0, 1, 1], [], []>} : vector<24x128xbf16>, vector<128x128xbf16>, vector<24x128xf32> -> vector<24x128xf32>
    %c0_97 = arith.constant 0 : index
    %c1536 = arith.constant 1536 : index
    %294 = vector.load %arg4[%c0_97, %c1536] : memref<1x1664xf32, #tpu.memory_space<vmem>>, vector<1x128xf32>
    %295 = vector.broadcast %294 : vector<1x128xf32> to vector<24x128xf32>
    %296 = arith.addf %293, %295 : vector<24x128xf32>
    %c0_98 = arith.constant 0 : index
    %c0_99 = arith.constant 0 : index
    %297 = vector.load %arg5[%c0_98, %c0_99] : memref<24x128xf32, #tpu.memory_space<vmem>>, vector<24x128xf32>
    tpu.vector_store %arg5[%c0_98, %c0_99], %296 {strides = array<i32>} : memref<24x128xf32, #tpu.memory_space<vmem>>, vector<24x128xf32>,
    return
  }
}

</mosaic_0001>

<llo_original>
// kernel: tpu_custom_call.1
$region0: #{tpu_custom_call.1}
  #allocation0 [shape = 'u32[]', space=smem, size = 0x4, offset = 0x4, fixed_abs, tag = 'smem constant byte address 0x4 - core index']
  #allocation1 [shape = 'u32[144,128]{1,0:T(1,128)}', space=vmem, size = 0x12000, scoped, tag = 'internal scratch']
  %s0 = inlined_call_operand.hbm [shape: bf16[16,256], index: 0, kind: input, shape index: {}]
  %s1 = inlined_call_operand.hbm [shape: bf16[2,16,16], index: 1, kind: input, shape index: {}]
  %s2 = inlined_call_operand.hbm [shape: bf16[128,1408], index: 2, kind: input, shape index: {}]
  %s3 = inlined_call_operand.hbm [shape: bf16[256,1280], index: 3, kind: input, shape index: {}]
  %s4 = inlined_call_operand.vmem [shape: f32[1,1664], index: 4, kind: input, shape index: {}]
  %s5 = inlined_call_operand.hbm [shape: f32[24,128], index: 5, kind: output, shape index: {}]
  %s6 = sld [smem:[#allocation0]]
  $region46: #{tpu_custom_call.1} parent=0
    _
  %s8 = ssub.s32 1, %s6
  %s9 = scalar_select 0, %s8, %s6
  $region1: #{tpu_custom_call.1} parent=0
    #allocation2 [shape = 'u8[8192]{0}', space=vmem, size = 0x2000, scoped, tag = 'input window, operand 0, single buffered']
    #allocation3 [shape = 's32[1]{0}', space=sflag, size = 0x4, scoped, tag = 'scoped memory for tpu_custom_call.1']
    #allocation4 [shape = 's32[1]{0}', space=sflag, size = 0x4, scoped, tag = 'scoped memory for tpu_custom_call.1']
    #allocation5 [shape = 'u8[8192]{0}', space=vmem, size = 0x2000, scoped, tag = 'input window, operand 1, single buffered']
    #allocation6 [shape = 's32[1]{0}', space=sflag, size = 0x4, scoped, tag = 'scoped memory for tpu_custom_call.1']
    #allocation7 [shape = 'u8[360448]{0}', space=vmem, size = 0x58000, scoped, tag = 'input window, operand 2, single buffered']
    #allocation8 [shape = 'u8[655360]{0}', space=vmem, size = 0xa0000, scoped, tag = 'input window, operand 3, single buffered']
    #allocation9 [shape = 's32[1]{0}', space=sflag, size = 0x4, scoped, tag = 'scoped memory for tpu_custom_call.1']
    #allocation10 [shape = 'u8[12288]{0}', space=vmem, size = 0x3000, scoped, tag = 'output window, operand 0, single buffered']
    %10 = vsyncpa [#allocation3], 0
    %11 = vsyncpa [#allocation6], 0
    %12 = vsyncpa [#allocation9], 0
    %13 = vsyncpa [#allocation4], 0
    // Predicated region
    $region2: #{tpu_custom_call.1} parent=1 // pred_check
      _
    $region3: #{tpu_custom_call.1} parent=1 // pred_check_branch
      %15 = sbr.rel (0) target = $region5
    $region4: #{tpu_custom_call.1} parent=1 // pred_region
      %s17 = ssub.s32 256, 256
      %18 = vsyncadd [#allocation3], %s17
      %s19 = sshll.u32 [#allocation2], 4
      %s20 = int_to_ptr.vmem [resolvable:$true] %s19
      %25 = dma.hbm_to_vmem [thread:$0]  %s0, 256, %s20, [#allocation3], 128, 128, 8
    $region5: #{tpu_custom_call.1} parent=1 // pred_fallthru
      _
    // Predicated region
    $region6: #{tpu_custom_call.1} parent=1 // pred_check
      _
    $region7: #{tpu_custom_call.1} parent=1 // pred_check_branch
      %27 = sbr.rel (0) target = $region9
    $region8: #{tpu_custom_call.1} parent=1 // pred_region
      %s29 = ssub.s32 256, 256
      %30 = vsyncadd [#allocation6], %s29
      %s31 = sshll.u32 [#allocation5], 4
      %s32 = int_to_ptr.vmem [resolvable:$true] %s31
      %37 = dma.hbm_to_vmem [thread:$0]  %s1, 256, %s32, [#allocation6], 64, 64, 4
    $region9: #{tpu_custom_call.1} parent=1 // pred_fallthru
      _
    // Predicated region
    $region10: #{tpu_custom_call.1} parent=1 // pred_check
      _
    $region11: #{tpu_custom_call.1} parent=1 // pred_check_branch
      %39 = sbr.rel (0) target = $region13
    $region12: #{tpu_custom_call.1} parent=1 // pred_region
      %s41 = ssub.s32 11264, 11264
      %42 = vsyncadd [#allocation6], %s41
      %s43 = sshll.u32 [#allocation7], 4
      %s44 = int_to_ptr.vmem [resolvable:$true] %s43
      %49 = dma.hbm_to_vmem [thread:$0]  %s2, 11264, %s44, [#allocation6], 704, 704, 44
    $region13: #{tpu_custom_call.1} parent=1 // pred_fallthru
      _
    // Predicated region
    $region14: #{tpu_custom_call.1} parent=1 // pred_check
      _
    $region15: #{tpu_custom_call.1} parent=1 // pred_check_branch
      %51 = sbr.rel (0) target = $region17
    $region16: #{tpu_custom_call.1} parent=1 // pred_region
      %s53 = ssub.s32 20480, 20480
      %54 = vsyncadd [#allocation9], %s53
      %s55 = sshll.u32 [#allocation8], 4
      %s56 = int_to_ptr.vmem [resolvable:$true] %s55
      %61 = dma.hbm_to_vmem [thread:$0]  %s3, 20480, %s56, [#allocation9], 640, 640, 40
    $region17: #{tpu_custom_call.1} parent=1 // pred_fallthru
      _
    // Predicated region
    $region18: #{tpu_custom_call.1} parent=1 // pred_check
      _
    $region19: #{tpu_custom_call.1} parent=1 // pred_check_branch
      %63 = sbr.rel (0) target = $region21
    $region20: #{tpu_custom_call.1} parent=1 // pred_region
      _
    $region21: #{tpu_custom_call.1} parent=1 // pred_fallthru
      _
    // Predicated region
    $region22: #{tpu_custom_call.1} parent=1 // pred_check
      _
    $region23: #{tpu_custom_call.1} parent=1 // pred_check_branch
      %65 = sbr.rel (0) target = $region25
    $region24: #{tpu_custom_call.1} parent=1 // pred_region
      %66 = dma.done [#allocation3], 256
    $region25: #{tpu_custom_call.1} parent=1 // pred_fallthru
      _
    // Predicated region
    $region26: #{tpu_custom_call.1} parent=1 // pred_check
      _
    $region27: #{tpu_custom_call.1} parent=1 // pred_check_branch
      %68 = sbr.rel (0) target = $region29
    $region28: #{tpu_custom_call.1} parent=1 // pred_region
      %69 = dma.done [#allocation6], 256
    $region29: #{tpu_custom_call.1} parent=1 // pred_fallthru
      _
    // Predicated region
    $region30: #{tpu_custom_call.1} parent=1 // pred_check
      _
    $region31: #{tpu_custom_call.1} parent=1 // pred_check_branch
      %71 = sbr.rel (0) target = $region33
    $region32: #{tpu_custom_call.1} parent=1 // pred_region
      %72 = dma.done [#allocation6], 11264
    $region33: #{tpu_custom_call.1} parent=1 // pred_fallthru
      _
    // Predicated region
    $region34: #{tpu_custom_call.1} parent=1 // pred_check
      _
    $region35: #{tpu_custom_call.1} parent=1 // pred_check_branch
      %74 = sbr.rel (0) target = $region37
    $region36: #{tpu_custom_call.1} parent=1 // pred_region
      %75 = dma.done [#allocation9], 20480
    $region37: #{tpu_custom_call.1} parent=1 // pred_fallthru
      _
    %v77 = vld [vmem:[%s4 + $0x1] sm:$0x1]
    %v78 = vld [vmem:[%s4 + $0x2] sm:$0x1]
    %v79 = vld [vmem:[#allocation2] sm:$0xff]
    %v80 = vld [vmem:[#allocation2 + $0x8] sm:$0xff]
    %v81 = vld [vmem:[#allocation8] sm:$0xf]
    %v82 = vld [vmem:[#allocation8 + $0x28] sm:$0xf]
    %v83 = vld [vmem:[#allocation8 + $0x50] sm:$0xf]
    %v84 = vld [vmem:[#allocation8 + $0x78] sm:$0xf]
    %v85 = vld [vmem:[#allocation8 + $0xa0] sm:$0xf]
    %v86 = vld [vmem:[#allocation8 + $0xc8] sm:$0xf]
    %v87 = vld [vmem:[#allocation8 + $0xf0] sm:$0xf]
    %v88 = vld [vmem:[#allocation8 + $0x118] sm:$0xf]
    %v89 = vld [vmem:[#allocation8 + $0x140] sm:$0xf]
    %v90 = vld [vmem:[#allocation8 + $0x168] sm:$0xf]
    %v91 = vld [vmem:[#allocation8 + $0x190] sm:$0xf]
    %v92 = vld [vmem:[#allocation8 + $0x1b8] sm:$0xf]
    %v93 = vld [vmem:[#allocation8 + $0x1e0] sm:$0xf]
    %v94 = vld [vmem:[#allocation8 + $0x208] sm:$0xf]
    %v95 = vld [vmem:[#allocation8 + $0x230] sm:$0xf]
    %v96 = vld [vmem:[#allocation8 + $0x258] sm:$0xf]
    %v97 = vld [vmem:[#allocation8 + $0x280] sm:$0xf]
    %v98 = vld [vmem:[#allocation8 + $0x2a8] sm:$0xf]
    %v99 = vld [vmem:[#allocation8 + $0x2d0] sm:$0xf]
    %v100 = vld [vmem:[#allocation8 + $0x2f8] sm:$0xf]
    %v101 = vld [vmem:[#allocation8 + $0x320] sm:$0xf]
    %v102 = vld [vmem:[#allocation8 + $0x348] sm:$0xf]
    %v103 = vld [vmem:[#allocation8 + $0x370] sm:$0xf]
    %v104 = vld [vmem:[#allocation8 + $0x398] sm:$0xf]
    %v105 = vld [vmem:[#allocation8 + $0x3c0] sm:$0xf]
    %v106 = vld [vmem:[#allocation8 + $0x3e8] sm:$0xf]
    %v107 = vld [vmem:[#allocation8 + $0x410] sm:$0xf]
    %v108 = vld [vmem:[#allocation8 + $0x438] sm:$0xf]
    %v109 = vld [vmem:[#allocation8 + $0x460] sm:$0xf]
    %v110 = vld [vmem:[#allocation8 + $0x488] sm:$0xf]
    %v111 = vld [vmem:[#allocation8 + $0x4b0] sm:$0xf]
    %v112 = vld [vmem:[#allocation8 + $0x4d8] sm:$0xf]
    %v113 = vld [vmem:[%s4] sm:$0x1]
    %v115 = vlaneseq
    %v116 = vshrl.u32 %v115, 7
    %v117 = vsub.s32 0, %v116
    %v118 = vrot.slane %v113, %v117
    %v122 = vunpack.c.l.b16 %v79
    %v123 = vunpack.c.h.b16 %v79
    %v124 = vunpack.c.l.b16 %v80
    %v125 = vunpack.c.h.b16 %v80
    %v126 = vpack.c.b16 %v124, %v122
    %v127 = vpack.c.b16 %v125, %v123
    %v162 = vunpack.c.l.b16 %v81
    %v163 = vunpack.c.l.b16 %v82
    %v164 = vunpack.c.l.b16 %v83
    %v165 = vunpack.c.l.b16 %v84
    %v166 = vunpack.c.l.b16 %v85
    %v167 = vunpack.c.l.b16 %v86
    %v168 = vunpack.c.l.b16 %v87
    %v169 = vunpack.c.l.b16 %v88
    %v170 = vunpack.c.l.b16 %v89
    %v171 = vunpack.c.l.b16 %v90
    %v172 = vunpack.c.l.b16 %v91
    %v173 = vunpack.c.l.b16 %v92
    %v174 = vunpack.c.l.b16 %v93
    %v175 = vunpack.c.l.b16 %v94
    %v176 = vunpack.c.l.b16 %v95
    %v177 = vunpack.c.l.b16 %v96
    %v178 = vunpack.c.l.b16 %v97
    %v179 = vunpack.c.l.b16 %v98
    %v180 = vunpack.c.l.b16 %v99
    %v181 = vunpack.c.l.b16 %v100
    %v182 = vunpack.c.l.b16 %v101
    %v183 = vunpack.c.l.b16 %v102
    %v184 = vunpack.c.l.b16 %v103
    %v185 = vunpack.c.l.b16 %v104
    %v186 = vunpack.c.l.b16 %v105
    %v187 = vunpack.c.l.b16 %v106
    %v188 = vunpack.c.l.b16 %v107
    %v189 = vunpack.c.l.b16 %v108
    %v190 = vunpack.c.l.b16 %v109
    %v191 = vunpack.c.l.b16 %v110
    %v192 = vunpack.c.l.b16 %v111
    %v193 = vunpack.c.l.b16 %v112
    %v194 = vpack.c.b16 %v163, %v162
    %v195 = vpack.c.b16 %v165, %v164
    %v196 = vpack.c.b16 %v167, %v166
    %v197 = vpack.c.b16 %v169, %v168
    %v198 = vpack.c.b16 %v171, %v170
    %v199 = vpack.c.b16 %v173, %v172
    %v200 = vpack.c.b16 %v175, %v174
    %v201 = vpack.c.b16 %v177, %v176
    %v202 = vpack.c.b16 %v179, %v178
    %v203 = vpack.c.b16 %v181, %v180
    %v204 = vpack.c.b16 %v183, %v182
    %v205 = vpack.c.b16 %v185, %v184
    %v206 = vpack.c.b16 %v187, %v186
    %v207 = vpack.c.b16 %v189, %v188
    %v208 = vpack.c.b16 %v191, %v190
    %v209 = vpack.c.b16 %v193, %v192
    %226 = vmatprep.subr.bf16.mxu0 0
    %227 = vmatpush1.bf16.msra.mxu0 %v194
    %228 = vmatprep.subr.bf16.mxu0 0
    %229 = vmatpush1.bf16.msra.mxu0 %v195
    %230 = vmatprep.subr.bf16.mxu0 0
    %231 = vmatpush1.bf16.msra.mxu0 %v196
    %232 = vmatprep.subr.bf16.mxu0 0
    %233 = vmatpush1.bf16.msra.mxu0 %v197
    %234 = vmatprep.subr.bf16.mxu0 0
    %235 = vmatpush1.bf16.msra.mxu0 %v198
    %236 = vmatprep.subr.bf16.mxu0 0
    %237 = vmatpush1.bf16.msra.mxu0 %v199
    %238 = vmatprep.subr.bf16.mxu0 0
    %239 = vmatpush1.bf16.msra.mxu0 %v200
    %240 = vmatprep.subr.bf16.mxu0 0
    %241 = vmatpush1.bf16.msra.mxu0 %v201
    %242 = vmatprep.subr.bf16.mxu0 0
    %243 = vmatpush1.bf16.msra.mxu0 %v202
    %244 = vmatprep.subr.bf16.mxu0 0
    %245 = vmatpush1.bf16.msra.mxu0 %v203
    %246 = vmatprep.subr.bf16.mxu0 0
    %247 = vmatpush1.bf16.msra.mxu0 %v204
    %248 = vmatprep.subr.bf16.mxu0 0
    %249 = vmatpush1.bf16.msra.mxu0 %v205
    %250 = vmatprep.subr.bf16.mxu0 0
    %251 = vmatpush1.bf16.msra.mxu0 %v206
    %252 = vmatprep.subr.bf16.mxu0 0
    %253 = vmatpush1.bf16.msra.mxu0 %v207
    %254 = vmatprep.subr.bf16.mxu0 0
    %255 = vmatpush1.bf16.msra.mxu0 %v208
    %256 = vmatprep.subr.bf16.mxu0 0
    %257 = vmatpush1.bf16.msra.mxu0 %v209
    %258 = vmatprep.mubr.bf16.mxu0 %v127
    %259 = vmatmul.mubr.bf16.gmra.mrb[0].mxu0 %v126
    %v260 = vpop.f32.mrb[0].mxu0
    %v261 = vadd.f32 %v118, %v260
    %v262 = vpop.f32.mrb[0].mxu0
    %v263 = vpop.f32.mrb[0].mxu0
    %v264 = vadd.f32 %v118, %v263
    %v265 = vpop.f32.mrb[0].mxu0
    %266 = vdwg.mxu0
    %v267 = vpack.c.bf16 %v264, %v261
    %v268 = vld [vmem:[#allocation7 + $0xc] sm:$0xff]
    %v269 = vld [vmem:[#allocation7 + $0x14] sm:$0xff]
    %v270 = vld [vmem:[#allocation7 + $0x38] sm:$0xff]
    %v271 = vld [vmem:[#allocation7 + $0x40] sm:$0xff]
    %v272 = vld [vmem:[#allocation7 + $0x64] sm:$0xff]
    %v273 = vld [vmem:[#allocation7 + $0x6c] sm:$0xff]
    %v274 = vld [vmem:[#allocation7 + $0x90] sm:$0xff]
    %v275 = vld [vmem:[#allocation7 + $0x98] sm:$0xff]
    %v276 = vld [vmem:[#allocation7 + $0xbc] sm:$0xff]
    %v277 = vld [vmem:[#allocation7 + $0xc4] sm:$0xff]
    %v278 = vld [vmem:[#allocation7 + $0xe8] sm:$0xff]
    %v279 = vld [vmem:[#allocation7 + $0xf0] sm:$0xff]
    %v280 = vld [vmem:[#allocation7 + $0x114] sm:$0xff]
    %v281 = vld [vmem:[#allocation7 + $0x11c] sm:$0xff]
    %v282 = vld [vmem:[#allocation7 + $0x140] sm:$0xff]
    %v283 = vld [vmem:[#allocation7 + $0x148] sm:$0xff]
    %v284 = vld [vmem:[#allocation7 + $0x16c] sm:$0xff]
    %v285 = vld [vmem:[#allocation7 + $0x174] sm:$0xff]
    %v286 = vld [vmem:[#allocation7 + $0x198] sm:$0xff]
    %v287 = vld [vmem:[#allocation7 + $0x1a0] sm:$0xff]
    %v288 = vld [vmem:[#allocation7 + $0x1c4] sm:$0xff]
    %v289 = vld [vmem:[#allocation7 + $0x1cc] sm:$0xff]
    %v290 = vld [vmem:[#allocation7 + $0x1f0] sm:$0xff]
    %v291 = vld [vmem:[#allocation7 + $0x1f8] sm:$0xff]
    %v292 = vld [vmem:[#allocation7 + $0x21c] sm:$0xff]
    %v293 = vld [vmem:[#allocation7 + $0x224] sm:$0xff]
    %v294 = vld [vmem:[#allocation7 + $0x248] sm:$0xff]
    %v295 = vld [vmem:[#allocation7 + $0x250] sm:$0xff]
    %v296 = vld [vmem:[#allocation7 + $0x274] sm:$0xff]
    %v297 = vld [vmem:[#allocation7 + $0x27c] sm:$0xff]
    %v298 = vld [vmem:[#allocation7 + $0x2a0] sm:$0xff]
    %v299 = vld [vmem:[#allocation7 + $0x2a8] sm:$0xff]
    %v300 = vld [vmem:[%s4 + $0x3] sm:$0xf]
    %v302 = vlaneseq
    %v303 = vshrl.u32 %v302, 7
    %v304 = vsub.s32 0, %v303
    %v305 = vrot.slane %v300, %v304
    %v306 = vlaneseq
    %v307 = vshrl.u32 %v306, 7
    %v308 = vsub.s32 1, %v307
    %v309 = vrot.slane %v300, %v308
    %v310 = vlaneseq
    %v311 = vshrl.u32 %v310, 7
    %v312 = vsub.s32 2, %v311
    %v313 = vrot.slane %v300, %v312
    %v314 = vlaneseq
    %v315 = vshrl.u32 %v314, 7
    %v316 = vsub.s32 3, %v315
    %v317 = vrot.slane %v300, %v316
    %v354 = vunpack.c.l.b16 %v268
    %v355 = vunpack.c.h.b16 %v268
    %v356 = vunpack.c.l.b16 %v269
    %v357 = vunpack.c.h.b16 %v269
    %v358 = vunpack.c.l.b16 %v270
    %v359 = vunpack.c.h.b16 %v270
    %v360 = vunpack.c.l.b16 %v271
    %v361 = vunpack.c.h.b16 %v271
    %v362 = vunpack.c.l.b16 %v272
    %v363 = vunpack.c.h.b16 %v272
    %v364 = vunpack.c.l.b16 %v273
    %v365 = vunpack.c.h.b16 %v273
    %v366 = vunpack.c.l.b16 %v274
    %v367 = vunpack.c.h.b16 %v274
    %v368 = vunpack.c.l.b16 %v275
    %v369 = vunpack.c.h.b16 %v275
    %v370 = vunpack.c.l.b16 %v276
    %v371 = vunpack.c.h.b16 %v276
    %v372 = vunpack.c.l.b16 %v277
    %v373 = vunpack.c.h.b16 %v277
    %v374 = vunpack.c.l.b16 %v278
    %v375 = vunpack.c.h.b16 %v278
    %v376 = vunpack.c.l.b16 %v279
    %v377 = vunpack.c.h.b16 %v279
    %v378 = vunpack.c.l.b16 %v280
    %v379 = vunpack.c.h.b16 %v280
    %v380 = vunpack.c.l.b16 %v281
    %v381 = vunpack.c.h.b16 %v281
    %v382 = vunpack.c.l.b16 %v282
    %v383 = vunpack.c.h.b16 %v282
    %v384 = vunpack.c.l.b16 %v283
    %v385 = vunpack.c.h.b16 %v283
    %v386 = vunpack.c.l.b16 %v284
    %v387 = vunpack.c.h.b16 %v284
    %v388 = vunpack.c.l.b16 %v285
    %v389 = vunpack.c.h.b16 %v285
    %v390 = vunpack.c.l.b16 %v286
    %v391 = vunpack.c.h.b16 %v286
    %v392 = vunpack.c.l.b16 %v287
    %v393 = vunpack.c.h.b16 %v287
    %v394 = vunpack.c.l.b16 %v288
    %v395 = vunpack.c.h.b16 %v288
    %v396 = vunpack.c.l.b16 %v289
    %v397 = vunpack.c.h.b16 %v289
    %v398 = vunpack.c.l.b16 %v290
    %v399 = vunpack.c.h.b16 %v290
    %v400 = vunpack.c.l.b16 %v291
    %v401 = vunpack.c.h.b16 %v291
    %v402 = vunpack.c.l.b16 %v292
    %v403 = vunpack.c.h.b16 %v292
    %v404 = vunpack.c.l.b16 %v293
    %v405 = vunpack.c.h.b16 %v293
    %v406 = vunpack.c.l.b16 %v294
    %v407 = vunpack.c.h.b16 %v294
    %v408 = vunpack.c.l.b16 %v295
    %v409 = vunpack.c.h.b16 %v295
    %v410 = vunpack.c.l.b16 %v296
    %v411 = vunpack.c.h.b16 %v296
    %v412 = vunpack.c.l.b16 %v297
    %v413 = vunpack.c.h.b16 %v297
    %v414 = vunpack.c.l.b16 %v298
    %v415 = vunpack.c.h.b16 %v298
    %v416 = vunpack.c.l.b16 %v299
    %v417 = vunpack.c.h.b16 %v299
    %v418 = vpack.c.b16 %v358, %v354
    %v419 = vpack.c.b16 %v359, %v355
    %v420 = vpack.c.b16 %v360, %v356
    %v421 = vpack.c.b16 %v361, %v357
    %v422 = vpack.c.b16 %v366, %v362
    %v423 = vpack.c.b16 %v367, %v363
    %v424 = vpack.c.b16 %v368, %v364
    %v425 = vpack.c.b16 %v369, %v365
    %v426 = vpack.c.b16 %v374, %v370
    %v427 = vpack.c.b16 %v375, %v371
    %v428 = vpack.c.b16 %v376, %v372
    %v429 = vpack.c.b16 %v377, %v373
    %v430 = vpack.c.b16 %v382, %v378
    %v431 = vpack.c.b16 %v383, %v379
    %v432 = vpack.c.b16 %v384, %v380
    %v433 = vpack.c.b16 %v385, %v381
    %v434 = vpack.c.b16 %v390, %v386
    %v435 = vpack.c.b16 %v391, %v387
    %v436 = vpack.c.b16 %v392, %v388
    %v437 = vpack.c.b16 %v393, %v389
    %v438 = vpack.c.b16 %v398, %v394
    %v439 = vpack.c.b16 %v399, %v395
    %v440 = vpack.c.b16 %v400, %v396
    %v441 = vpack.c.b16 %v401, %v397
    %v442 = vpack.c.b16 %v406, %v402
    %v443 = vpack.c.b16 %v407, %v403
    %v444 = vpack.c.b16 %v408, %v404
    %v445 = vpack.c.b16 %v409, %v405
    %v446 = vpack.c.b16 %v414, %v410
    %v447 = vpack.c.b16 %v415, %v411
    %v448 = vpack.c.b16 %v416, %v412
    %v449 = vpack.c.b16 %v417, %v413
    %482 = vmatprep.subr.bf16.mxu0 %v419
    %483 = vmatpush1.bf16.msra.mxu0 %v418
    %484 = vmatprep.subr.bf16.mxu0 %v423
    %485 = vmatpush1.bf16.msra.mxu0 %v422
    %486 = vmatprep.subr.bf16.mxu0 %v427
    %487 = vmatpush1.bf16.msra.mxu0 %v426
    %488 = vmatprep.subr.bf16.mxu0 %v431
    %489 = vmatpush1.bf16.msra.mxu0 %v430
    %490 = vmatprep.subr.bf16.mxu0 %v435
    %491 = vmatpush1.bf16.msra.mxu0 %v434
    %492 = vmatprep.subr.bf16.mxu0 %v439
    %493 = vmatpush1.bf16.msra.mxu0 %v438
    %494 = vmatprep.subr.bf16.mxu0 %v443
    %495 = vmatpush1.bf16.msra.mxu0 %v442
    %496 = vmatprep.subr.bf16.mxu0 %v447
    %497 = vmatpush1.bf16.msra.mxu0 %v446
    %498 = vmatprep.subr.bf16.mxu0 0
    %499 = vmatpush1.bf16.msra.mxu0 0
    %500 = vmatprep.subr.bf16.mxu0 0
    %501 = vmatpush1.bf16.msra.mxu0 0
    %502 = vmatprep.subr.bf16.mxu0 0
    %503 = vmatpush1.bf16.msra.mxu0 0
    %504 = vmatprep.subr.bf16.mxu0 0
    %505 = vmatpush1.bf16.msra.mxu0 0
    %506 = vmatprep.subr.bf16.mxu0 0
    %507 = vmatpush1.bf16.msra.mxu0 0
    %508 = vmatprep.subr.bf16.mxu0 0
    %509 = vmatpush1.bf16.msra.mxu0 0
    %510 = vmatprep.subr.bf16.mxu0 0
    %511 = vmatpush1.bf16.msra.mxu0 0
    %512 = vmatprep.subr.bf16.mxu0 0
    %513 = vmatpush1.bf16.msra.mxu0 0
    %514 = vmatprep.mubr.bf16.mxu0 0
    %515 = vmatmul.mubr.bf16.gmra.mrb[0].mxu0 %v267
    %v516 = vpop.f32.mrb[0].mxu0
    %v517 = vadd.f32 %v305, %v516
    %v518 = vpop.f32.mrb[0].mxu0
    %v519 = vadd.f32 %v309, %v518
    %v520 = vpop.f32.mrb[0].mxu0
    %v521 = vadd.f32 %v305, %v520
    %v522 = vpop.f32.mrb[0].mxu0
    %v523 = vadd.f32 %v309, %v522
    %524 = vdwg.mxu0
    %525 = vmatprep.subr.bf16.mxu0 %v421
    %526 = vmatpush1.bf16.msra.mxu0 %v420
    %527 = vmatprep.subr.bf16.mxu0 %v425
    %528 = vmatpush1.bf16.msra.mxu0 %v424
    %529 = vmatprep.subr.bf16.mxu0 %v429
    %530 = vmatpush1.bf16.msra.mxu0 %v428
    %531 = vmatprep.subr.bf16.mxu0 %v433
    %532 = vmatpush1.bf16.msra.mxu0 %v432
    %533 = vmatprep.subr.bf16.mxu0 %v437
    %534 = vmatpush1.bf16.msra.mxu0 %v436
    %535 = vmatprep.subr.bf16.mxu0 %v441
    %536 = vmatpush1.bf16.msra.mxu0 %v440
    %537 = vmatprep.subr.bf16.mxu0 %v445
    %538 = vmatpush1.bf16.msra.mxu0 %v444
    %539 = vmatprep.subr.bf16.mxu0 %v449
    %540 = vmatpush1.bf16.msra.mxu0 %v448
    %541 = vmatprep.subr.bf16.mxu0 0
    %542 = vmatpush1.bf16.msra.mxu0 0
    %543 = vmatprep.subr.bf16.mxu0 0
    %544 = vmatpush1.bf16.msra.mxu0 0
    %545 = vmatprep.subr.bf16.mxu0 0
    %546 = vmatpush1.bf16.msra.mxu0 0
    %547 = vmatprep.subr.bf16.mxu0 0
    %548 = vmatpush1.bf16.msra.mxu0 0
    %549 = vmatprep.subr.bf16.mxu0 0
    %550 = vmatpush1.bf16.msra.mxu0 0
    %551 = vmatprep.subr.bf16.mxu0 0
    %552 = vmatpush1.bf16.msra.mxu0 0
    %553 = vmatprep.subr.bf16.mxu0 0
    %554 = vmatpush1.bf16.msra.mxu0 0
    %555 = vmatprep.subr.bf16.mxu0 0
    %556 = vmatpush1.bf16.msra.mxu0 0
    %557 = vmatprep.mubr.bf16.mxu0 0
    %558 = vmatmul.mubr.bf16.gmra.mrb[0].mxu0 %v267
    %v559 = vpop.f32.mrb[0].mxu0
    %v560 = vadd.f32 %v313, %v559
    %v561 = vpop.f32.mrb[0].mxu0
    %v562 = vadd.f32 %v317, %v561
    %v563 = vpop.f32.mrb[0].mxu0
    %v564 = vadd.f32 %v313, %v563
    %v565 = vpop.f32.mrb[0].mxu0
    %v566 = vadd.f32 %v317, %v565
    %567 = vdwg.mxu0
    %v568 = vld [vmem:[#allocation7 + $0x4] sm:$0xf]
    %v569 = vld [vmem:[#allocation7 + $0x30] sm:$0xf]
    %v570 = vld [vmem:[#allocation7 + $0x5c] sm:$0xf]
    %v571 = vld [vmem:[#allocation7 + $0x88] sm:$0xf]
    %v572 = vld [vmem:[#allocation7 + $0xb4] sm:$0xf]
    %v573 = vld [vmem:[#allocation7 + $0xe0] sm:$0xf]
    %v574 = vld [vmem:[#allocation7 + $0x10c] sm:$0xf]
    %v575 = vld [vmem:[#allocation7 + $0x138] sm:$0xf]
    %v576 = vld [vmem:[#allocation7 + $0x164] sm:$0xf]
    %v577 = vld [vmem:[#allocation7 + $0x190] sm:$0xf]
    %v578 = vld [vmem:[#allocation7 + $0x1bc] sm:$0xf]
    %v579 = vld [vmem:[#allocation7 + $0x1e8] sm:$0xf]
    %v580 = vld [vmem:[#allocation7 + $0x214] sm:$0xf]
    %v581 = vld [vmem:[#allocation7 + $0x240] sm:$0xf]
    %v582 = vld [vmem:[#allocation7 + $0x26c] sm:$0xf]
    %v583 = vld [vmem:[#allocation7 + $0x298] sm:$0xf]
    %v585 = vlaneseq
    %v586 = vshrl.u32 %v585, 7
    %v587 = vsub.s32 0, %v586
    %v588 = vrot.slane %v77, %v587
    %v606 = vunpack.c.l.b16 %v568
    %v607 = vunpack.c.l.b16 %v569
    %v608 = vunpack.c.l.b16 %v570
    %v609 = vunpack.c.l.b16 %v571
    %v610 = vunpack.c.l.b16 %v572
    %v611 = vunpack.c.l.b16 %v573
    %v612 = vunpack.c.l.b16 %v574
    %v613 = vunpack.c.l.b16 %v575
    %v614 = vunpack.c.l.b16 %v576
    %v615 = vunpack.c.l.b16 %v577
    %v616 = vunpack.c.l.b16 %v578
    %v617 = vunpack.c.l.b16 %v579
    %v618 = vunpack.c.l.b16 %v580
    %v619 = vunpack.c.l.b16 %v581
    %v620 = vunpack.c.l.b16 %v582
    %v621 = vunpack.c.l.b16 %v583
    %v622 = vpack.c.b16 %v607, %v606
    %v623 = vpack.c.b16 %v609, %v608
    %v624 = vpack.c.b16 %v611, %v610
    %v625 = vpack.c.b16 %v613, %v612
    %v626 = vpack.c.b16 %v615, %v614
    %v627 = vpack.c.b16 %v617, %v616
    %v628 = vpack.c.b16 %v619, %v618
    %v629 = vpack.c.b16 %v621, %v620
    %638 = vmatprep.subr.bf16.mxu0 0
    %639 = vmatpush1.bf16.msra.mxu0 %v622
    %640 = vmatprep.subr.bf16.mxu0 0
    %641 = vmatpush1.bf16.msra.mxu0 %v623
    %642 = vmatprep.subr.bf16.mxu0 0
    %643 = vmatpush1.bf16.msra.mxu0 %v624
    %644 = vmatprep.subr.bf16.mxu0 0
    %645 = vmatpush1.bf16.msra.mxu0 %v625
    %646 = vmatprep.subr.bf16.mxu0 0
    %647 = vmatpush1.bf16.msra.mxu0 %v626
    %648 = vmatprep.subr.bf16.mxu0 0
    %649 = vmatpush1.bf16.msra.mxu0 %v627
    %650 = vmatprep.subr.bf16.mxu0 0
    %651 = vmatpush1.bf16.msra.mxu0 %v628
    %652 = vmatprep.subr.bf16.mxu0 0
    %653 = vmatpush1.bf16.msra.mxu0 %v629
    %654 = vmatprep.subr.bf16.mxu0 0
    %655 = vmatpush1.bf16.msra.mxu0 0
    %656 = vmatprep.subr.bf16.mxu0 0
    %657 = vmatpush1.bf16.msra.mxu0 0
    %658 = vmatprep.subr.bf16.mxu0 0
    %659 = vmatpush1.bf16.msra.mxu0 0
    %660 = vmatprep.subr.bf16.mxu0 0
    %661 = vmatpush1.bf16.msra.mxu0 0
    %662 = vmatprep.subr.bf16.mxu0 0
    %663 = vmatpush1.bf16.msra.mxu0 0
    %664 = vmatprep.subr.bf16.mxu0 0
    %665 = vmatpush1.bf16.msra.mxu0 0
    %666 = vmatprep.subr.bf16.mxu0 0
    %667 = vmatpush1.bf16.msra.mxu0 0
    %668 = vmatprep.subr.bf16.mxu0 0
    %669 = vmatpush1.bf16.msra.mxu0 0
    %670 = vmatprep.mubr.bf16.mxu0 0
    %671 = vmatmul.mubr.bf16.gmra.mrb[0].mxu0 %v267
    %v672 = vpop.f32.mrb[0].mxu0
    %v673 = vadd.f32 %v588, %v672
    %v674 = vpop.f32.mrb[0].mxu0
    %v675 = vpop.f32.mrb[0].mxu0
    %v676 = vadd.f32 %v588, %v675
    %v677 = vpop.f32.mrb[0].mxu0
    %678 = vdwg.mxu0
    %v679 = vtanh.pop %v673
    %v680 = vtanh.pop %v676
    %v682 = vlaneseq
    %v683 = vshrl.u32 %v682, 7
    %v684 = vsub.s32 0, %v683
    %v685 = vrot.slane %v78, %v684
    %v687 = vmul.f32 %v679, %v685
    %v688 = vmul.f32 %v680, %v685
    %689 = vadd.xlane.f32.xlu0 %v687
    %v690 = vpop.xlane.xlu0 %689
    %691 = vadd.xlane.f32.xlu0 %v688
    %v692 = vpop.xlane.xlu0 %691
    %v693 = vmax.f32 %v690, %v692
    %v694 = vrot.slane %v693, 4
    %v695 = vmax.f32 %v693, %v694
    %v696 = vrot.slane %v695, 2
    %v697 = vmax.f32 %v695, %v696
    %v698 = vrot.slane %v697, 1
    %v699 = vmax.f32 %v697, %v698
    %v700 = vsub.f32 %v690, %v699
    %v701 = vsub.f32 %v692, %v699
    %v702 = vmul.f32 %v700, 1.442695
    %v703 = vpow.pop %v702
    %v704 = vmul.f32 %v701, 1.442695
    %v705 = vpow.pop %v704
    %v706 = vadd.f32 %v703, %v705
    %v707 = vrot.slane %v706, 4
    %v708 = vadd.f32 %v706, %v707
    %v709 = vrot.slane %v708, 2
    %v710 = vadd.f32 %v708, %v709
    %v711 = vrot.slane %v710, 1
    %v712 = vadd.f32 %v710, %v711
    %v713 = vrcp.pop %v712
    %v714 = vmul.f32 %v703, %v713
    %v715 = vmul.f32 %v705, %v713
    %v716 = vmul.f32 %v714, %v261
    %v717 = vmul.f32 %v715, %v264
    %v718 = vadd.f32 %v716, %v717
    %v719 = vrot.slane %v718, 4
    %v720 = vadd.f32 %v718, %v719
    %v721 = vrot.slane %v720, 2
    %v722 = vadd.f32 %v720, %v721
    %v723 = vrot.slane %v722, 1
    %v724 = vadd.f32 %v722, %v723
    %v725 = vpack.c.bf16 %v724, %v724
    %v726 = vld [vmem:[#allocation8 + $0x10] sm:$0xff]
    %v727 = vld [vmem:[#allocation8 + $0x18] sm:$0xff]
    %v728 = vld [vmem:[#allocation8 + $0x20] sm:$0xff]
    %v729 = vld [vmem:[#allocation8 + $0x38] sm:$0xff]
    %v730 = vld [vmem:[#allocation8 + $0x40] sm:$0xff]
    %v731 = vld [vmem:[#allocation8 + $0x48] sm:$0xff]
    %v732 = vld [vmem:[#allocation8 + $0x60] sm:$0xff]
    %v733 = vld [vmem:[#allocation8 + $0x68] sm:$0xff]
    %v734 = vld [vmem:[#allocation8 + $0x70] sm:$0xff]
    %v735 = vld [vmem:[#allocation8 + $0x88] sm:$0xff]
    %v736 = vld [vmem:[#allocation8 + $0x90] sm:$0xff]
    %v737 = vld [vmem:[#allocation8 + $0x98] sm:$0xff]
    %v738 = vld [vmem:[#allocation8 + $0xb0] sm:$0xff]
    %v739 = vld [vmem:[#allocation8 + $0xb8] sm:$0xff]
    %v740 = vld [vmem:[#allocation8 + $0xc0] sm:$0xff]
    %v741 = vld [vmem:[#allocation8 + $0xd8] sm:$0xff]
    %v742 = vld [vmem:[#allocation8 + $0xe0] sm:$0xff]
    %v743 = vld [vmem:[#allocation8 + $0xe8] sm:$0xff]
    %v744 = vld [vmem:[#allocation8 + $0x100] sm:$0xff]
    %v745 = vld [vmem:[#allocation8 + $0x108] sm:$0xff]
    %v746 = vld [vmem:[#allocation8 + $0x110] sm:$0xff]
    %v747 = vld [vmem:[#allocation8 + $0x128] sm:$0xff]
    %v748 = vld [vmem:[#allocation8 + $0x130] sm:$0xff]
    %v749 = vld [vmem:[#allocation8 + $0x138] sm:$0xff]
    %v750 = vld [vmem:[#allocation8 + $0x150] sm:$0xff]
    %v751 = vld [vmem:[#allocation8 + $0x158] sm:$0xff]
    %v752 = vld [vmem:[#allocation8 + $0x160] sm:$0xff]
    %v753 = vld [vmem:[#allocation8 + $0x178] sm:$0xff]
    %v754 = vld [vmem:[#allocation8 + $0x180] sm:$0xff]
    %v755 = vld [vmem:[#allocation8 + $0x188] sm:$0xff]
    %v756 = vld [vmem:[#allocation8 + $0x1a0] sm:$0xff]
    %v757 = vld [vmem:[#allocation8 + $0x1a8] sm:$0xff]
    %v758 = vld [vmem:[#allocation8 + $0x1b0] sm:$0xff]
    %v759 = vld [vmem:[#allocation8 + $0x1c8] sm:$0xff]
    %v760 = vld [vmem:[#allocation8 + $0x1d0] sm:$0xff]
    %v761 = vld [vmem:[#allocation8 + $0x1d8] sm:$0xff]
    %v762 = vld [vmem:[#allocation8 + $0x1f0] sm:$0xff]
    %v763 = vld [vmem:[#allocation8 + $0x1f8] sm:$0xff]
    %v764 = vld [vmem:[#allocation8 + $0x200] sm:$0xff]
    %v765 = vld [vmem:[#allocation8 + $0x218] sm:$0xff]
    %v766 = vld [vmem:[#allocation8 + $0x220] sm:$0xff]
    %v767 = vld [vmem:[#allocation8 + $0x228] sm:$0xff]
    %v768 = vld [vmem:[#allocation8 + $0x240] sm:$0xff]
    %v769 = vld [vmem:[#allocation8 + $0x248] sm:$0xff]
    %v770 = vld [vmem:[#allocation8 + $0x250] sm:$0xff]
    %v771 = vld [vmem:[#allocation8 + $0x268] sm:$0xff]
    %v772 = vld [vmem:[#allocation8 + $0x270] sm:$0xff]
    %v773 = vld [vmem:[#allocation8 + $0x278] sm:$0xff]
    %v774 = vld [vmem:[#allocation8 + $0x290] sm:$0xff]
    %v775 = vld [vmem:[#allocation8 + $0x298] sm:$0xff]
    %v776 = vld [vmem:[#allocation8 + $0x2a0] sm:$0xff]
    %v777 = vld [vmem:[#allocation8 + $0x2b8] sm:$0xff]
    %v778 = vld [vmem:[#allocation8 + $0x2c0] sm:$0xff]
    %v779 = vld [vmem:[#allocation8 + $0x2c8] sm:$0xff]
    %v780 = vld [vmem:[#allocation8 + $0x2e0] sm:$0xff]
    %v781 = vld [vmem:[#allocation8 + $0x2e8] sm:$0xff]
    %v782 = vld [vmem:[#allocation8 + $0x2f0] sm:$0xff]
    %v783 = vld [vmem:[#allocation8 + $0x308] sm:$0xff]
    %v784 = vld [vmem:[#allocation8 + $0x310] sm:$0xff]
    %v785 = vld [vmem:[#allocation8 + $0x318] sm:$0xff]
    %v786 = vld [vmem:[#allocation8 + $0x330] sm:$0xff]
    %v787 = vld [vmem:[#allocation8 + $0x338] sm:$0xff]
    %v788 = vld [vmem:[#allocation8 + $0x340] sm:$0xff]
    %v789 = vld [vmem:[#allocation8 + $0x358] sm:$0xff]
    %v790 = vld [vmem:[#allocation8 + $0x360] sm:$0xff]
    %v791 = vld [vmem:[#allocation8 + $0x368] sm:$0xff]
    %v792 = vld [vmem:[#allocation8 + $0x380] sm:$0xff]
    %v793 = vld [vmem:[#allocation8 + $0x388] sm:$0xff]
    %v794 = vld [vmem:[#allocation8 + $0x390] sm:$0xff]
    %v795 = vld [vmem:[#allocation8 + $0x3a8] sm:$0xff]
    %v796 = vld [vmem:[#allocation8 + $0x3b0] sm:$0xff]
    %v797 = vld [vmem:[#allocation8 + $0x3b8] sm:$0xff]
    %v798 = vld [vmem:[#allocation8 + $0x3d0] sm:$0xff]
    %v799 = vld [vmem:[#allocation8 + $0x3d8] sm:$0xff]
    %v800 = vld [vmem:[#allocation8 + $0x3e0] sm:$0xff]
    %v801 = vld [vmem:[#allocation8 + $0x3f8] sm:$0xff]
    %v802 = vld [vmem:[#allocation8 + $0x400] sm:$0xff]
    %v803 = vld [vmem:[#allocation8 + $0x408] sm:$0xff]
    %v804 = vld [vmem:[#allocation8 + $0x420] sm:$0xff]
    %v805 = vld [vmem:[#allocation8 + $0x428] sm:$0xff]
    %v806 = vld [vmem:[#allocation8 + $0x430] sm:$0xff]
    %v807 = vld [vmem:[#allocation8 + $0x448] sm:$0xff]
    %v808 = vld [vmem:[#allocation8 + $0x450] sm:$0xff]
    %v809 = vld [vmem:[#allocation8 + $0x458] sm:$0xff]
    %v810 = vld [vmem:[#allocation8 + $0x470] sm:$0xff]
    %v811 = vld [vmem:[#allocation8 + $0x478] sm:$0xff]
    %v812 = vld [vmem:[#allocation8 + $0x480] sm:$0xff]
    %v813 = vld [vmem:[#allocation8 + $0x498] sm:$0xff]
    %v814 = vld [vmem:[#allocation8 + $0x4a0] sm:$0xff]
    %v815 = vld [vmem:[#allocation8 + $0x4a8] sm:$0xff]
    %v816 = vld [vmem:[#allocation8 + $0x4c0] sm:$0xff]
    %v817 = vld [vmem:[#allocation8 + $0x4c8] sm:$0xff]
    %v818 = vld [vmem:[#allocation8 + $0x4d0] sm:$0xff]
    %v819 = vld [vmem:[#allocation8 + $0x4e8] sm:$0xff]
    %v820 = vld [vmem:[#allocation8 + $0x4f0] sm:$0xff]
    %v821 = vld [vmem:[#allocation8 + $0x4f8] sm:$0xff]
    %v918 = vunpack.c.l.b16 %v726
    %v919 = vunpack.c.h.b16 %v726
    %v920 = vunpack.c.l.b16 %v727
    %v921 = vunpack.c.h.b16 %v727
    %v922 = vunpack.c.l.b16 %v728
    %v923 = vunpack.c.h.b16 %v728
    %v924 = vunpack.c.l.b16 %v729
    %v925 = vunpack.c.h.b16 %v729
    %v926 = vunpack.c.l.b16 %v730
    %v927 = vunpack.c.h.b16 %v730
    %v928 = vunpack.c.l.b16 %v731
    %v929 = vunpack.c.h.b16 %v731
    %v930 = vunpack.c.l.b16 %v732
    %v931 = vunpack.c.h.b16 %v732
    %v932 = vunpack.c.l.b16 %v733
    %v933 = vunpack.c.h.b16 %v733
    %v934 = vunpack.c.l.b16 %v734
    %v935 = vunpack.c.h.b16 %v734
    %v936 = vunpack.c.l.b16 %v735
    %v937 = vunpack.c.h.b16 %v735
    %v938 = vunpack.c.l.b16 %v736
    %v939 = vunpack.c.h.b16 %v736
    %v940 = vunpack.c.l.b16 %v737
    %v941 = vunpack.c.h.b16 %v737
    %v942 = vunpack.c.l.b16 %v738
    %v943 = vunpack.c.h.b16 %v738
    %v944 = vunpack.c.l.b16 %v739
    %v945 = vunpack.c.h.b16 %v739
    %v946 = vunpack.c.l.b16 %v740
    %v947 = vunpack.c.h.b16 %v740
    %v948 = vunpack.c.l.b16 %v741
    %v949 = vunpack.c.h.b16 %v741
    %v950 = vunpack.c.l.b16 %v742
    %v951 = vunpack.c.h.b16 %v742
    %v952 = vunpack.c.l.b16 %v743
    %v953 = vunpack.c.h.b16 %v743
    %v954 = vunpack.c.l.b16 %v744
    %v955 = vunpack.c.h.b16 %v744
    %v956 = vunpack.c.l.b16 %v745
    %v957 = vunpack.c.h.b16 %v745
    %v958 = vunpack.c.l.b16 %v746
    %v959 = vunpack.c.h.b16 %v746
    %v960 = vunpack.c.l.b16 %v747
    %v961 = vunpack.c.h.b16 %v747
    %v962 = vunpack.c.l.b16 %v748
    %v963 = vunpack.c.h.b16 %v748
    %v964 = vunpack.c.l.b16 %v749
    %v965 = vunpack.c.h.b16 %v749
    %v966 = vunpack.c.l.b16 %v750
    %v967 = vunpack.c.h.b16 %v750
    %v968 = vunpack.c.l.b16 %v751
    %v969 = vunpack.c.h.b16 %v751
    %v970 = vunpack.c.l.b16 %v752
    %v971 = vunpack.c.h.b16 %v752
    %v972 = vunpack.c.l.b16 %v753
    %v973 = vunpack.c.h.b16 %v753
    %v974 = vunpack.c.l.b16 %v754
    %v975 = vunpack.c.h.b16 %v754
    %v976 = vunpack.c.l.b16 %v755
    %v977 = vunpack.c.h.b16 %v755
    %v978 = vunpack.c.l.b16 %v756
    %v979 = vunpack.c.h.b16 %v756
    %v980 = vunpack.c.l.b16 %v757
    %v981 = vunpack.c.h.b16 %v757
    %v982 = vunpack.c.l.b16 %v758
    %v983 = vunpack.c.h.b16 %v758
    %v984 = vunpack.c.l.b16 %v759
    %v985 = vunpack.c.h.b16 %v759
    %v986 = vunpack.c.l.b16 %v760
    %v987 = vunpack.c.h.b16 %v760
    %v988 = vunpack.c.l.b16 %v761
    %v989 = vunpack.c.h.b16 %v761
    %v990 = vunpack.c.l.b16 %v762
    %v991 = vunpack.c.h.b16 %v762
    %v992 = vunpack.c.l.b16 %v763
    %v993 = vunpack.c.h.b16 %v763
    %v994 = vunpack.c.l.b16 %v764
    %v995 = vunpack.c.h.b16 %v764
    %v996 = vunpack.c.l.b16 %v765
    %v997 = vunpack.c.h.b16 %v765
    %v998 = vunpack.c.l.b16 %v766
    %v999 = vunpack.c.h.b16 %v766
    %v1000 = vunpack.c.l.b16 %v767
    %v1001 = vunpack.c.h.b16 %v767
    %v1002 = vunpack.c.l.b16 %v768
    %v1003 = vunpack.c.h.b16 %v768
    %v1004 = vunpack.c.l.b16 %v769
    %v1005 = vunpack.c.h.b16 %v769
    %v1006 = vunpack.c.l.b16 %v770
    %v1007 = vunpack.c.h.b16 %v770
    %v1008 = vunpack.c.l.b16 %v771
    %v1009 = vunpack.c.h.b16 %v771
    %v1010 = vunpack.c.l.b16 %v772
    %v1011 = vunpack.c.h.b16 %v772
    %v1012 = vunpack.c.l.b16 %v773
    %v1013 = vunpack.c.h.b16 %v773
    %v1014 = vunpack.c.l.b16 %v774
    %v1015 = vunpack.c.h.b16 %v774
    %v1016 = vunpack.c.l.b16 %v775
    %v1017 = vunpack.c.h.b16 %v775
    %v1018 = vunpack.c.l.b16 %v776
    %v1019 = vunpack.c.h.b16 %v776
    %v1020 = vunpack.c.l.b16 %v777
    %v1021 = vunpack.c.h.b16 %v777
    %v1022 = vunpack.c.l.b16 %v778
    %v1023 = vunpack.c.h.b16 %v778
    %v1024 = vunpack.c.l.b16 %v779
    %v1025 = vunpack.c.h.b16 %v779
    %v1026 = vunpack.c.l.b16 %v780
    %v1027 = vunpack.c.h.b16 %v780
    %v1028 = vunpack.c.l.b16 %v781
    %v1029 = vunpack.c.h.b16 %v781
    %v1030 = vunpack.c.l.b16 %v782
    %v1031 = vunpack.c.h.b16 %v782
    %v1032 = vunpack.c.l.b16 %v783
    %v1033 = vunpack.c.h.b16 %v783
    %v1034 = vunpack.c.l.b16 %v784
    %v1035 = vunpack.c.h.b16 %v784
    %v1036 = vunpack.c.l.b16 %v785
    %v1037 = vunpack.c.h.b16 %v785
    %v1038 = vunpack.c.l.b16 %v786
    %v1039 = vunpack.c.h.b16 %v786
    %v1040 = vunpack.c.l.b16 %v787
    %v1041 = vunpack.c.h.b16 %v787
    %v1042 = vunpack.c.l.b16 %v788
    %v1043 = vunpack.c.h.b16 %v788
    %v1044 = vunpack.c.l.b16 %v789
    %v1045 = vunpack.c.h.b16 %v789
    %v1046 = vunpack.c.l.b16 %v790
    %v1047 = vunpack.c.h.b16 %v790
    %v1048 = vunpack.c.l.b16 %v791
    %v1049 = vunpack.c.h.b16 %v791
    %v1050 = vunpack.c.l.b16 %v792
    %v1051 = vunpack.c.h.b16 %v792
    %v1052 = vunpack.c.l.b16 %v793
    %v1053 = vunpack.c.h.b16 %v793
    %v1054 = vunpack.c.l.b16 %v794
    %v1055 = vunpack.c.h.b16 %v794
    %v1056 = vunpack.c.l.b16 %v795
    %v1057 = vunpack.c.h.b16 %v795
    %v1058 = vunpack.c.l.b16 %v796
    %v1059 = vunpack.c.h.b16 %v796
    %v1060 = vunpack.c.l.b16 %v797
    %v1061 = vunpack.c.h.b16 %v797
    %v1062 = vunpack.c.l.b16 %v798
    %v1063 = vunpack.c.h.b16 %v798
    %v1064 = vunpack.c.l.b16 %v799
    %v1065 = vunpack.c.h.b16 %v799
    %v1066 = vunpack.c.l.b16 %v800
    %v1067 = vunpack.c.h.b16 %v800
    %v1068 = vunpack.c.l.b16 %v801
    %v1069 = vunpack.c.h.b16 %v801
    %v1070 = vunpack.c.l.b16 %v802
    %v1071 = vunpack.c.h.b16 %v802
    %v1072 = vunpack.c.l.b16 %v803
    %v1073 = vunpack.c.h.b16 %v803
    %v1074 = vunpack.c.l.b16 %v804
    %v1075 = vunpack.c.h.b16 %v804
    %v1076 = vunpack.c.l.b16 %v805
    %v1077 = vunpack.c.h.b16 %v805
    %v1078 = vunpack.c.l.b16 %v806
    %v1079 = vunpack.c.h.b16 %v806
    %v1080 = vunpack.c.l.b16 %v807
    %v1081 = vunpack.c.h.b16 %v807
    %v1082 = vunpack.c.l.b16 %v808
    %v1083 = vunpack.c.h.b16 %v808
    %v1084 = vunpack.c.l.b16 %v809
    %v1085 = vunpack.c.h.b16 %v809
    %v1086 = vunpack.c.l.b16 %v810
    %v1087 = vunpack.c.h.b16 %v810
    %v1088 = vunpack.c.l.b16 %v811
    %v1089 = vunpack.c.h.b16 %v811
    %v1090 = vunpack.c.l.b16 %v812
    %v1091 = vunpack.c.h.b16 %v812
    %v1092 = vunpack.c.l.b16 %v813
    %v1093 = vunpack.c.h.b16 %v813
    %v1094 = vunpack.c.l.b16 %v814
    %v1095 = vunpack.c.h.b16 %v814
    %v1096 = vunpack.c.l.b16 %v815
    %v1097 = vunpack.c.h.b16 %v815
    %v1098 = vunpack.c.l.b16 %v816
    %v1099 = vunpack.c.h.b16 %v816
    %v1100 = vunpack.c.l.b16 %v817
    %v1101 = vunpack.c.h.b16 %v817
    %v1102 = vunpack.c.l.b16 %v818
    %v1103 = vunpack.c.h.b16 %v818
    %v1104 = vunpack.c.l.b16 %v819
    %v1105 = vunpack.c.h.b16 %v819
    %v1106 = vunpack.c.l.b16 %v820
    %v1107 = vunpack.c.h.b16 %v820
    %v1108 = vunpack.c.l.b16 %v821
    %v1109 = vunpack.c.h.b16 %v821
    %v1110 = vpack.c.b16 %v924, %v918
    %v1111 = vpack.c.b16 %v925, %v919
    %v1112 = vpack.c.b16 %v926, %v920
    %v1113 = vpack.c.b16 %v927, %v921
    %v1114 = vpack.c.b16 %v928, %v922
    %v1115 = vpack.c.b16 %v929, %v923
    %v1116 = vpack.c.b16 %v936, %v930
    %v1117 = vpack.c.b16 %v937, %v931
    %v1118 = vpack.c.b16 %v938, %v932
    %v1119 = vpack.c.b16 %v939, %v933
    %v1120 = vpack.c.b16 %v940, %v934
    %v1121 = vpack.c.b16 %v941, %v935
    %v1122 = vpack.c.b16 %v948, %v942
    %v1123 = vpack.c.b16 %v949, %v943
    %v1124 = vpack.c.b16 %v950, %v944
    %v1125 = vpack.c.b16 %v951, %v945
    %v1126 = vpack.c.b16 %v952, %v946
    %v1127 = vpack.c.b16 %v953, %v947
    %v1128 = vpack.c.b16 %v960, %v954
    %v1129 = vpack.c.b16 %v961, %v955
    %v1130 = vpack.c.b16 %v962, %v956
    %v1131 = vpack.c.b16 %v963, %v957
    %v1132 = vpack.c.b16 %v964, %v958
    %v1133 = vpack.c.b16 %v965, %v959
    %v1134 = vpack.c.b16 %v972, %v966
    %v1135 = vpack.c.b16 %v973, %v967
    %v1136 = vpack.c.b16 %v974, %v968
    %v1137 = vpack.c.b16 %v975, %v969
    %v1138 = vpack.c.b16 %v976, %v970
    %v1139 = vpack.c.b16 %v977, %v971
    %v1140 = vpack.c.b16 %v984, %v978
    %v1141 = vpack.c.b16 %v985, %v979
    %v1142 = vpack.c.b16 %v986, %v980
    %v1143 = vpack.c.b16 %v987, %v981
    %v1144 = vpack.c.b16 %v988, %v982
    %v1145 = vpack.c.b16 %v989, %v983
    %v1146 = vpack.c.b16 %v996, %v990
    %v1147 = vpack.c.b16 %v997, %v991
    %v1148 = vpack.c.b16 %v998, %v992
    %v1149 = vpack.c.b16 %v999, %v993
    %v1150 = vpack.c.b16 %v1000, %v994
    %v1151 = vpack.c.b16 %v1001, %v995
    %v1152 = vpack.c.b16 %v1008, %v1002
    %v1153 = vpack.c.b16 %v1009, %v1003
    %v1154 = vpack.c.b16 %v1010, %v1004
    %v1155 = vpack.c.b16 %v1011, %v1005
    %v1156 = vpack.c.b16 %v1012, %v1006
    %v1157 = vpack.c.b16 %v1013, %v1007
    %v1158 = vpack.c.b16 %v1020, %v1014
    %v1159 = vpack.c.b16 %v1021, %v1015
    %v1160 = vpack.c.b16 %v1022, %v1016
    %v1161 = vpack.c.b16 %v1023, %v1017
    %v1162 = vpack.c.b16 %v1024, %v1018
    %v1163 = vpack.c.b16 %v1025, %v1019
    %v1164 = vpack.c.b16 %v1032, %v1026
    %v1165 = vpack.c.b16 %v1033, %v1027
    %v1166 = vpack.c.b16 %v1034, %v1028
    %v1167 = vpack.c.b16 %v1035, %v1029
    %v1168 = vpack.c.b16 %v1036, %v1030
    %v1169 = vpack.c.b16 %v1037, %v1031
    %v1170 = vpack.c.b16 %v1044, %v1038
    %v1171 = vpack.c.b16 %v1045, %v1039
    %v1172 = vpack.c.b16 %v1046, %v1040
    %v1173 = vpack.c.b16 %v1047, %v1041
    %v1174 = vpack.c.b16 %v1048, %v1042
    %v1175 = vpack.c.b16 %v1049, %v1043
    %v1176 = vpack.c.b16 %v1056, %v1050
    %v1177 = vpack.c.b16 %v1057, %v1051
    %v1178 = vpack.c.b16 %v1058, %v1052
    %v1179 = vpack.c.b16 %v1059, %v1053
    %v1180 = vpack.c.b16 %v1060, %v1054
    %v1181 = vpack.c.b16 %v1061, %v1055
    %v1182 = vpack.c.b16 %v1068, %v1062
    %v1183 = vpack.c.b16 %v1069, %v1063
    %v1184 = vpack.c.b16 %v1070, %v1064
    %v1185 = vpack.c.b16 %v1071, %v1065
    %v1186 = vpack.c.b16 %v1072, %v1066
    %v1187 = vpack.c.b16 %v1073, %v1067
    %v1188 = vpack.c.b16 %v1080, %v1074
    %v1189 = vpack.c.b16 %v1081, %v1075
    %v1190 = vpack.c.b16 %v1082, %v1076
    %v1191 = vpack.c.b16 %v1083, %v1077
    %v1192 = vpack.c.b16 %v1084, %v1078
    %v1193 = vpack.c.b16 %v1085, %v1079
    %v1194 = vpack.c.b16 %v1092, %v1086
    %v1195 = vpack.c.b16 %v1093, %v1087
    %v1196 = vpack.c.b16 %v1094, %v1088
    %v1197 = vpack.c.b16 %v1095, %v1089
    %v1198 = vpack.c.b16 %v1096, %v1090
    %v1199 = vpack.c.b16 %v1097, %v1091
    %v1200 = vpack.c.b16 %v1104, %v1098
    %v1201 = vpack.c.b16 %v1105, %v1099
    %v1202 = vpack.c.b16 %v1106, %v1100
    %v1203 = vpack.c.b16 %v1107, %v1101
    %v1204 = vpack.c.b16 %v1108, %v1102
    %v1205 = vpack.c.b16 %v1109, %v1103
    %1302 = vmatprep.subr.bf16.mxu0 %v1111
    %1303 = vmatpush1.bf16.msra.mxu0 %v1110
    %1304 = vmatprep.subr.bf16.mxu0 %v1117
    %1305 = vmatpush1.bf16.msra.mxu0 %v1116
    %1306 = vmatprep.subr.bf16.mxu0 %v1123
    %1307 = vmatpush1.bf16.msra.mxu0 %v1122
    %1308 = vmatprep.subr.bf16.mxu0 %v1129
    %1309 = vmatpush1.bf16.msra.mxu0 %v1128
    %1310 = vmatprep.subr.bf16.mxu0 %v1135
    %1311 = vmatpush1.bf16.msra.mxu0 %v1134
    %1312 = vmatprep.subr.bf16.mxu0 %v1141
    %1313 = vmatpush1.bf16.msra.mxu0 %v1140
    %1314 = vmatprep.subr.bf16.mxu0 %v1147
    %1315 = vmatpush1.bf16.msra.mxu0 %v1146
    %1316 = vmatprep.subr.bf16.mxu0 %v1153
    %1317 = vmatpush1.bf16.msra.mxu0 %v1152
    %1318 = vmatprep.subr.bf16.mxu0 %v1159
    %1319 = vmatpush1.bf16.msra.mxu0 %v1158
    %1320 = vmatprep.subr.bf16.mxu0 %v1165
    %1321 = vmatpush1.bf16.msra.mxu0 %v1164
    %1322 = vmatprep.subr.bf16.mxu0 %v1171
    %1323 = vmatpush1.bf16.msra.mxu0 %v1170
    %1324 = vmatprep.subr.bf16.mxu0 %v1177
    %1325 = vmatpush1.bf16.msra.mxu0 %v1176
    %1326 = vmatprep.subr.bf16.mxu0 %v1183
    %1327 = vmatpush1.bf16.msra.mxu0 %v1182
    %1328 = vmatprep.subr.bf16.mxu0 %v1189
    %1329 = vmatpush1.bf16.msra.mxu0 %v1188
    %1330 = vmatprep.subr.bf16.mxu0 %v1195
    %1331 = vmatpush1.bf16.msra.mxu0 %v1194
    %1332 = vmatprep.subr.bf16.mxu0 %v1201
    %1333 = vmatpush1.bf16.msra.mxu0 %v1200
    %1334 = vmatprep.mubr.bf16.mxu0 %v725
    %1335 = vmatmul.mubr.bf16.gmra.mrb[0].mxu0 %v267
    %v1336 = vpop.f32.mrb[0].mxu0
    %v1337 = vadd.f32 0.0, %v1336
    %v1338 = vpop.f32.mrb[0].mxu0
    %v1339 = vadd.f32 0.0, %v1338
    %v1340 = vpop.f32.mrb[0].mxu0
    %v1341 = vadd.f32 0.0, %v1340
    %v1342 = vpop.f32.mrb[0].mxu0
    %v1343 = vadd.f32 0.0, %v1342
    %1344 = vdwg.mxu0
    %1345 = vmatprep.subr.bf16.mxu0 %v1113
    %1346 = vmatpush1.bf16.msra.mxu0 %v1112
    %1347 = vmatprep.subr.bf16.mxu0 %v1119
    %1348 = vmatpush1.bf16.msra.mxu0 %v1118
    %1349 = vmatprep.subr.bf16.mxu0 %v1125
    %1350 = vmatpush1.bf16.msra.mxu0 %v1124
    %1351 = vmatprep.subr.bf16.mxu0 %v1131
    %1352 = vmatpush1.bf16.msra.mxu0 %v1130
    %1353 = vmatprep.subr.bf16.mxu0 %v1137
    %1354 = vmatpush1.bf16.msra.mxu0 %v1136
    %1355 = vmatprep.subr.bf16.mxu0 %v1143
    %1356 = vmatpush1.bf16.msra.mxu0 %v1142
    %1357 = vmatprep.subr.bf16.mxu0 %v1149
    %1358 = vmatpush1.bf16.msra.mxu0 %v1148
    %1359 = vmatprep.subr.bf16.mxu0 %v1155
    %1360 = vmatpush1.bf16.msra.mxu0 %v1154
    %1361 = vmatprep.subr.bf16.mxu0 %v1161
    %1362 = vmatpush1.bf16.msra.mxu0 %v1160
    %1363 = vmatprep.subr.bf16.mxu0 %v1167
    %1364 = vmatpush1.bf16.msra.mxu0 %v1166
    %1365 = vmatprep.subr.bf16.mxu0 %v1173
    %1366 = vmatpush1.bf16.msra.mxu0 %v1172
    %1367 = vmatprep.subr.bf16.mxu0 %v1179
    %1368 = vmatpush1.bf16.msra.mxu0 %v1178
    %1369 = vmatprep.subr.bf16.mxu0 %v1185
    %1370 = vmatpush1.bf16.msra.mxu0 %v1184
    %1371 = vmatprep.subr.bf16.mxu0 %v1191
    %1372 = vmatpush1.bf16.msra.mxu0 %v1190
    %1373 = vmatprep.subr.bf16.mxu0 %v1197
    %1374 = vmatpush1.bf16.msra.mxu0 %v1196
    %1375 = vmatprep.subr.bf16.mxu0 %v1203
    %1376 = vmatpush1.bf16.msra.mxu0 %v1202
    %1377 = vmatprep.mubr.bf16.mxu0 %v725
    %1378 = vmatmul.mubr.bf16.gmra.mrb[0].mxu0 %v267
    %v1379 = vpop.f32.mrb[0].mxu0
    %v1380 = vadd.f32 0.0, %v1379
    %v1381 = vpop.f32.mrb[0].mxu0
    %v1382 = vadd.f32 0.0, %v1381
    %v1383 = vpop.f32.mrb[0].mxu0
    %v1384 = vadd.f32 0.0, %v1383
    %v1385 = vpop.f32.mrb[0].mxu0
    %v1386 = vadd.f32 0.0, %v1385
    %1387 = vdwg.mxu0
    %1388 = vmatprep.subr.bf16.mxu0 %v1115
    %1389 = vmatpush1.bf16.msra.mxu0 %v1114
    %1390 = vmatprep.subr.bf16.mxu0 %v1121
    %1391 = vmatpush1.bf16.msra.mxu0 %v1120
    %1392 = vmatprep.subr.bf16.mxu0 %v1127
    %1393 = vmatpush1.bf16.msra.mxu0 %v1126
    %1394 = vmatprep.subr.bf16.mxu0 %v1133
    %1395 = vmatpush1.bf16.msra.mxu0 %v1132
    %1396 = vmatprep.subr.bf16.mxu0 %v1139
    %1397 = vmatpush1.bf16.msra.mxu0 %v1138
    %1398 = vmatprep.subr.bf16.mxu0 %v1145
    %1399 = vmatpush1.bf16.msra.mxu0 %v1144
    %1400 = vmatprep.subr.bf16.mxu0 %v1151
    %1401 = vmatpush1.bf16.msra.mxu0 %v1150
    %1402 = vmatprep.subr.bf16.mxu0 %v1157
    %1403 = vmatpush1.bf16.msra.mxu0 %v1156
    %1404 = vmatprep.subr.bf16.mxu0 %v1163
    %1405 = vmatpush1.bf16.msra.mxu0 %v1162
    %1406 = vmatprep.subr.bf16.mxu0 %v1169
    %1407 = vmatpush1.bf16.msra.mxu0 %v1168
    %1408 = vmatprep.subr.bf16.mxu0 %v1175
    %1409 = vmatpush1.bf16.msra.mxu0 %v1174
    %1410 = vmatprep.subr.bf16.mxu0 %v1181
    %1411 = vmatpush1.bf16.msra.mxu0 %v1180
    %1412 = vmatprep.subr.bf16.mxu0 %v1187
    %1413 = vmatpush1.bf16.msra.mxu0 %v1186
    %1414 = vmatprep.subr.bf16.mxu0 %v1193
    %1415 = vmatpush1.bf16.msra.mxu0 %v1192
    %1416 = vmatprep.subr.bf16.mxu0 %v1199
    %1417 = vmatpush1.bf16.msra.mxu0 %v1198
    %1418 = vmatprep.subr.bf16.mxu0 %v1205
    %1419 = vmatpush1.bf16.msra.mxu0 %v1204
    %1420 = vmatprep.mubr.bf16.mxu0 %v725
    %1421 = vmatmul.mubr.bf16.gmra.mrb[0].mxu0 %v267
    %v1422 = vpop.f32.mrb[0].mxu0
    %v1423 = vadd.f32 0.0, %v1422
    %v1424 = vpop.f32.mrb[0].mxu0
    %v1425 = vadd.f32 0.0, %v1424
    %v1426 = vpop.f32.mrb[0].mxu0
    %v1427 = vadd.f32 0.0, %v1426
    %v1428 = vpop.f32.mrb[0].mxu0
    %v1429 = vadd.f32 0.0, %v1428
    %1430 = vdwg.mxu0
    %v1431 = vld [vmem:[#allocation5] sm:$0xf]
    %v1432 = vld [vmem:[#allocation5 + $0x4] sm:$0xf]
    %v1433 = vpack.c.bf16 %v1427, %v1423
    %s1434 = scalar_lea.vmem [#allocation5], 8
    %v1435 = vld [vmem:[%s1434] sm:$0xf]
    %v1436 = vld [vmem:[%s1434 + $0x4] sm:$0xf]
    %v1437 = vpack.c.bf16 %v1429, %v1425
    %v1440 = vunpack.c.l.b16 %v1435
    %v1441 = vunpack.c.l.b16 %v1436
    %v1442 = vpack.c.b16 %v1441, %v1440
    %vm1443 = vcmask 130048
    %v1445 = vsel %vm1443, %v1442, 0
    %1447 = vmatprep.subr.bf16.mxu0 0
    %1448 = vmatpush1.bf16.msra.mxu0 %v1437
    %1449 = vmatprep.subr.bf16.mxu0 0
    %1450 = vmatpush1.bf16.msra.mxu0 0
    %1451 = vmatprep.subr.bf16.mxu0 0
    %1452 = vmatpush1.bf16.msra.mxu0 0
    %1453 = vmatprep.subr.bf16.mxu0 0
    %1454 = vmatpush1.bf16.msra.mxu0 0
    %1455 = vmatprep.subr.bf16.mxu0 0
    %1456 = vmatpush1.bf16.msra.mxu0 0
    %1457 = vmatprep.subr.bf16.mxu0 0
    %1458 = vmatpush1.bf16.msra.mxu0 0
    %1459 = vmatprep.subr.bf16.mxu0 0
    %1460 = vmatpush1.bf16.msra.mxu0 0
    %1461 = vmatprep.subr.bf16.mxu0 0
    %1462 = vmatpush1.bf16.msra.mxu0 0
    %1463 = vmatprep.subr.bf16.mxu0 0
    %1464 = vmatpush1.bf16.msra.mxu0 0
    %1465 = vmatprep.subr.bf16.mxu0 0
    %1466 = vmatpush1.bf16.msra.mxu0 0
    %1467 = vmatprep.subr.bf16.mxu0 0
    %1468 = vmatpush1.bf16.msra.mxu0 0
    %1469 = vmatprep.subr.bf16.mxu0 0
    %1470 = vmatpush1.bf16.msra.mxu0 0
    %1471 = vmatprep.subr.bf16.mxu0 0
    %1472 = vmatpush1.bf16.msra.mxu0 0
    %1473 = vmatprep.subr.bf16.mxu0 0
    %1474 = vmatpush1.bf16.msra.mxu0 0
    %1475 = vmatprep.subr.bf16.mxu0 0
    %1476 = vmatpush1.bf16.msra.mxu0 0
    %1477 = vmatprep.subr.bf16.mxu0 0
    %1478 = vmatpush1.bf16.msra.mxu0 0
    %1479 = vmatprep.mubr.bf16.mxu0 0
    %1480 = vmatmul.mubr.bf16.gmra.mrb[0].mxu0 %v1445
    %v1481 = vpop.f32.mrb[0].mxu0
    %v1482 = vadd.f32 0.0, %v1481
    %v1483 = vpop.f32.mrb[0].mxu0
    %v1484 = vpop.f32.mrb[0].mxu0
    %v1485 = vadd.f32 0.0, %v1484
    %v1486 = vpop.f32.mrb[0].mxu0
    %1487 = vdwg.mxu0
    %v1490 = vunpack.c.l.b16 %v1431
    %v1491 = vunpack.c.l.b16 %v1432
    %v1492 = vpack.c.b16 %v1491, %v1490
    %v1494 = vsel %vm1443, %v1492, 0
    %1496 = vmatprep.subr.bf16.mxu0 0
    %1497 = vmatpush1.bf16.msra.mxu0 %v1433
    %1498 = vmatprep.subr.bf16.mxu0 0
    %1499 = vmatpush1.bf16.msra.mxu0 0
    %1500 = vmatprep.subr.bf16.mxu0 0
    %1501 = vmatpush1.bf16.msra.mxu0 0
    %1502 = vmatprep.subr.bf16.mxu0 0
    %1503 = vmatpush1.bf16.msra.mxu0 0
    %1504 = vmatprep.subr.bf16.mxu0 0
    %1505 = vmatpush1.bf16.msra.mxu0 0
    %1506 = vmatprep.subr.bf16.mxu0 0
    %1507 = vmatpush1.bf16.msra.mxu0 0
    %1508 = vmatprep.subr.bf16.mxu0 0
    %1509 = vmatpush1.bf16.msra.mxu0 0
    %1510 = vmatprep.subr.bf16.mxu0 0
    %1511 = vmatpush1.bf16.msra.mxu0 0
    %1512 = vmatprep.subr.bf16.mxu0 0
    %1513 = vmatpush1.bf16.msra.mxu0 0
    %1514 = vmatprep.subr.bf16.mxu0 0
    %1515 = vmatpush1.bf16.msra.mxu0 0
    %1516 = vmatprep.subr.bf16.mxu0 0
    %1517 = vmatpush1.bf16.msra.mxu0 0
    %1518 = vmatprep.subr.bf16.mxu0 0
    %1519 = vmatpush1.bf16.msra.mxu0 0
    %1520 = vmatprep.subr.bf16.mxu0 0
    %1521 = vmatpush1.bf16.msra.mxu0 0
    %1522 = vmatprep.subr.bf16.mxu0 0
    %1523 = vmatpush1.bf16.msra.mxu0 0
    %1524 = vmatprep.subr.bf16.mxu0 0
    %1525 = vmatpush1.bf16.msra.mxu0 0
    %1526 = vmatprep.subr.bf16.mxu0 0
    %1527 = vmatpush1.bf16.msra.mxu0 0
    %1528 = vmatprep.mubr.bf16.mxu0 0
    %1529 = vmatmul.mubr.bf16.gmra.mrb[0].mxu0 %v1494
    %v1530 = vpop.f32.mrb[0].mxu0
    %v1531 = vadd.f32 %v1482, %v1530
    %v1532 = vpop.f32.mrb[0].mxu0
    %v1533 = vpop.f32.mrb[0].mxu0
    %v1534 = vadd.f32 %v1485, %v1533
    %v1535 = vpop.f32.mrb[0].mxu0
    %1536 = vdwg.mxu0
    %v1537 = vld [vmem:[%s4 + $0x7] sm:$0x1]
    %v1539 = vlaneseq
    %v1540 = vshrl.u32 %v1539, 7
    %v1541 = vsub.s32 0, %v1540
    %v1542 = vrot.slane %v1537, %v1541
    %v1544 = vadd.f32 %v1531, %v1542
    %v1545 = vadd.f32 %v1534, %v1542
    %v1546 = vmax.f32 %v1544, 0.0
    %v1547 = vmax.f32 %v1545, 0.0
    %v1548 = vpack.c.bf16 %v1547, %v1546
    %v1549 = vld [vmem:[#allocation7 + $0x1c] sm:$0xff]
    %v1550 = vld [vmem:[#allocation7 + $0x24] sm:$0xff]
    %v1551 = vld [vmem:[#allocation7 + $0x48] sm:$0xff]
    %v1552 = vld [vmem:[#allocation7 + $0x50] sm:$0xff]
    %v1553 = vld [vmem:[#allocation7 + $0x74] sm:$0xff]
    %v1554 = vld [vmem:[#allocation7 + $0x7c] sm:$0xff]
    %v1555 = vld [vmem:[#allocation7 + $0xa0] sm:$0xff]
    %v1556 = vld [vmem:[#allocation7 + $0xa8] sm:$0xff]
    %v1557 = vld [vmem:[#allocation7 + $0xcc] sm:$0xff]
    %v1558 = vld [vmem:[#allocation7 + $0xd4] sm:$0xff]
    %v1559 = vld [vmem:[#allocation7 + $0xf8] sm:$0xff]
    %v1560 = vld [vmem:[#allocation7 + $0x100] sm:$0xff]
    %v1561 = vld [vmem:[#allocation7 + $0x124] sm:$0xff]
    %v1562 = vld [vmem:[#allocation7 + $0x12c] sm:$0xff]
    %v1563 = vld [vmem:[#allocation7 + $0x150] sm:$0xff]
    %v1564 = vld [vmem:[#allocation7 + $0x158] sm:$0xff]
    %v1565 = vld [vmem:[#allocation7 + $0x17c] sm:$0xff]
    %v1566 = vld [vmem:[#allocation7 + $0x184] sm:$0xff]
    %v1567 = vld [vmem:[#allocation7 + $0x1a8] sm:$0xff]
    %v1568 = vld [vmem:[#allocation7 + $0x1b0] sm:$0xff]
    %v1569 = vld [vmem:[#allocation7 + $0x1d4] sm:$0xff]
    %v1570 = vld [vmem:[#allocation7 + $0x1dc] sm:$0xff]
    %v1571 = vld [vmem:[#allocation7 + $0x200] sm:$0xff]
    %v1572 = vld [vmem:[#allocation7 + $0x208] sm:$0xff]
    %v1573 = vld [vmem:[#allocation7 + $0x22c] sm:$0xff]
    %v1574 = vld [vmem:[#allocation7 + $0x234] sm:$0xff]
    %v1575 = vld [vmem:[#allocation7 + $0x258] sm:$0xff]
    %v1576 = vld [vmem:[#allocation7 + $0x260] sm:$0xff]
    %v1577 = vld [vmem:[#allocation7 + $0x284] sm:$0xff]
    %v1578 = vld [vmem:[#allocation7 + $0x28c] sm:$0xff]
    %v1579 = vld [vmem:[#allocation7 + $0x2b0] sm:$0xff]
    %v1580 = vld [vmem:[#allocation7 + $0x2b8] sm:$0xff]
    %v1613 = vunpack.c.l.b16 %v1549
    %v1614 = vunpack.c.h.b16 %v1549
    %v1615 = vunpack.c.l.b16 %v1550
    %v1616 = vunpack.c.h.b16 %v1550
    %v1617 = vunpack.c.l.b16 %v1551
    %v1618 = vunpack.c.h.b16 %v1551
    %v1619 = vunpack.c.l.b16 %v1552
    %v1620 = vunpack.c.h.b16 %v1552
    %v1621 = vunpack.c.l.b16 %v1553
    %v1622 = vunpack.c.h.b16 %v1553
    %v1623 = vunpack.c.l.b16 %v1554
    %v1624 = vunpack.c.h.b16 %v1554
    %v1625 = vunpack.c.l.b16 %v1555
    %v1626 = vunpack.c.h.b16 %v1555
    %v1627 = vunpack.c.l.b16 %v1556
    %v1628 = vunpack.c.h.b16 %v1556
    %v1629 = vunpack.c.l.b16 %v1557
    %v1630 = vunpack.c.h.b16 %v1557
    %v1631 = vunpack.c.l.b16 %v1558
    %v1632 = vunpack.c.h.b16 %v1558
    %v1633 = vunpack.c.l.b16 %v1559
    %v1634 = vunpack.c.h.b16 %v1559
    %v1635 = vunpack.c.l.b16 %v1560
    %v1636 = vunpack.c.h.b16 %v1560
    %v1637 = vunpack.c.l.b16 %v1561
    %v1638 = vunpack.c.h.b16 %v1561
    %v1639 = vunpack.c.l.b16 %v1562
    %v1640 = vunpack.c.h.b16 %v1562
    %v1641 = vunpack.c.l.b16 %v1563
    %v1642 = vunpack.c.h.b16 %v1563
    %v1643 = vunpack.c.l.b16 %v1564
    %v1644 = vunpack.c.h.b16 %v1564
    %v1645 = vunpack.c.l.b16 %v1565
    %v1646 = vunpack.c.h.b16 %v1565
    %v1647 = vunpack.c.l.b16 %v1566
    %v1648 = vunpack.c.h.b16 %v1566
    %v1649 = vunpack.c.l.b16 %v1567
    %v1650 = vunpack.c.h.b16 %v1567
    %v1651 = vunpack.c.l.b16 %v1568
    %v1652 = vunpack.c.h.b16 %v1568
    %v1653 = vunpack.c.l.b16 %v1569
    %v1654 = vunpack.c.h.b16 %v1569
    %v1655 = vunpack.c.l.b16 %v1570
    %v1656 = vunpack.c.h.b16 %v1570
    %v1657 = vunpack.c.l.b16 %v1571
    %v1658 = vunpack.c.h.b16 %v1571
    %v1659 = vunpack.c.l.b16 %v1572
    %v1660 = vunpack.c.h.b16 %v1572
    %v1661 = vunpack.c.l.b16 %v1573
    %v1662 = vunpack.c.h.b16 %v1573
    %v1663 = vunpack.c.l.b16 %v1574
    %v1664 = vunpack.c.h.b16 %v1574
    %v1665 = vunpack.c.l.b16 %v1575
    %v1666 = vunpack.c.h.b16 %v1575
    %v1667 = vunpack.c.l.b16 %v1576
    %v1668 = vunpack.c.h.b16 %v1576
    %v1669 = vunpack.c.l.b16 %v1577
    %v1670 = vunpack.c.h.b16 %v1577
    %v1671 = vunpack.c.l.b16 %v1578
    %v1672 = vunpack.c.h.b16 %v1578
    %v1673 = vunpack.c.l.b16 %v1579
    %v1674 = vunpack.c.h.b16 %v1579
    %v1675 = vunpack.c.l.b16 %v1580
    %v1676 = vunpack.c.h.b16 %v1580
    %v1677 = vpack.c.b16 %v1617, %v1613
    %v1678 = vpack.c.b16 %v1618, %v1614
    %v1679 = vpack.c.b16 %v1619, %v1615
    %v1680 = vpack.c.b16 %v1620, %v1616
    %v1681 = vpack.c.b16 %v1625, %v1621
    %v1682 = vpack.c.b16 %v1626, %v1622
    %v1683 = vpack.c.b16 %v1627, %v1623
    %v1684 = vpack.c.b16 %v1628, %v1624
    %v1685 = vpack.c.b16 %v1633, %v1629
    %v1686 = vpack.c.b16 %v1634, %v1630
    %v1687 = vpack.c.b16 %v1635, %v1631
    %v1688 = vpack.c.b16 %v1636, %v1632
    %v1689 = vpack.c.b16 %v1641, %v1637
    %v1690 = vpack.c.b16 %v1642, %v1638
    %v1691 = vpack.c.b16 %v1643, %v1639
    %v1692 = vpack.c.b16 %v1644, %v1640
    %v1693 = vpack.c.b16 %v1649, %v1645
    %v1694 = vpack.c.b16 %v1650, %v1646
    %v1695 = vpack.c.b16 %v1651, %v1647
    %v1696 = vpack.c.b16 %v1652, %v1648
    %v1697 = vpack.c.b16 %v1657, %v1653
    %v1698 = vpack.c.b16 %v1658, %v1654
    %v1699 = vpack.c.b16 %v1659, %v1655
    %v1700 = vpack.c.b16 %v1660, %v1656
    %v1701 = vpack.c.b16 %v1665, %v1661
    %v1702 = vpack.c.b16 %v1666, %v1662
    %v1703 = vpack.c.b16 %v1667, %v1663
    %v1704 = vpack.c.b16 %v1668, %v1664
    %v1705 = vpack.c.b16 %v1673, %v1669
    %v1706 = vpack.c.b16 %v1674, %v1670
    %v1707 = vpack.c.b16 %v1675, %v1671
    %v1708 = vpack.c.b16 %v1676, %v1672
    %1741 = vmatprep.subr.bf16.mxu0 %v1678
    %1742 = vmatpush1.bf16.msra.mxu0 %v1677
    %1743 = vmatprep.subr.bf16.mxu0 %v1682
    %1744 = vmatpush1.bf16.msra.mxu0 %v1681
    %1745 = vmatprep.subr.bf16.mxu0 %v1686
    %1746 = vmatpush1.bf16.msra.mxu0 %v1685
    %1747 = vmatprep.subr.bf16.mxu0 %v1690
    %1748 = vmatpush1.bf16.msra.mxu0 %v1689
    %1749 = vmatprep.subr.bf16.mxu0 %v1694
    %1750 = vmatpush1.bf16.msra.mxu0 %v1693
    %1751 = vmatprep.subr.bf16.mxu0 %v1698
    %1752 = vmatpush1.bf16.msra.mxu0 %v1697
    %1753 = vmatprep.subr.bf16.mxu0 %v1702
    %1754 = vmatpush1.bf16.msra.mxu0 %v1701
    %1755 = vmatprep.subr.bf16.mxu0 %v1706
    %1756 = vmatpush1.bf16.msra.mxu0 %v1705
    %1757 = vmatprep.subr.bf16.mxu0 0
    %1758 = vmatpush1.bf16.msra.mxu0 0
    %1759 = vmatprep.subr.bf16.mxu0 0
    %1760 = vmatpush1.bf16.msra.mxu0 0
    %1761 = vmatprep.subr.bf16.mxu0 0
    %1762 = vmatpush1.bf16.msra.mxu0 0
    %1763 = vmatprep.subr.bf16.mxu0 0
    %1764 = vmatpush1.bf16.msra.mxu0 0
    %1765 = vmatprep.subr.bf16.mxu0 0
    %1766 = vmatpush1.bf16.msra.mxu0 0
    %1767 = vmatprep.subr.bf16.mxu0 0
    %1768 = vmatpush1.bf16.msra.mxu0 0
    %1769 = vmatprep.subr.bf16.mxu0 0
    %1770 = vmatpush1.bf16.msra.mxu0 0
    %1771 = vmatprep.subr.bf16.mxu0 0
    %1772 = vmatpush1.bf16.msra.mxu0 0
    %1773 = vmatprep.mubr.bf16.mxu0 0
    %1774 = vmatmul.mubr.bf16.gmra.mrb[0].mxu0 %v1548
    %v1775 = vpop.f32.mrb[0].mxu0
    %v1776 = vadd.f32 0.0, %v1775
    %v1777 = vpop.f32.mrb[0].mxu0
    %v1778 = vadd.f32 0.0, %v1777
    %v1779 = vpop.f32.mrb[0].mxu0
    %v1780 = vadd.f32 0.0, %v1779
    %v1781 = vpop.f32.mrb[0].mxu0
    %v1782 = vadd.f32 0.0, %v1781
    %1783 = vdwg.mxu0
    %1784 = vmatprep.subr.bf16.mxu0 %v1680
    %1785 = vmatpush1.bf16.msra.mxu0 %v1679
    %1786 = vmatprep.subr.bf16.mxu0 %v1684
    %1787 = vmatpush1.bf16.msra.mxu0 %v1683
    %1788 = vmatprep.subr.bf16.mxu0 %v1688
    %1789 = vmatpush1.bf16.msra.mxu0 %v1687
    %1790 = vmatprep.subr.bf16.mxu0 %v1692
    %1791 = vmatpush1.bf16.msra.mxu0 %v1691
    %1792 = vmatprep.subr.bf16.mxu0 %v1696
    %1793 = vmatpush1.bf16.msra.mxu0 %v1695
    %1794 = vmatprep.subr.bf16.mxu0 %v1700
    %1795 = vmatpush1.bf16.msra.mxu0 %v1699
    %1796 = vmatprep.subr.bf16.mxu0 %v1704
    %1797 = vmatpush1.bf16.msra.mxu0 %v1703
    %1798 = vmatprep.subr.bf16.mxu0 %v1708
    %1799 = vmatpush1.bf16.msra.mxu0 %v1707
    %1800 = vmatprep.subr.bf16.mxu0 0
    %1801 = vmatpush1.bf16.msra.mxu0 0
    %1802 = vmatprep.subr.bf16.mxu0 0
    %1803 = vmatpush1.bf16.msra.mxu0 0
    %1804 = vmatprep.subr.bf16.mxu0 0
    %1805 = vmatpush1.bf16.msra.mxu0 0
    %1806 = vmatprep.subr.bf16.mxu0 0
    %1807 = vmatpush1.bf16.msra.mxu0 0
    %1808 = vmatprep.subr.bf16.mxu0 0
    %1809 = vmatpush1.bf16.msra.mxu0 0
    %1810 = vmatprep.subr.bf16.mxu0 0
    %1811 = vmatpush1.bf16.msra.mxu0 0
    %1812 = vmatprep.subr.bf16.mxu0 0
    %1813 = vmatpush1.bf16.msra.mxu0 0
    %1814 = vmatprep.subr.bf16.mxu0 0
    %1815 = vmatpush1.bf16.msra.mxu0 0
    %1816 = vmatprep.mubr.bf16.mxu0 0
    %1817 = vmatmul.mubr.bf16.gmra.mrb[0].mxu0 %v1548
    %v1818 = vpop.f32.mrb[0].mxu0
    %v1819 = vadd.f32 0.0, %v1818
    %v1820 = vpop.f32.mrb[0].mxu0
    %v1821 = vadd.f32 0.0, %v1820
    %v1822 = vpop.f32.mrb[0].mxu0
    %v1823 = vadd.f32 0.0, %v1822
    %v1824 = vpop.f32.mrb[0].mxu0
    %v1825 = vadd.f32 0.0, %v1824
    %1826 = vdwg.mxu0
    %v1827 = vadd.f32 %v1337, %v1776
    %v1828 = vadd.f32 %v1339, %v1778
    %v1829 = vadd.f32 %v1380, %v1819
    %v1830 = vadd.f32 %v1382, %v1821
    %v1831 = vadd.f32 %v1341, %v1780
    %v1832 = vadd.f32 %v1343, %v1782
    %v1833 = vadd.f32 %v1384, %v1823
    %v1834 = vadd.f32 %v1386, %v1825
    %v1835 = vadd.f32 %v1827, %v517
    %v1836 = vadd.f32 %v1828, %v519
    %v1837 = vadd.f32 %v1829, %v560
    %v1838 = vadd.f32 %v1830, %v562
    %v1839 = vadd.f32 %v1831, %v521
    %v1840 = vadd.f32 %v1832, %v523
    %v1841 = vadd.f32 %v1833, %v564
    %v1842 = vadd.f32 %v1834, %v566
    %v1843 = vxor.u32 %v1836, 2147483648
    %v1844 = vxor.u32 %v1840, 2147483648
    %v1845 = vmul.f32 %v1843, 1.442695
    %v1846 = vpow.pop %v1845
    %v1847 = vmul.f32 %v1844, 1.442695
    %v1848 = vpow.pop %v1847
    %v1849 = vadd.f32 %v1846, 1.0
    %v1850 = vadd.f32 %v1848, 1.0
    %v1851 = vrcp.pop %v1849
    %v1852 = vmul.f32 1.0, %v1851
    %v1853 = vrcp.pop %v1850
    %v1854 = vmul.f32 1.0, %v1853
    %v1855 = vmul.f32 %v1852, %v261
    %v1856 = vmul.f32 %v1854, %v264
    %v1857 = vxor.u32 %v1835, 2147483648
    %v1858 = vxor.u32 %v1839, 2147483648
    %v1859 = vmul.f32 %v1857, 1.442695
    %v1860 = vpow.pop %v1859
    %v1861 = vmul.f32 %v1858, 1.442695
    %v1862 = vpow.pop %v1861
    %v1863 = vadd.f32 %v1860, 1.0
    %v1864 = vadd.f32 %v1862, 1.0
    %v1865 = vrcp.pop %v1863
    %v1866 = vmul.f32 1.0, %v1865
    %v1867 = vrcp.pop %v1864
    %v1868 = vmul.f32 1.0, %v1867
    %v1869 = vtanh.pop %v1838
    %v1870 = vtanh.pop %v1842
    %v1871 = vmul.f32 %v1866, %v1869
    %v1872 = vmul.f32 %v1868, %v1870
    %v1873 = vadd.f32 %v1855, %v1871
    %v1874 = vadd.f32 %v1856, %v1872
    %v1875 = vxor.u32 %v1837, 2147483648
    %v1876 = vxor.u32 %v1841, 2147483648
    %v1877 = vmul.f32 %v1875, 1.442695
    %v1878 = vpow.pop %v1877
    %v1879 = vmul.f32 %v1876, 1.442695
    %v1880 = vpow.pop %v1879
    %v1881 = vadd.f32 %v1878, 1.0
    %v1882 = vadd.f32 %v1880, 1.0
    %v1883 = vrcp.pop %v1881
    %v1884 = vmul.f32 1.0, %v1883
    %v1885 = vrcp.pop %v1882
    %v1886 = vmul.f32 1.0, %v1885
    %v1887 = vtanh.pop %v1873
    %v1888 = vtanh.pop %v1874
    %v1889 = vmul.f32 %v1884, %v1887
    %v1890 = vmul.f32 %v1886, %v1888
    %v1891 = vpack.c.bf16 %v1890, %v1889
    %v1892 = vld [vmem:[#allocation7 + $0x4] sm:$0xff]
    %v1893 = vld [vmem:[#allocation7 + $0x30] sm:$0xff]
    %v1894 = vld [vmem:[#allocation7 + $0x5c] sm:$0xff]
    %v1895 = vld [vmem:[#allocation7 + $0x88] sm:$0xff]
    %v1896 = vld [vmem:[#allocation7 + $0xb4] sm:$0xff]
    %v1897 = vld [vmem:[#allocation7 + $0xe0] sm:$0xff]
    %v1898 = vld [vmem:[#allocation7 + $0x10c] sm:$0xff]
    %v1899 = vld [vmem:[#allocation7 + $0x138] sm:$0xff]
    %v1900 = vld [vmem:[#allocation7 + $0x164] sm:$0xff]
    %v1901 = vld [vmem:[#allocation7 + $0x190] sm:$0xff]
    %v1902 = vld [vmem:[#allocation7 + $0x1bc] sm:$0xff]
    %v1903 = vld [vmem:[#allocation7 + $0x1e8] sm:$0xff]
    %v1904 = vld [vmem:[#allocation7 + $0x214] sm:$0xff]
    %v1905 = vld [vmem:[#allocation7 + $0x240] sm:$0xff]
    %v1906 = vld [vmem:[#allocation7 + $0x26c] sm:$0xff]
    %v1907 = vld [vmem:[#allocation7 + $0x298] sm:$0xff]
    %v1924 = vunpack.c.l.b16 %v1892
    %v1925 = vunpack.c.h.b16 %v1892
    %v1926 = vunpack.c.l.b16 %v1893
    %v1927 = vunpack.c.h.b16 %v1893
    %v1928 = vunpack.c.l.b16 %v1894
    %v1929 = vunpack.c.h.b16 %v1894
    %v1930 = vunpack.c.l.b16 %v1895
    %v1931 = vunpack.c.h.b16 %v1895
    %v1932 = vunpack.c.l.b16 %v1896
    %v1933 = vunpack.c.h.b16 %v1896
    %v1934 = vunpack.c.l.b16 %v1897
    %v1935 = vunpack.c.h.b16 %v1897
    %v1936 = vunpack.c.l.b16 %v1898
    %v1937 = vunpack.c.h.b16 %v1898
    %v1938 = vunpack.c.l.b16 %v1899
    %v1939 = vunpack.c.h.b16 %v1899
    %v1940 = vunpack.c.l.b16 %v1900
    %v1941 = vunpack.c.h.b16 %v1900
    %v1942 = vunpack.c.l.b16 %v1901
    %v1943 = vunpack.c.h.b16 %v1901
    %v1944 = vunpack.c.l.b16 %v1902
    %v1945 = vunpack.c.h.b16 %v1902
    %v1946 = vunpack.c.l.b16 %v1903
    %v1947 = vunpack.c.h.b16 %v1903
    %v1948 = vunpack.c.l.b16 %v1904
    %v1949 = vunpack.c.h.b16 %v1904
    %v1950 = vunpack.c.l.b16 %v1905
    %v1951 = vunpack.c.h.b16 %v1905
    %v1952 = vunpack.c.l.b16 %v1906
    %v1953 = vunpack.c.h.b16 %v1906
    %v1954 = vunpack.c.l.b16 %v1907
    %v1955 = vunpack.c.h.b16 %v1907
    %v1956 = vpack.c.b16 %v1926, %v1924
    %v1957 = vpack.c.b16 %v1927, %v1925
    %v1958 = vpack.c.b16 %v1930, %v1928
    %v1959 = vpack.c.b16 %v1931, %v1929
    %v1960 = vpack.c.b16 %v1934, %v1932
    %v1961 = vpack.c.b16 %v1935, %v1933
    %v1962 = vpack.c.b16 %v1938, %v1936
    %v1963 = vpack.c.b16 %v1939, %v1937
    %v1964 = vpack.c.b16 %v1942, %v1940
    %v1965 = vpack.c.b16 %v1943, %v1941
    %v1966 = vpack.c.b16 %v1946, %v1944
    %v1967 = vpack.c.b16 %v1947, %v1945
    %v1968 = vpack.c.b16 %v1950, %v1948
    %v1969 = vpack.c.b16 %v1951, %v1949
    %v1970 = vpack.c.b16 %v1954, %v1952
    %v1971 = vpack.c.b16 %v1955, %v1953
    %1988 = vmatprep.subr.bf16.mxu0 %v1957
    %1989 = vmatpush1.bf16.msra.mxu0 %v1956
    %1990 = vmatprep.subr.bf16.mxu0 %v1959
    %1991 = vmatpush1.bf16.msra.mxu0 %v1958
    %1992 = vmatprep.subr.bf16.mxu0 %v1961
    %1993 = vmatpush1.bf16.msra.mxu0 %v1960
    %1994 = vmatprep.subr.bf16.mxu0 %v1963
    %1995 = vmatpush1.bf16.msra.mxu0 %v1962
    %1996 = vmatprep.subr.bf16.mxu0 %v1965
    %1997 = vmatpush1.bf16.msra.mxu0 %v1964
    %1998 = vmatprep.subr.bf16.mxu0 %v1967
    %1999 = vmatpush1.bf16.msra.mxu0 %v1966
    %2000 = vmatprep.subr.bf16.mxu0 %v1969
    %2001 = vmatpush1.bf16.msra.mxu0 %v1968
    %2002 = vmatprep.subr.bf16.mxu0 %v1971
    %2003 = vmatpush1.bf16.msra.mxu0 %v1970
    %2004 = vmatprep.subr.bf16.mxu0 0
    %2005 = vmatpush1.bf16.msra.mxu0 0
    %2006 = vmatprep.subr.bf16.mxu0 0
    %2007 = vmatpush1.bf16.msra.mxu0 0
    %2008 = vmatprep.subr.bf16.mxu0 0
    %2009 = vmatpush1.bf16.msra.mxu0 0
    %2010 = vmatprep.subr.bf16.mxu0 0
    %2011 = vmatpush1.bf16.msra.mxu0 0
    %2012 = vmatprep.subr.bf16.mxu0 0
    %2013 = vmatpush1.bf16.msra.mxu0 0
    %2014 = vmatprep.subr.bf16.mxu0 0
    %2015 = vmatpush1.bf16.msra.mxu0 0
    %2016 = vmatprep.subr.bf16.mxu0 0
    %2017 = vmatpush1.bf16.msra.mxu0 0
    %2018 = vmatprep.subr.bf16.mxu0 0
    %2019 = vmatpush1.bf16.msra.mxu0 0
    %2020 = vmatprep.mubr.bf16.mxu0 0
    %2021 = vmatmul.mubr.bf16.gmra.mrb[0].mxu0 %v1891
    %v2022 = vpop.f32.mrb[0].mxu0
    %v2023 = vadd.f32 0.0, %v2022
    %v2024 = vpop.f32.mrb[0].mxu0
    %v2025 = vadd.f32 0.0, %v2024
    %v2026 = vpop.f32.mrb[0].mxu0
    %v2027 = vadd.f32 0.0, %v2026
    %v2028 = vpop.f32.mrb[0].mxu0
    %v2029 = vadd.f32 0.0, %v2028
    %2030 = vdwg.mxu0
    %v2031 = vadd.f32 %v2023, %v588
    %v2032 = vadd.f32 %v2027, %v588
    %v2033 = vtanh.pop %v2031
    %v2034 = vtanh.pop %v2032
    %v2035 = vmul.f32 %v2033, %v685
    %v2036 = vmul.f32 %v2034, %v685
    %2037 = vadd.xlane.f32.xlu0 %v2035
    %v2038 = vpop.xlane.xlu0 %2037
    %2039 = vadd.xlane.f32.xlu0 %v2036
    %v2040 = vpop.xlane.xlu0 %2039
    %v2041 = vmax.f32 %v2038, %v2040
    %v2042 = vrot.slane %v2041, 4
    %v2043 = vmax.f32 %v2041, %v2042
    %v2044 = vrot.slane %v2043, 2
    %v2045 = vmax.f32 %v2043, %v2044
    %v2046 = vrot.slane %v2045, 1
    %v2047 = vmax.f32 %v2045, %v2046
    %v2048 = vsub.f32 %v2038, %v2047
    %v2049 = vsub.f32 %v2040, %v2047
    %v2050 = vmul.f32 %v2048, 1.442695
    %v2051 = vpow.pop %v2050
    %v2052 = vmul.f32 %v2049, 1.442695
    %v2053 = vpow.pop %v2052
    %v2054 = vadd.f32 %v2051, %v2053
    %v2055 = vrot.slane %v2054, 4
    %v2056 = vadd.f32 %v2054, %v2055
    %v2057 = vrot.slane %v2056, 2
    %v2058 = vadd.f32 %v2056, %v2057
    %v2059 = vrot.slane %v2058, 1
    %v2060 = vadd.f32 %v2058, %v2059
    %v2061 = vrcp.pop %v2060
    %v2062 = vmul.f32 %v2051, %v2061
    %v2063 = vmul.f32 %v2053, %v2061
    %v2064 = vmul.f32 %v2062, %v1889
    %v2065 = vmul.f32 %v2063, %v1890
    %v2066 = vadd.f32 %v2064, %v2065
    %v2067 = vrot.slane %v2066, 4
    %v2068 = vadd.f32 %v2066, %v2067
    %v2069 = vrot.slane %v2068, 2
    %v2070 = vadd.f32 %v2068, %v2069
    %v2071 = vrot.slane %v2070, 1
    %v2072 = vadd.f32 %v2070, %v2071
    %v2073 = vpack.c.bf16 %v2072, %v2072
    %v2074 = vld [vmem:[#allocation8 + $0x4] sm:$0xff]
    %v2075 = vld [vmem:[#allocation8 + $0xc] sm:$0xf]
    %v2076 = vld [vmem:[#allocation8 + $0x2c] sm:$0xff]
    %v2077 = vld [vmem:[#allocation8 + $0x34] sm:$0xf]
    %v2078 = vld [vmem:[#allocation8 + $0x54] sm:$0xff]
    %v2079 = vld [vmem:[#allocation8 + $0x5c] sm:$0xf]
    %v2080 = vld [vmem:[#allocation8 + $0x7c] sm:$0xff]
    %v2081 = vld [vmem:[#allocation8 + $0x84] sm:$0xf]
    %v2082 = vld [vmem:[#allocation8 + $0xa4] sm:$0xff]
    %v2083 = vld [vmem:[#allocation8 + $0xac] sm:$0xf]
    %v2084 = vld [vmem:[#allocation8 + $0xcc] sm:$0xff]
    %v2085 = vld [vmem:[#allocation8 + $0xd4] sm:$0xf]
    %v2086 = vld [vmem:[#allocation8 + $0xf4] sm:$0xff]
    %v2087 = vld [vmem:[#allocation8 + $0xfc] sm:$0xf]
    %v2088 = vld [vmem:[#allocation8 + $0x11c] sm:$0xff]
    %v2089 = vld [vmem:[#allocation8 + $0x124] sm:$0xf]
    %v2090 = vld [vmem:[#allocation8 + $0x144] sm:$0xff]
    %v2091 = vld [vmem:[#allocation8 + $0x14c] sm:$0xf]
    %v2092 = vld [vmem:[#allocation8 + $0x16c] sm:$0xff]
    %v2093 = vld [vmem:[#allocation8 + $0x174] sm:$0xf]
    %v2094 = vld [vmem:[#allocation8 + $0x194] sm:$0xff]
    %v2095 = vld [vmem:[#allocation8 + $0x19c] sm:$0xf]
    %v2096 = vld [vmem:[#allocation8 + $0x1bc] sm:$0xff]
    %v2097 = vld [vmem:[#allocation8 + $0x1c4] sm:$0xf]
    %v2098 = vld [vmem:[#allocation8 + $0x1e4] sm:$0xff]
    %v2099 = vld [vmem:[#allocation8 + $0x1ec] sm:$0xf]
    %v2100 = vld [vmem:[#allocation8 + $0x20c] sm:$0xff]
    %v2101 = vld [vmem:[#allocation8 + $0x214] sm:$0xf]
    %v2102 = vld [vmem:[#allocation8 + $0x234] sm:$0xff]
    %v2103 = vld [vmem:[#allocation8 + $0x23c] sm:$0xf]
    %v2104 = vld [vmem:[#allocation8 + $0x25c] sm:$0xff]
    %v2105 = vld [vmem:[#allocation8 + $0x264] sm:$0xf]
    %v2106 = vld [vmem:[#allocation8 + $0x284] sm:$0xff]
    %v2107 = vld [vmem:[#allocation8 + $0x28c] sm:$0xf]
    %v2108 = vld [vmem:[#allocation8 + $0x2ac] sm:$0xff]
    %v2109 = vld [vmem:[#allocation8 + $0x2b4] sm:$0xf]
    %v2110 = vld [vmem:[#allocation8 + $0x2d4] sm:$0xff]
    %v2111 = vld [vmem:[#allocation8 + $0x2dc] sm:$0xf]
    %v2112 = vld [vmem:[#allocation8 + $0x2fc] sm:$0xff]
    %v2113 = vld [vmem:[#allocation8 + $0x304] sm:$0xf]
    %v2114 = vld [vmem:[#allocation8 + $0x324] sm:$0xff]
    %v2115 = vld [vmem:[#allocation8 + $0x32c] sm:$0xf]
    %v2116 = vld [vmem:[#allocation8 + $0x34c] sm:$0xff]
    %v2117 = vld [vmem:[#allocation8 + $0x354] sm:$0xf]
    %v2118 = vld [vmem:[#allocation8 + $0x374] sm:$0xff]
    %v2119 = vld [vmem:[#allocation8 + $0x37c] sm:$0xf]
    %v2120 = vld [vmem:[#allocation8 + $0x39c] sm:$0xff]
    %v2121 = vld [vmem:[#allocation8 + $0x3a4] sm:$0xf]
    %v2122 = vld [vmem:[#allocation8 + $0x3c4] sm:$0xff]
    %v2123 = vld [vmem:[#allocation8 + $0x3cc] sm:$0xf]
    %v2124 = vld [vmem:[#allocation8 + $0x3ec] sm:$0xff]
    %v2125 = vld [vmem:[#allocation8 + $0x3f4] sm:$0xf]
    %v2126 = vld [vmem:[#allocation8 + $0x414] sm:$0xff]
    %v2127 = vld [vmem:[#allocation8 + $0x41c] sm:$0xf]
    %v2128 = vld [vmem:[#allocation8 + $0x43c] sm:$0xff]
    %v2129 = vld [vmem:[#allocation8 + $0x444] sm:$0xf]
    %v2130 = vld [vmem:[#allocation8 + $0x464] sm:$0xff]
    %v2131 = vld [vmem:[#allocation8 + $0x46c] sm:$0xf]
    %v2132 = vld [vmem:[#allocation8 + $0x48c] sm:$0xff]
    %v2133 = vld [vmem:[#allocation8 + $0x494] sm:$0xf]
    %v2134 = vld [vmem:[#allocation8 + $0x4b4] sm:$0xff]
    %v2135 = vld [vmem:[#allocation8 + $0x4bc] sm:$0xf]
    %v2136 = vld [vmem:[#allocation8 + $0x4dc] sm:$0xff]
    %v2137 = vld [vmem:[#allocation8 + $0x4e4] sm:$0xf]
    %v2138 = vld [vmem:[%s4 + $0x8] sm:$0x7]
    %v2203 = vunpack.c.l.b16 %v2074
    %v2204 = vunpack.c.h.b16 %v2074
    %v2205 = vunpack.c.l.b16 %v2075
    %v2206 = vunpack.c.l.b16 %v2076
    %v2207 = vunpack.c.h.b16 %v2076
    %v2208 = vunpack.c.l.b16 %v2077
    %v2209 = vunpack.c.l.b16 %v2078
    %v2210 = vunpack.c.h.b16 %v2078
    %v2211 = vunpack.c.l.b16 %v2079
    %v2212 = vunpack.c.l.b16 %v2080
    %v2213 = vunpack.c.h.b16 %v2080
    %v2214 = vunpack.c.l.b16 %v2081
    %v2215 = vunpack.c.l.b16 %v2082
    %v2216 = vunpack.c.h.b16 %v2082
    %v2217 = vunpack.c.l.b16 %v2083
    %v2218 = vunpack.c.l.b16 %v2084
    %v2219 = vunpack.c.h.b16 %v2084
    %v2220 = vunpack.c.l.b16 %v2085
    %v2221 = vunpack.c.l.b16 %v2086
    %v2222 = vunpack.c.h.b16 %v2086
    %v2223 = vunpack.c.l.b16 %v2087
    %v2224 = vunpack.c.l.b16 %v2088
    %v2225 = vunpack.c.h.b16 %v2088
    %v2226 = vunpack.c.l.b16 %v2089
    %v2227 = vunpack.c.l.b16 %v2090
    %v2228 = vunpack.c.h.b16 %v2090
    %v2229 = vunpack.c.l.b16 %v2091
    %v2230 = vunpack.c.l.b16 %v2092
    %v2231 = vunpack.c.h.b16 %v2092
    %v2232 = vunpack.c.l.b16 %v2093
    %v2233 = vunpack.c.l.b16 %v2094
    %v2234 = vunpack.c.h.b16 %v2094
    %v2235 = vunpack.c.l.b16 %v2095
    %v2236 = vunpack.c.l.b16 %v2096
    %v2237 = vunpack.c.h.b16 %v2096
    %v2238 = vunpack.c.l.b16 %v2097
    %v2239 = vunpack.c.l.b16 %v2098
    %v2240 = vunpack.c.h.b16 %v2098
    %v2241 = vunpack.c.l.b16 %v2099
    %v2242 = vunpack.c.l.b16 %v2100
    %v2243 = vunpack.c.h.b16 %v2100
    %v2244 = vunpack.c.l.b16 %v2101
    %v2245 = vunpack.c.l.b16 %v2102
    %v2246 = vunpack.c.h.b16 %v2102
    %v2247 = vunpack.c.l.b16 %v2103
    %v2248 = vunpack.c.l.b16 %v2104
    %v2249 = vunpack.c.h.b16 %v2104
    %v2250 = vunpack.c.l.b16 %v2105
    %v2251 = vunpack.c.l.b16 %v2106
    %v2252 = vunpack.c.h.b16 %v2106
    %v2253 = vunpack.c.l.b16 %v2107
    %v2254 = vunpack.c.l.b16 %v2108
    %v2255 = vunpack.c.h.b16 %v2108
    %v2256 = vunpack.c.l.b16 %v2109
    %v2257 = vunpack.c.l.b16 %v2110
    %v2258 = vunpack.c.h.b16 %v2110
    %v2259 = vunpack.c.l.b16 %v2111
    %v2260 = vunpack.c.l.b16 %v2112
    %v2261 = vunpack.c.h.b16 %v2112
    %v2262 = vunpack.c.l.b16 %v2113
    %v2263 = vunpack.c.l.b16 %v2114
    %v2264 = vunpack.c.h.b16 %v2114
    %v2265 = vunpack.c.l.b16 %v2115
    %v2266 = vunpack.c.l.b16 %v2116
    %v2267 = vunpack.c.h.b16 %v2116
    %v2268 = vunpack.c.l.b16 %v2117
    %v2269 = vunpack.c.l.b16 %v2118
    %v2270 = vunpack.c.h.b16 %v2118
    %v2271 = vunpack.c.l.b16 %v2119
    %v2272 = vunpack.c.l.b16 %v2120
    %v2273 = vunpack.c.h.b16 %v2120
    %v2274 = vunpack.c.l.b16 %v2121
    %v2275 = vunpack.c.l.b16 %v2122
    %v2276 = vunpack.c.h.b16 %v2122
    %v2277 = vunpack.c.l.b16 %v2123
    %v2278 = vunpack.c.l.b16 %v2124
    %v2279 = vunpack.c.h.b16 %v2124
    %v2280 = vunpack.c.l.b16 %v2125
    %v2281 = vunpack.c.l.b16 %v2126
    %v2282 = vunpack.c.h.b16 %v2126
    %v2283 = vunpack.c.l.b16 %v2127
    %v2284 = vunpack.c.l.b16 %v2128
    %v2285 = vunpack.c.h.b16 %v2128
    %v2286 = vunpack.c.l.b16 %v2129
    %v2287 = vunpack.c.l.b16 %v2130
    %v2288 = vunpack.c.h.b16 %v2130
    %v2289 = vunpack.c.l.b16 %v2131
    %v2290 = vunpack.c.l.b16 %v2132
    %v2291 = vunpack.c.h.b16 %v2132
    %v2292 = vunpack.c.l.b16 %v2133
    %v2293 = vunpack.c.l.b16 %v2134
    %v2294 = vunpack.c.h.b16 %v2134
    %v2295 = vunpack.c.l.b16 %v2135
    %v2296 = vunpack.c.l.b16 %v2136
    %v2297 = vunpack.c.h.b16 %v2136
    %v2298 = vunpack.c.l.b16 %v2137
    %v2299 = vpack.c.b16 %v2206, %v2203
    %v2300 = vpack.c.b16 %v2207, %v2204
    %v2301 = vpack.c.b16 %v2208, %v2205
    %v2302 = vpack.c.b16 %v2212, %v2209
    %v2303 = vpack.c.b16 %v2213, %v2210
    %v2304 = vpack.c.b16 %v2214, %v2211
    %v2305 = vpack.c.b16 %v2218, %v2215
    %v2306 = vpack.c.b16 %v2219, %v2216
    %v2307 = vpack.c.b16 %v2220, %v2217
    %v2308 = vpack.c.b16 %v2224, %v2221
    %v2309 = vpack.c.b16 %v2225, %v2222
    %v2310 = vpack.c.b16 %v2226, %v2223
    %v2311 = vpack.c.b16 %v2230, %v2227
    %v2312 = vpack.c.b16 %v2231, %v2228
    %v2313 = vpack.c.b16 %v2232, %v2229
    %v2314 = vpack.c.b16 %v2236, %v2233
    %v2315 = vpack.c.b16 %v2237, %v2234
    %v2316 = vpack.c.b16 %v2238, %v2235
    %v2317 = vpack.c.b16 %v2242, %v2239
    %v2318 = vpack.c.b16 %v2243, %v2240
    %v2319 = vpack.c.b16 %v2244, %v2241
    %v2320 = vpack.c.b16 %v2248, %v2245
    %v2321 = vpack.c.b16 %v2249, %v2246
    %v2322 = vpack.c.b16 %v2250, %v2247
    %v2323 = vpack.c.b16 %v2254, %v2251
    %v2324 = vpack.c.b16 %v2255, %v2252
    %v2325 = vpack.c.b16 %v2256, %v2253
    %v2326 = vpack.c.b16 %v2260, %v2257
    %v2327 = vpack.c.b16 %v2261, %v2258
    %v2328 = vpack.c.b16 %v2262, %v2259
    %v2329 = vpack.c.b16 %v2266, %v2263
    %v2330 = vpack.c.b16 %v2267, %v2264
    %v2331 = vpack.c.b16 %v2268, %v2265
    %v2332 = vpack.c.b16 %v2272, %v2269
    %v2333 = vpack.c.b16 %v2273, %v2270
    %v2334 = vpack.c.b16 %v2274, %v2271
    %v2335 = vpack.c.b16 %v2278, %v2275
    %v2336 = vpack.c.b16 %v2279, %v2276
    %v2337 = vpack.c.b16 %v2280, %v2277
    %v2338 = vpack.c.b16 %v2284, %v2281
    %v2339 = vpack.c.b16 %v2285, %v2282
    %v2340 = vpack.c.b16 %v2286, %v2283
    %v2341 = vpack.c.b16 %v2290, %v2287
    %v2342 = vpack.c.b16 %v2291, %v2288
    %v2343 = vpack.c.b16 %v2292, %v2289
    %v2344 = vpack.c.b16 %v2296, %v2293
    %v2345 = vpack.c.b16 %v2297, %v2294
    %v2346 = vpack.c.b16 %v2298, %v2295
    %v2396 = vlaneseq
    %v2397 = vshrl.u32 %v2396, 7
    %v2398 = vsub.s32 0, %v2397
    %v2399 = vrot.slane %v2138, %v2398
    %v2400 = vlaneseq
    %v2401 = vshrl.u32 %v2400, 7
    %v2402 = vsub.s32 1, %v2401
    %v2403 = vrot.slane %v2138, %v2402
    %v2404 = vlaneseq
    %v2405 = vshrl.u32 %v2404, 7
    %v2406 = vsub.s32 2, %v2405
    %v2407 = vrot.slane %v2138, %v2406
    %2411 = vmatprep.subr.bf16.mxu0 %v2300
    %2412 = vmatpush1.bf16.msra.mxu0 %v2299
    %2413 = vmatprep.subr.bf16.mxu0 %v2303
    %2414 = vmatpush1.bf16.msra.mxu0 %v2302
    %2415 = vmatprep.subr.bf16.mxu0 %v2306
    %2416 = vmatpush1.bf16.msra.mxu0 %v2305
    %2417 = vmatprep.subr.bf16.mxu0 %v2309
    %2418 = vmatpush1.bf16.msra.mxu0 %v2308
    %2419 = vmatprep.subr.bf16.mxu0 %v2312
    %2420 = vmatpush1.bf16.msra.mxu0 %v2311
    %2421 = vmatprep.subr.bf16.mxu0 %v2315
    %2422 = vmatpush1.bf16.msra.mxu0 %v2314
    %2423 = vmatprep.subr.bf16.mxu0 %v2318
    %2424 = vmatpush1.bf16.msra.mxu0 %v2317
    %2425 = vmatprep.subr.bf16.mxu0 %v2321
    %2426 = vmatpush1.bf16.msra.mxu0 %v2320
    %2427 = vmatprep.subr.bf16.mxu0 %v2324
    %2428 = vmatpush1.bf16.msra.mxu0 %v2323
    %2429 = vmatprep.subr.bf16.mxu0 %v2327
    %2430 = vmatpush1.bf16.msra.mxu0 %v2326
    %2431 = vmatprep.subr.bf16.mxu0 %v2330
    %2432 = vmatpush1.bf16.msra.mxu0 %v2329
    %2433 = vmatprep.subr.bf16.mxu0 %v2333
    %2434 = vmatpush1.bf16.msra.mxu0 %v2332
    %2435 = vmatprep.subr.bf16.mxu0 %v2336
    %2436 = vmatpush1.bf16.msra.mxu0 %v2335
    %2437 = vmatprep.subr.bf16.mxu0 %v2339
    %2438 = vmatpush1.bf16.msra.mxu0 %v2338
    %2439 = vmatprep.subr.bf16.mxu0 %v2342
    %2440 = vmatpush1.bf16.msra.mxu0 %v2341
    %2441 = vmatprep.subr.bf16.mxu0 %v2345
    %2442 = vmatpush1.bf16.msra.mxu0 %v2344
    %2443 = vmatprep.mubr.bf16.mxu0 %v2073
    %2444 = vmatmul.mubr.bf16.gmra.mrb[0].mxu0 %v725
    %v2445 = vpop.f32.mrb[0].mxu0
    %v2446 = vadd.f32 %v2399, %v2445
    %v2447 = vpop.f32.mrb[0].mxu0
    %v2448 = vadd.f32 %v2403, %v2447
    %v2449 = vpop.f32.mrb[0].mxu0
    %v2450 = vpop.f32.mrb[0].mxu0
    %2451 = vdwg.mxu0
    %2452 = vmatprep.subr.bf16.mxu0 0
    %2453 = vmatpush1.bf16.msra.mxu0 %v2301
    %2454 = vmatprep.subr.bf16.mxu0 0
    %2455 = vmatpush1.bf16.msra.mxu0 %v2304
    %2456 = vmatprep.subr.bf16.mxu0 0
    %2457 = vmatpush1.bf16.msra.mxu0 %v2307
    %2458 = vmatprep.subr.bf16.mxu0 0
    %2459 = vmatpush1.bf16.msra.mxu0 %v2310
    %2460 = vmatprep.subr.bf16.mxu0 0
    %2461 = vmatpush1.bf16.msra.mxu0 %v2313
    %2462 = vmatprep.subr.bf16.mxu0 0
    %2463 = vmatpush1.bf16.msra.mxu0 %v2316
    %2464 = vmatprep.subr.bf16.mxu0 0
    %2465 = vmatpush1.bf16.msra.mxu0 %v2319
    %2466 = vmatprep.subr.bf16.mxu0 0
    %2467 = vmatpush1.bf16.msra.mxu0 %v2322
    %2468 = vmatprep.subr.bf16.mxu0 0
    %2469 = vmatpush1.bf16.msra.mxu0 %v2325
    %2470 = vmatprep.subr.bf16.mxu0 0
    %2471 = vmatpush1.bf16.msra.mxu0 %v2328
    %2472 = vmatprep.subr.bf16.mxu0 0
    %2473 = vmatpush1.bf16.msra.mxu0 %v2331
    %2474 = vmatprep.subr.bf16.mxu0 0
    %2475 = vmatpush1.bf16.msra.mxu0 %v2334
    %2476 = vmatprep.subr.bf16.mxu0 0
    %2477 = vmatpush1.bf16.msra.mxu0 %v2337
    %2478 = vmatprep.subr.bf16.mxu0 0
    %2479 = vmatpush1.bf16.msra.mxu0 %v2340
    %2480 = vmatprep.subr.bf16.mxu0 0
    %2481 = vmatpush1.bf16.msra.mxu0 %v2343
    %2482 = vmatprep.subr.bf16.mxu0 0
    %2483 = vmatpush1.bf16.msra.mxu0 %v2346
    %2484 = vmatprep.mubr.bf16.mxu0 %v2073
    %2485 = vmatmul.mubr.bf16.gmra.mrb[0].mxu0 %v725
    %v2486 = vpop.f32.mrb[0].mxu0
    %v2487 = vadd.f32 %v2407, %v2486
    %v2488 = vpop.f32.mrb[0].mxu0
    %v2489 = vpop.f32.mrb[0].mxu0
    %v2490 = vpop.f32.mrb[0].mxu0
    %2491 = vdwg.mxu0
    %v2492 = vxor.u32 %v2446, 2147483648
    %v2493 = vmul.f32 %v2492, 1.442695
    %v2494 = vpow.pop %v2493
    %v2495 = vadd.f32 %v2494, 1.0
    %v2496 = vrcp.pop %v2495
    %v2497 = vmul.f32 1.0, %v2496
    %v2498 = vxor.u32 %v2448, 2147483648
    %v2499 = vmul.f32 %v2498, 1.442695
    %v2500 = vpow.pop %v2499
    %v2501 = vadd.f32 %v2500, 1.0
    %v2502 = vrcp.pop %v2501
    %v2503 = vmul.f32 1.0, %v2502
    %v2504 = vlaneseq
    %v2505 = vshrl.u32 %v2504, 7
    %v2506 = vsub.s32 0, %v2505
    %v2507 = vrot.slane %v2487, %v2506
    %v2508 = vadd.f32 %v2507, %v2025
    %v2509 = vadd.f32 %v2507, %v2029
    %v2510 = vld [vmem:[%s4 + $0xb] sm:$0x1]
    %v2512 = vlaneseq
    %v2513 = vshrl.u32 %v2512, 7
    %v2514 = vsub.s32 0, %v2513
    %v2515 = vrot.slane %v2510, %v2514
    %v2517 = vadd.f32 %v2508, %v2515
    %v2518 = vadd.f32 %v2509, %v2515
    %v2519 = vxor.u32 %v2517, 2147483648
    %v2520 = vxor.u32 %v2518, 2147483648
    %v2521 = vmul.f32 %v2519, 1.442695
    %v2522 = vpow.pop %v2521
    %v2523 = vmul.f32 %v2520, 1.442695
    %v2524 = vpow.pop %v2523
    %v2525 = vadd.f32 %v2522, 1.0
    %v2526 = vadd.f32 %v2524, 1.0
    %v2527 = vrcp.pop %v2525
    %v2528 = vmul.f32 1.0, %v2527
    %v2529 = vrcp.pop %v2526
    %v2530 = vmul.f32 1.0, %v2529
    %v2531 = vmax.f32 %v2528, %v2530
    %v2532 = vrot.slane %v2531, 4
    %v2533 = vmax.f32 %v2531, %v2532
    %v2534 = vrot.slane %v2533, 2
    %v2535 = vmax.f32 %v2533, %v2534
    %v2536 = vrot.slane %v2535, 1
    %v2537 = vmax.f32 %v2535, %v2536
    %v2538 = vsub.f32 %v2528, %v2537
    %v2539 = vsub.f32 %v2530, %v2537
    %v2540 = vmul.f32 %v2538, 1.442695
    %v2541 = vpow.pop %v2540
    %v2542 = vmul.f32 %v2539, 1.442695
    %v2543 = vpow.pop %v2542
    %v2544 = vadd.f32 %v2541, %v2543
    %v2545 = vrot.slane %v2544, 4
    %v2546 = vadd.f32 %v2544, %v2545
    %v2547 = vrot.slane %v2546, 2
    %v2548 = vadd.f32 %v2546, %v2547
    %v2549 = vrot.slane %v2548, 1
    %v2550 = vadd.f32 %v2548, %v2549
    %v2551 = vrcp.pop %v2550
    %v2552 = vmul.f32 %v2541, %v2551
    %v2553 = vmul.f32 %v2543, %v2551
    %v2554 = vmul.f32 %v2497, %v724
    %v2555 = vmul.f32 %v1873, %v2552
    %v2556 = vmul.f32 %v1874, %v2553
    %v2557 = vadd.f32 %v2555, %v2556
    %v2558 = vrot.slane %v2557, 4
    %v2559 = vadd.f32 %v2557, %v2558
    %v2560 = vrot.slane %v2559, 2
    %v2561 = vadd.f32 %v2559, %v2560
    %v2562 = vrot.slane %v2561, 1
    %v2563 = vadd.f32 %v2561, %v2562
    %v2564 = vadd.f32 %v2554, %v2563
    %v2565 = vtanh.pop %v2564
    %v2566 = vmul.f32 %v2503, %v2565
    %v2567 = vpack.c.bf16 %v2566, %v2566
    %v2569 = vpack.i.b16 %v2567, %v2567
    %v2571 = vlaneseq
    %v2572 = vshrl.u32 %v2571, 7
    %v2573 = vsub.s32 0, %v2572
    %v2574 = vrot.slane %v2569, %v2573
    %2575 = vmatprep.subr.bf16.mxu0 %v1111
    %2576 = vmatpush1.bf16.msra.mxu0 %v1110
    %2577 = vmatprep.subr.bf16.mxu0 %v1117
    %2578 = vmatpush1.bf16.msra.mxu0 %v1116
    %2579 = vmatprep.subr.bf16.mxu0 %v1123
    %2580 = vmatpush1.bf16.msra.mxu0 %v1122
    %2581 = vmatprep.subr.bf16.mxu0 %v1129
    %2582 = vmatpush1.bf16.msra.mxu0 %v1128
    %2583 = vmatprep.subr.bf16.mxu0 %v1135
    %2584 = vmatpush1.bf16.msra.mxu0 %v1134
    %2585 = vmatprep.subr.bf16.mxu0 %v1141
    %2586 = vmatpush1.bf16.msra.mxu0 %v1140
    %2587 = vmatprep.subr.bf16.mxu0 %v1147
    %2588 = vmatpush1.bf16.msra.mxu0 %v1146
    %2589 = vmatprep.subr.bf16.mxu0 %v1153
    %2590 = vmatpush1.bf16.msra.mxu0 %v1152
    %2591 = vmatprep.subr.bf16.mxu0 %v1159
    %2592 = vmatpush1.bf16.msra.mxu0 %v1158
    %2593 = vmatprep.subr.bf16.mxu0 %v1165
    %2594 = vmatpush1.bf16.msra.mxu0 %v1164
    %2595 = vmatprep.subr.bf16.mxu0 %v1171
    %2596 = vmatpush1.bf16.msra.mxu0 %v1170
    %2597 = vmatprep.subr.bf16.mxu0 %v1177
    %2598 = vmatpush1.bf16.msra.mxu0 %v1176
    %2599 = vmatprep.subr.bf16.mxu0 %v1183
    %2600 = vmatpush1.bf16.msra.mxu0 %v1182
    %2601 = vmatprep.subr.bf16.mxu0 %v1189
    %2602 = vmatpush1.bf16.msra.mxu0 %v1188
    %2603 = vmatprep.subr.bf16.mxu0 %v1195
    %2604 = vmatpush1.bf16.msra.mxu0 %v1194
    %2605 = vmatprep.subr.bf16.mxu0 %v1201
    %2606 = vmatpush1.bf16.msra.mxu0 %v1200
    %2607 = vmatprep.mubr.bf16.mxu0 %v2574
    %2608 = vmatmul.mubr.bf16.gmra.mrb[0].mxu0 %v1891
    %v2609 = vpop.f32.mrb[0].mxu0
    %v2610 = vadd.f32 0.0, %v2609
    %v2611 = vpop.f32.mrb[0].mxu0
    %v2612 = vadd.f32 0.0, %v2611
    %v2613 = vpop.f32.mrb[0].mxu0
    %v2614 = vadd.f32 0.0, %v2613
    %v2615 = vpop.f32.mrb[0].mxu0
    %v2616 = vadd.f32 0.0, %v2615
    %2617 = vdwg.mxu0
    %2618 = vmatprep.subr.bf16.mxu0 %v1113
    %2619 = vmatpush1.bf16.msra.mxu0 %v1112
    %2620 = vmatprep.subr.bf16.mxu0 %v1119
    %2621 = vmatpush1.bf16.msra.mxu0 %v1118
    %2622 = vmatprep.subr.bf16.mxu0 %v1125
    %2623 = vmatpush1.bf16.msra.mxu0 %v1124
    %2624 = vmatprep.subr.bf16.mxu0 %v1131
    %2625 = vmatpush1.bf16.msra.mxu0 %v1130
    %2626 = vmatprep.subr.bf16.mxu0 %v1137
    %2627 = vmatpush1.bf16.msra.mxu0 %v1136
    %2628 = vmatprep.subr.bf16.mxu0 %v1143
    %2629 = vmatpush1.bf16.msra.mxu0 %v1142
    %2630 = vmatprep.subr.bf16.mxu0 %v1149
    %2631 = vmatpush1.bf16.msra.mxu0 %v1148
    %2632 = vmatprep.subr.bf16.mxu0 %v1155
    %2633 = vmatpush1.bf16.msra.mxu0 %v1154
    %2634 = vmatprep.subr.bf16.mxu0 %v1161
    %2635 = vmatpush1.bf16.msra.mxu0 %v1160
    %2636 = vmatprep.subr.bf16.mxu0 %v1167
    %2637 = vmatpush1.bf16.msra.mxu0 %v1166
    %2638 = vmatprep.subr.bf16.mxu0 %v1173
    %2639 = vmatpush1.bf16.msra.mxu0 %v1172
    %2640 = vmatprep.subr.bf16.mxu0 %v1179
    %2641 = vmatpush1.bf16.msra.mxu0 %v1178
    %2642 = vmatprep.subr.bf16.mxu0 %v1185
    %2643 = vmatpush1.bf16.msra.mxu0 %v1184
    %2644 = vmatprep.subr.bf16.mxu0 %v1191
    %2645 = vmatpush1.bf16.msra.mxu0 %v1190
    %2646 = vmatprep.subr.bf16.mxu0 %v1197
    %2647 = vmatpush1.bf16.msra.mxu0 %v1196
    %2648 = vmatprep.subr.bf16.mxu0 %v1203
    %2649 = vmatpush1.bf16.msra.mxu0 %v1202
    %2650 = vmatprep.mubr.bf16.mxu0 %v2574
    %2651 = vmatmul.mubr.bf16.gmra.mrb[0].mxu0 %v1891
    %v2652 = vpop.f32.mrb[0].mxu0
    %v2653 = vadd.f32 0.0, %v2652
    %v2654 = vpop.f32.mrb[0].mxu0
    %v2655 = vadd.f32 0.0, %v2654
    %v2656 = vpop.f32.mrb[0].mxu0
    %v2657 = vadd.f32 0.0, %v2656
    %v2658 = vpop.f32.mrb[0].mxu0
    %v2659 = vadd.f32 0.0, %v2658
    %2660 = vdwg.mxu0
    %2661 = vmatprep.subr.bf16.mxu0 %v1115
    %2662 = vmatpush1.bf16.msra.mxu0 %v1114
    %2663 = vmatprep.subr.bf16.mxu0 %v1121
    %2664 = vmatpush1.bf16.msra.mxu0 %v1120
    %2665 = vmatprep.subr.bf16.mxu0 %v1127
    %2666 = vmatpush1.bf16.msra.mxu0 %v1126
    %2667 = vmatprep.subr.bf16.mxu0 %v1133
    %2668 = vmatpush1.bf16.msra.mxu0 %v1132
    %2669 = vmatprep.subr.bf16.mxu0 %v1139
    %2670 = vmatpush1.bf16.msra.mxu0 %v1138
    %2671 = vmatprep.subr.bf16.mxu0 %v1145
    %2672 = vmatpush1.bf16.msra.mxu0 %v1144
    %2673 = vmatprep.subr.bf16.mxu0 %v1151
    %2674 = vmatpush1.bf16.msra.mxu0 %v1150
    %2675 = vmatprep.subr.bf16.mxu0 %v1157
    %2676 = vmatpush1.bf16.msra.mxu0 %v1156
    %2677 = vmatprep.subr.bf16.mxu0 %v1163
    %2678 = vmatpush1.bf16.msra.mxu0 %v1162
    %2679 = vmatprep.subr.bf16.mxu0 %v1169
    %2680 = vmatpush1.bf16.msra.mxu0 %v1168
    %2681 = vmatprep.subr.bf16.mxu0 %v1175
    %2682 = vmatpush1.bf16.msra.mxu0 %v1174
    %2683 = vmatprep.subr.bf16.mxu0 %v1181
    %2684 = vmatpush1.bf16.msra.mxu0 %v1180
    %2685 = vmatprep.subr.bf16.mxu0 %v1187
    %2686 = vmatpush1.bf16.msra.mxu0 %v1186
    %2687 = vmatprep.subr.bf16.mxu0 %v1193
    %2688 = vmatpush1.bf16.msra.mxu0 %v1192
    %2689 = vmatprep.subr.bf16.mxu0 %v1199
    %2690 = vmatpush1.bf16.msra.mxu0 %v1198
    %2691 = vmatprep.subr.bf16.mxu0 %v1205
    %2692 = vmatpush1.bf16.msra.mxu0 %v1204
    %2693 = vmatprep.mubr.bf16.mxu0 %v2574
    %2694 = vmatmul.mubr.bf16.gmra.mrb[0].mxu0 %v1891
    %v2695 = vpop.f32.mrb[0].mxu0
    %v2696 = vadd.f32 0.0, %v2695
    %v2697 = vpop.f32.mrb[0].mxu0
    %v2698 = vadd.f32 0.0, %v2697
    %v2699 = vpop.f32.mrb[0].mxu0
    %v2700 = vadd.f32 0.0, %v2699
    %v2701 = vpop.f32.mrb[0].mxu0
    %v2702 = vadd.f32 0.0, %v2701
    %2703 = vdwg.mxu0
    %v2704 = vpack.c.bf16 %v2700, %v2696
    %v2705 = vpack.c.bf16 %v2702, %v2698
    %2706 = vmatprep.subr.bf16.mxu0 0
    %2707 = vmatpush1.bf16.msra.mxu0 %v2705
    %2708 = vmatprep.subr.bf16.mxu0 0
    %2709 = vmatpush1.bf16.msra.mxu0 0
    %2710 = vmatprep.subr.bf16.mxu0 0
    %2711 = vmatpush1.bf16.msra.mxu0 0
    %2712 = vmatprep.subr.bf16.mxu0 0
    %2713 = vmatpush1.bf16.msra.mxu0 0
    %2714 = vmatprep.subr.bf16.mxu0 0
    %2715 = vmatpush1.bf16.msra.mxu0 0
    %2716 = vmatprep.subr.bf16.mxu0 0
    %2717 = vmatpush1.bf16.msra.mxu0 0
    %2718 = vmatprep.subr.bf16.mxu0 0
    %2719 = vmatpush1.bf16.msra.mxu0 0
    %2720 = vmatprep.subr.bf16.mxu0 0
    %2721 = vmatpush1.bf16.msra.mxu0 0
    %2722 = vmatprep.subr.bf16.mxu0 0
    %2723 = vmatpush1.bf16.msra.mxu0 0
    %2724 = vmatprep.subr.bf16.mxu0 0
    %2725 = vmatpush1.bf16.msra.mxu0 0
    %2726 = vmatprep.subr.bf16.mxu0 0
    %2727 = vmatpush1.bf16.msra.mxu0 0
    %2728 = vmatprep.subr.bf16.mxu0 0
    %2729 = vmatpush1.bf16.msra.mxu0 0
    %2730 = vmatprep.subr.bf16.mxu0 0
    %2731 = vmatpush1.bf16.msra.mxu0 0
    %2732 = vmatprep.subr.bf16.mxu0 0
    %2733 = vmatpush1.bf16.msra.mxu0 0
    %2734 = vmatprep.subr.bf16.mxu0 0
    %2735 = vmatpush1.bf16.msra.mxu0 0
    %2736 = vmatprep.subr.bf16.mxu0 0
    %2737 = vmatpush1.bf16.msra.mxu0 0
    %2738 = vmatprep.mubr.bf16.mxu0 0
    %2739 = vmatmul.mubr.bf16.gmra.mrb[0].mxu0 %v1445
    %v2740 = vpop.f32.mrb[0].mxu0
    %v2741 = vadd.f32 0.0, %v2740
    %v2742 = vpop.f32.mrb[0].mxu0
    %v2743 = vpop.f32.mrb[0].mxu0
    %v2744 = vadd.f32 0.0, %v2743
    %v2745 = vpop.f32.mrb[0].mxu0
    %2746 = vdwg.mxu0
    %2747 = vmatprep.subr.bf16.mxu0 0
    %2748 = vmatpush1.bf16.msra.mxu0 %v2704
    %2749 = vmatprep.subr.bf16.mxu0 0
    %2750 = vmatpush1.bf16.msra.mxu0 0
    %2751 = vmatprep.subr.bf16.mxu0 0
    %2752 = vmatpush1.bf16.msra.mxu0 0
    %2753 = vmatprep.subr.bf16.mxu0 0
    %2754 = vmatpush1.bf16.msra.mxu0 0
    %2755 = vmatprep.subr.bf16.mxu0 0
    %2756 = vmatpush1.bf16.msra.mxu0 0
    %2757 = vmatprep.subr.bf16.mxu0 0
    %2758 = vmatpush1.bf16.msra.mxu0 0
    %2759 = vmatprep.subr.bf16.mxu0 0
    %2760 = vmatpush1.bf16.msra.mxu0 0
    %2761 = vmatprep.subr.bf16.mxu0 0
    %2762 = vmatpush1.bf16.msra.mxu0 0
    %2763 = vmatprep.subr.bf16.mxu0 0
    %2764 = vmatpush1.bf16.msra.mxu0 0
    %2765 = vmatprep.subr.bf16.mxu0 0
    %2766 = vmatpush1.bf16.msra.mxu0 0
    %2767 = vmatprep.subr.bf16.mxu0 0
    %2768 = vmatpush1.bf16.msra.mxu0 0
    %2769 = vmatprep.subr.bf16.mxu0 0
    %2770 = vmatpush1.bf16.msra.mxu0 0
    %2771 = vmatprep.subr.bf16.mxu0 0
    %2772 = vmatpush1.bf16.msra.mxu0 0
    %2773 = vmatprep.subr.bf16.mxu0 0
    %2774 = vmatpush1.bf16.msra.mxu0 0
    %2775 = vmatprep.subr.bf16.mxu0 0
    %2776 = vmatpush1.bf16.msra.mxu0 0
    %2777 = vmatprep.subr.bf16.mxu0 0
    %2778 = vmatpush1.bf16.msra.mxu0 0
    %2779 = vmatprep.mubr.bf16.mxu0 0
    %2780 = vmatmul.mubr.bf16.gmra.mrb[0].mxu0 %v1494
    %v2781 = vpop.f32.mrb[0].mxu0
    %v2782 = vadd.f32 %v2741, %v2781
    %v2783 = vpop.f32.mrb[0].mxu0
    %v2784 = vpop.f32.mrb[0].mxu0
    %v2785 = vadd.f32 %v2744, %v2784
    %v2786 = vpop.f32.mrb[0].mxu0
    %2787 = vdwg.mxu0
    %v2788 = vadd.f32 %v2782, %v1542
    %v2789 = vadd.f32 %v2785, %v1542
    %v2790 = vmax.f32 %v2788, 0.0
    %v2791 = vmax.f32 %v2789, 0.0
    %v2792 = vpack.c.bf16 %v2791, %v2790
    %2793 = vmatprep.subr.bf16.mxu0 %v1678
    %2794 = vmatpush1.bf16.msra.mxu0 %v1677
    %2795 = vmatprep.subr.bf16.mxu0 %v1682
    %2796 = vmatpush1.bf16.msra.mxu0 %v1681
    %2797 = vmatprep.subr.bf16.mxu0 %v1686
    %2798 = vmatpush1.bf16.msra.mxu0 %v1685
    %2799 = vmatprep.subr.bf16.mxu0 %v1690
    %2800 = vmatpush1.bf16.msra.mxu0 %v1689
    %2801 = vmatprep.subr.bf16.mxu0 %v1694
    %2802 = vmatpush1.bf16.msra.mxu0 %v1693
    %2803 = vmatprep.subr.bf16.mxu0 %v1698
    %2804 = vmatpush1.bf16.msra.mxu0 %v1697
    %2805 = vmatprep.subr.bf16.mxu0 %v1702
    %2806 = vmatpush1.bf16.msra.mxu0 %v1701
    %2807 = vmatprep.subr.bf16.mxu0 %v1706
    %2808 = vmatpush1.bf16.msra.mxu0 %v1705
    %2809 = vmatprep.subr.bf16.mxu0 0
    %2810 = vmatpush1.bf16.msra.mxu0 0
    %2811 = vmatprep.subr.bf16.mxu0 0
    %2812 = vmatpush1.bf16.msra.mxu0 0
    %2813 = vmatprep.subr.bf16.mxu0 0
    %2814 = vmatpush1.bf16.msra.mxu0 0
    %2815 = vmatprep.subr.bf16.mxu0 0
    %2816 = vmatpush1.bf16.msra.mxu0 0
    %2817 = vmatprep.subr.bf16.mxu0 0
    %2818 = vmatpush1.bf16.msra.mxu0 0
    %2819 = vmatprep.subr.bf16.mxu0 0
    %2820 = vmatpush1.bf16.msra.mxu0 0
    %2821 = vmatprep.subr.bf16.mxu0 0
    %2822 = vmatpush1.bf16.msra.mxu0 0
    %2823 = vmatprep.subr.bf16.mxu0 0
    %2824 = vmatpush1.bf16.msra.mxu0 0
    %2825 = vmatprep.mubr.bf16.mxu0 0
    %2826 = vmatmul.mubr.bf16.gmra.mrb[0].mxu0 %v2792
    %v2827 = vpop.f32.mrb[0].mxu0
    %v2828 = vadd.f32 0.0, %v2827
    %v2829 = vpop.f32.mrb[0].mxu0
    %v2830 = vadd.f32 0.0, %v2829
    %v2831 = vpop.f32.mrb[0].mxu0
    %v2832 = vadd.f32 0.0, %v2831
    %v2833 = vpop.f32.mrb[0].mxu0
    %v2834 = vadd.f32 0.0, %v2833
    %2835 = vdwg.mxu0
    %2836 = vmatprep.subr.bf16.mxu0 %v1680
    %2837 = vmatpush1.bf16.msra.mxu0 %v1679
    %2838 = vmatprep.subr.bf16.mxu0 %v1684
    %2839 = vmatpush1.bf16.msra.mxu0 %v1683
    %2840 = vmatprep.subr.bf16.mxu0 %v1688
    %2841 = vmatpush1.bf16.msra.mxu0 %v1687
    %2842 = vmatprep.subr.bf16.mxu0 %v1692
    %2843 = vmatpush1.bf16.msra.mxu0 %v1691
    %2844 = vmatprep.subr.bf16.mxu0 %v1696
    %2845 = vmatpush1.bf16.msra.mxu0 %v1695
    %2846 = vmatprep.subr.bf16.mxu0 %v1700
    %2847 = vmatpush1.bf16.msra.mxu0 %v1699
    %2848 = vmatprep.subr.bf16.mxu0 %v1704
    %2849 = vmatpush1.bf16.msra.mxu0 %v1703
    %2850 = vmatprep.subr.bf16.mxu0 %v1708
    %2851 = vmatpush1.bf16.msra.mxu0 %v1707
    %2852 = vmatprep.subr.bf16.mxu0 0
    %2853 = vmatpush1.bf16.msra.mxu0 0
    %2854 = vmatprep.subr.bf16.mxu0 0
    %2855 = vmatpush1.bf16.msra.mxu0 0
    %2856 = vmatprep.subr.bf16.mxu0 0
    %2857 = vmatpush1.bf16.msra.mxu0 0
    %2858 = vmatprep.subr.bf16.mxu0 0
    %2859 = vmatpush1.bf16.msra.mxu0 0
    %2860 = vmatprep.subr.bf16.mxu0 0
    %2861 = vmatpush1.bf16.msra.mxu0 0
    %2862 = vmatprep.subr.bf16.mxu0 0
    %2863 = vmatpush1.bf16.msra.mxu0 0
    %2864 = vmatprep.subr.bf16.mxu0 0
    %2865 = vmatpush1.bf16.msra.mxu0 0
    %2866 = vmatprep.subr.bf16.mxu0 0
    %2867 = vmatpush1.bf16.msra.mxu0 0
    %2868 = vmatprep.mubr.bf16.mxu0 0
    %2869 = vmatmul.mubr.bf16.gmra.mrb[0].mxu0 %v2792
    %v2870 = vpop.f32.mrb[0].mxu0
    %v2871 = vadd.f32 0.0, %v2870
    %v2872 = vpop.f32.mrb[0].mxu0
    %v2873 = vadd.f32 0.0, %v2872
    %v2874 = vpop.f32.mrb[0].mxu0
    %v2875 = vadd.f32 0.0, %v2874
    %v2876 = vpop.f32.mrb[0].mxu0
    %v2877 = vadd.f32 0.0, %v2876
    %2878 = vdwg.mxu0
    %v2879 = vadd.f32 %v2610, %v2828
    %v2880 = vadd.f32 %v2612, %v2830
    %v2881 = vadd.f32 %v2653, %v2871
    %v2882 = vadd.f32 %v2655, %v2873
    %v2883 = vadd.f32 %v2614, %v2832
    %v2884 = vadd.f32 %v2616, %v2834
    %v2885 = vadd.f32 %v2657, %v2875
    %v2886 = vadd.f32 %v2659, %v2877
    %v2887 = vadd.f32 %v2879, %v517
    %v2888 = vadd.f32 %v2880, %v519
    %v2889 = vadd.f32 %v2881, %v560
    %v2890 = vadd.f32 %v2882, %v562
    %v2891 = vadd.f32 %v2883, %v521
    %v2892 = vadd.f32 %v2884, %v523
    %v2893 = vadd.f32 %v2885, %v564
    %v2894 = vadd.f32 %v2886, %v566
    %v2895 = vxor.u32 %v2888, 2147483648
    %v2896 = vxor.u32 %v2892, 2147483648
    %v2897 = vmul.f32 %v2895, 1.442695
    %v2898 = vpow.pop %v2897
    %v2899 = vmul.f32 %v2896, 1.442695
    %v2900 = vpow.pop %v2899
    %v2901 = vadd.f32 %v2898, 1.0
    %v2902 = vadd.f32 %v2900, 1.0
    %v2903 = vrcp.pop %v2901
    %v2904 = vmul.f32 1.0, %v2903
    %v2905 = vrcp.pop %v2902
    %v2906 = vmul.f32 1.0, %v2905
    %v2907 = vmul.f32 %v2904, %v1873
    %v2908 = vmul.f32 %v2906, %v1874
    %v2909 = vxor.u32 %v2887, 2147483648
    %v2910 = vxor.u32 %v2891, 2147483648
    %v2911 = vmul.f32 %v2909, 1.442695
    %v2912 = vpow.pop %v2911
    %v2913 = vmul.f32 %v2910, 1.442695
    %v2914 = vpow.pop %v2913
    %v2915 = vadd.f32 %v2912, 1.0
    %v2916 = vadd.f32 %v2914, 1.0
    %v2917 = vrcp.pop %v2915
    %v2918 = vmul.f32 1.0, %v2917
    %v2919 = vrcp.pop %v2916
    %v2920 = vmul.f32 1.0, %v2919
    %v2921 = vtanh.pop %v2890
    %v2922 = vtanh.pop %v2894
    %v2923 = vmul.f32 %v2918, %v2921
    %v2924 = vmul.f32 %v2920, %v2922
    %v2925 = vadd.f32 %v2907, %v2923
    %v2926 = vadd.f32 %v2908, %v2924
    %v2927 = vxor.u32 %v2889, 2147483648
    %v2928 = vxor.u32 %v2893, 2147483648
    %v2929 = vmul.f32 %v2927, 1.442695
    %v2930 = vpow.pop %v2929
    %v2931 = vmul.f32 %v2928, 1.442695
    %v2932 = vpow.pop %v2931
    %v2933 = vadd.f32 %v2930, 1.0
    %v2934 = vadd.f32 %v2932, 1.0
    %v2935 = vrcp.pop %v2933
    %v2936 = vmul.f32 1.0, %v2935
    %v2937 = vrcp.pop %v2934
    %v2938 = vmul.f32 1.0, %v2937
    %v2939 = vtanh.pop %v2925
    %v2940 = vtanh.pop %v2926
    %v2941 = vmul.f32 %v2936, %v2939
    %v2942 = vmul.f32 %v2938, %v2940
    %v2943 = vpack.c.bf16 %v2942, %v2941
    %2944 = vmatprep.subr.bf16.mxu0 %v1957
    %2945 = vmatpush1.bf16.msra.mxu0 %v1956
    %2946 = vmatprep.subr.bf16.mxu0 %v1959
    %2947 = vmatpush1.bf16.msra.mxu0 %v1958
    %2948 = vmatprep.subr.bf16.mxu0 %v1961
    %2949 = vmatpush1.bf16.msra.mxu0 %v1960
    %2950 = vmatprep.subr.bf16.mxu0 %v1963
    %2951 = vmatpush1.bf16.msra.mxu0 %v1962
    %2952 = vmatprep.subr.bf16.mxu0 %v1965
    %2953 = vmatpush1.bf16.msra.mxu0 %v1964
    %2954 = vmatprep.subr.bf16.mxu0 %v1967
    %2955 = vmatpush1.bf16.msra.mxu0 %v1966
    %2956 = vmatprep.subr.bf16.mxu0 %v1969
    %2957 = vmatpush1.bf16.msra.mxu0 %v1968
    %2958 = vmatprep.subr.bf16.mxu0 %v1971
    %2959 = vmatpush1.bf16.msra.mxu0 %v1970
    %2960 = vmatprep.subr.bf16.mxu0 0
    %2961 = vmatpush1.bf16.msra.mxu0 0
    %2962 = vmatprep.subr.bf16.mxu0 0
    %2963 = vmatpush1.bf16.msra.mxu0 0
    %2964 = vmatprep.subr.bf16.mxu0 0
    %2965 = vmatpush1.bf16.msra.mxu0 0
    %2966 = vmatprep.subr.bf16.mxu0 0
    %2967 = vmatpush1.bf16.msra.mxu0 0
    %2968 = vmatprep.subr.bf16.mxu0 0
    %2969 = vmatpush1.bf16.msra.mxu0 0
    %2970 = vmatprep.subr.bf16.mxu0 0
    %2971 = vmatpush1.bf16.msra.mxu0 0
    %2972 = vmatprep.subr.bf16.mxu0 0
    %2973 = vmatpush1.bf16.msra.mxu0 0
    %2974 = vmatprep.subr.bf16.mxu0 0
    %2975 = vmatpush1.bf16.msra.mxu0 0
    %2976 = vmatprep.mubr.bf16.mxu0 0
    %2977 = vmatmul.mubr.bf16.gmra.mrb[0].mxu0 %v2943
    %v2978 = vpop.f32.mrb[0].mxu0
    %v2979 = vadd.f32 0.0, %v2978
    %v2980 = vpop.f32.mrb[0].mxu0
    %v2981 = vadd.f32 0.0, %v2980
    %v2982 = vpop.f32.mrb[0].mxu0
    %v2983 = vadd.f32 0.0, %v2982
    %v2984 = vpop.f32.mrb[0].mxu0
    %v2985 = vadd.f32 0.0, %v2984
    %2986 = vdwg.mxu0
    %v2987 = vadd.f32 %v2979, %v588
    %v2988 = vadd.f32 %v2983, %v588
    %v2989 = vtanh.pop %v2987
    %v2990 = vtanh.pop %v2988
    %v2991 = vmul.f32 %v2989, %v685
    %v2992 = vmul.f32 %v2990, %v685
    %2993 = vadd.xlane.f32.xlu0 %v2991
    %v2994 = vpop.xlane.xlu0 %2993
    %2995 = vadd.xlane.f32.xlu0 %v2992
    %v2996 = vpop.xlane.xlu0 %2995
    %v2997 = vmax.f32 %v2994, %v2996
    %v2998 = vrot.slane %v2997, 4
    %v2999 = vmax.f32 %v2997, %v2998
    %v3000 = vrot.slane %v2999, 2
    %v3001 = vmax.f32 %v2999, %v3000
    %v3002 = vrot.slane %v3001, 1
    %v3003 = vmax.f32 %v3001, %v3002
    %v3004 = vsub.f32 %v2994, %v3003
    %v3005 = vsub.f32 %v2996, %v3003
    %v3006 = vmul.f32 %v3004, 1.442695
    %v3007 = vpow.pop %v3006
    %v3008 = vmul.f32 %v3005, 1.442695
    %v3009 = vpow.pop %v3008
    %v3010 = vadd.f32 %v3007, %v3009
    %v3011 = vrot.slane %v3010, 4
    %v3012 = vadd.f32 %v3010, %v3011
    %v3013 = vrot.slane %v3012, 2
    %v3014 = vadd.f32 %v3012, %v3013
    %v3015 = vrot.slane %v3014, 1
    %v3016 = vadd.f32 %v3014, %v3015
    %v3017 = vrcp.pop %v3016
    %v3018 = vmul.f32 %v3007, %v3017
    %v3019 = vmul.f32 %v3009, %v3017
    %v3020 = vmul.f32 %v3018, %v2941
    %v3021 = vmul.f32 %v3019, %v2942
    %v3022 = vadd.f32 %v3020, %v3021
    %v3023 = vrot.slane %v3022, 4
    %v3024 = vadd.f32 %v3022, %v3023
    %v3025 = vrot.slane %v3024, 2
    %v3026 = vadd.f32 %v3024, %v3025
    %v3027 = vrot.slane %v3026, 1
    %v3028 = vadd.f32 %v3026, %v3027
    %v3029 = vpack.c.bf16 %v3028, %v3028
    %3030 = vmatprep.subr.bf16.mxu0 %v2300
    %3031 = vmatpush1.bf16.msra.mxu0 %v2299
    %3032 = vmatprep.subr.bf16.mxu0 %v2303
    %3033 = vmatpush1.bf16.msra.mxu0 %v2302
    %3034 = vmatprep.subr.bf16.mxu0 %v2306
    %3035 = vmatpush1.bf16.msra.mxu0 %v2305
    %3036 = vmatprep.subr.bf16.mxu0 %v2309
    %3037 = vmatpush1.bf16.msra.mxu0 %v2308
    %3038 = vmatprep.subr.bf16.mxu0 %v2312
    %3039 = vmatpush1.bf16.msra.mxu0 %v2311
    %3040 = vmatprep.subr.bf16.mxu0 %v2315
    %3041 = vmatpush1.bf16.msra.mxu0 %v2314
    %3042 = vmatprep.subr.bf16.mxu0 %v2318
    %3043 = vmatpush1.bf16.msra.mxu0 %v2317
    %3044 = vmatprep.subr.bf16.mxu0 %v2321
    %3045 = vmatpush1.bf16.msra.mxu0 %v2320
    %3046 = vmatprep.subr.bf16.mxu0 %v2324
    %3047 = vmatpush1.bf16.msra.mxu0 %v2323
    %3048 = vmatprep.subr.bf16.mxu0 %v2327
    %3049 = vmatpush1.bf16.msra.mxu0 %v2326
    %3050 = vmatprep.subr.bf16.mxu0 %v2330
    %3051 = vmatpush1.bf16.msra.mxu0 %v2329
    %3052 = vmatprep.subr.bf16.mxu0 %v2333
    %3053 = vmatpush1.bf16.msra.mxu0 %v2332
    %3054 = vmatprep.subr.bf16.mxu0 %v2336
    %3055 = vmatpush1.bf16.msra.mxu0 %v2335
    %3056 = vmatprep.subr.bf16.mxu0 %v2339
    %3057 = vmatpush1.bf16.msra.mxu0 %v2338
    %3058 = vmatprep.subr.bf16.mxu0 %v2342
    %3059 = vmatpush1.bf16.msra.mxu0 %v2341
    %3060 = vmatprep.subr.bf16.mxu0 %v2345
    %3061 = vmatpush1.bf16.msra.mxu0 %v2344
    %3062 = vmatprep.mubr.bf16.mxu0 %v3029
    %3063 = vmatmul.mubr.bf16.gmra.mrb[0].mxu0 %v2567
    %v3064 = vpop.f32.mrb[0].mxu0
    %v3065 = vadd.f32 %v2399, %v3064
    %v3066 = vpop.f32.mrb[0].mxu0
    %v3067 = vadd.f32 %v2403, %v3066
    %v3068 = vpop.f32.mrb[0].mxu0
    %v3069 = vpop.f32.mrb[0].mxu0
    %3070 = vdwg.mxu0
    %3071 = vmatprep.subr.bf16.mxu0 0
    %3072 = vmatpush1.bf16.msra.mxu0 %v2301
    %3073 = vmatprep.subr.bf16.mxu0 0
    %3074 = vmatpush1.bf16.msra.mxu0 %v2304
    %3075 = vmatprep.subr.bf16.mxu0 0
    %3076 = vmatpush1.bf16.msra.mxu0 %v2307
    %3077 = vmatprep.subr.bf16.mxu0 0
    %3078 = vmatpush1.bf16.msra.mxu0 %v2310
    %3079 = vmatprep.subr.bf16.mxu0 0
    %3080 = vmatpush1.bf16.msra.mxu0 %v2313
    %3081 = vmatprep.subr.bf16.mxu0 0
    %3082 = vmatpush1.bf16.msra.mxu0 %v2316
    %3083 = vmatprep.subr.bf16.mxu0 0
    %3084 = vmatpush1.bf16.msra.mxu0 %v2319
    %3085 = vmatprep.subr.bf16.mxu0 0
    %3086 = vmatpush1.bf16.msra.mxu0 %v2322
    %3087 = vmatprep.subr.bf16.mxu0 0
    %3088 = vmatpush1.bf16.msra.mxu0 %v2325
    %3089 = vmatprep.subr.bf16.mxu0 0
    %3090 = vmatpush1.bf16.msra.mxu0 %v2328
    %3091 = vmatprep.subr.bf16.mxu0 0
    %3092 = vmatpush1.bf16.msra.mxu0 %v2331
    %3093 = vmatprep.subr.bf16.mxu0 0
    %3094 = vmatpush1.bf16.msra.mxu0 %v2334
    %3095 = vmatprep.subr.bf16.mxu0 0
    %3096 = vmatpush1.bf16.msra.mxu0 %v2337
    %3097 = vmatprep.subr.bf16.mxu0 0
    %3098 = vmatpush1.bf16.msra.mxu0 %v2340
    %3099 = vmatprep.subr.bf16.mxu0 0
    %3100 = vmatpush1.bf16.msra.mxu0 %v2343
    %3101 = vmatprep.subr.bf16.mxu0 0
    %3102 = vmatpush1.bf16.msra.mxu0 %v2346
    %3103 = vmatprep.mubr.bf16.mxu0 %v3029
    %3104 = vmatmul.mubr.bf16.gmra.mrb[0].mxu0 %v2567
    %v3105 = vpop.f32.mrb[0].mxu0
    %v3106 = vadd.f32 %v2407, %v3105
    %v3107 = vpop.f32.mrb[0].mxu0
    %v3108 = vpop.f32.mrb[0].mxu0
    %v3109 = vpop.f32.mrb[0].mxu0
    %3110 = vdwg.mxu0
    %v3111 = vxor.u32 %v3065, 2147483648
    %v3112 = vmul.f32 %v3111, 1.442695
    %v3113 = vpow.pop %v3112
    %v3114 = vadd.f32 %v3113, 1.0
    %v3115 = vrcp.pop %v3114
    %v3116 = vmul.f32 1.0, %v3115
    %v3117 = vxor.u32 %v3067, 2147483648
    %v3118 = vmul.f32 %v3117, 1.442695
    %v3119 = vpow.pop %v3118
    %v3120 = vadd.f32 %v3119, 1.0
    %v3121 = vrcp.pop %v3120
    %v3122 = vmul.f32 1.0, %v3121
    %v3123 = vlaneseq
    %v3124 = vshrl.u32 %v3123, 7
    %v3125 = vsub.s32 0, %v3124
    %v3126 = vrot.slane %v3106, %v3125
    %v3127 = vadd.f32 %v3126, %v2981
    %v3128 = vadd.f32 %v3126, %v2985
    %v3129 = vadd.f32 %v3127, %v2515
    %v3130 = vadd.f32 %v3128, %v2515
    %v3131 = vxor.u32 %v3129, 2147483648
    %v3132 = vxor.u32 %v3130, 2147483648
    %v3133 = vmul.f32 %v3131, 1.442695
    %v3134 = vpow.pop %v3133
    %v3135 = vmul.f32 %v3132, 1.442695
    %v3136 = vpow.pop %v3135
    %v3137 = vadd.f32 %v3134, 1.0
    %v3138 = vadd.f32 %v3136, 1.0
    %v3139 = vrcp.pop %v3137
    %v3140 = vmul.f32 1.0, %v3139
    %v3141 = vrcp.pop %v3138
    %v3142 = vmul.f32 1.0, %v3141
    %v3143 = vmax.f32 %v3140, %v3142
    %v3144 = vrot.slane %v3143, 4
    %v3145 = vmax.f32 %v3143, %v3144
    %v3146 = vrot.slane %v3145, 2
    %v3147 = vmax.f32 %v3145, %v3146
    %v3148 = vrot.slane %v3147, 1
    %v3149 = vmax.f32 %v3147, %v3148
    %v3150 = vsub.f32 %v3140, %v3149
    %v3151 = vsub.f32 %v3142, %v3149
    %v3152 = vmul.f32 %v3150, 1.442695
    %v3153 = vpow.pop %v3152
    %v3154 = vmul.f32 %v3151, 1.442695
    %v3155 = vpow.pop %v3154
    %v3156 = vadd.f32 %v3153, %v3155
    %v3157 = vrot.slane %v3156, 4
    %v3158 = vadd.f32 %v3156, %v3157
    %v3159 = vrot.slane %v3158, 2
    %v3160 = vadd.f32 %v3158, %v3159
    %v3161 = vrot.slane %v3160, 1
    %v3162 = vadd.f32 %v3160, %v3161
    %v3163 = vrcp.pop %v3162
    %v3164 = vmul.f32 %v3153, %v3163
    %v3165 = vmul.f32 %v3155, %v3163
    %v3166 = vmul.f32 %v3116, %v2564
    %v3167 = vmul.f32 %v2925, %v3164
    %v3168 = vmul.f32 %v2926, %v3165
    %v3169 = vadd.f32 %v3167, %v3168
    %v3170 = vrot.slane %v3169, 4
    %v3171 = vadd.f32 %v3169, %v3170
    %v3172 = vrot.slane %v3171, 2
    %v3173 = vadd.f32 %v3171, %v3172
    %v3174 = vrot.slane %v3173, 1
    %v3175 = vadd.f32 %v3173, %v3174
    %v3176 = vadd.f32 %v3166, %v3175
    %v3177 = vtanh.pop %v3176
    %v3178 = vmul.f32 %v3122, %v3177
    %vm3179 = vcmask 1040384
    %v3180 = vsel %vm3179, %v3178, 0.0
    %v3181 = vpack.c.bf16 %v3180, %v3180
    %v3182 = vld [vmem:[#allocation7] sm:$0xf]
    %v3183 = vld [vmem:[#allocation7 + $0x2c] sm:$0xf]
    %v3184 = vld [vmem:[#allocation7 + $0x58] sm:$0xf]
    %v3185 = vld [vmem:[#allocation7 + $0x84] sm:$0xf]
    %v3186 = vld [vmem:[#allocation7 + $0xb0] sm:$0xf]
    %v3187 = vld [vmem:[#allocation7 + $0xdc] sm:$0xf]
    %v3188 = vld [vmem:[#allocation7 + $0x108] sm:$0xf]
    %v3189 = vld [vmem:[#allocation7 + $0x134] sm:$0xf]
    %v3190 = vld [vmem:[#allocation7 + $0x160] sm:$0xf]
    %v3191 = vld [vmem:[#allocation7 + $0x18c] sm:$0xf]
    %v3192 = vld [vmem:[#allocation7 + $0x1b8] sm:$0xf]
    %v3193 = vld [vmem:[#allocation7 + $0x1e4] sm:$0xf]
    %v3194 = vld [vmem:[#allocation7 + $0x210] sm:$0xf]
    %v3195 = vld [vmem:[#allocation7 + $0x23c] sm:$0xf]
    %v3196 = vld [vmem:[#allocation7 + $0x268] sm:$0xf]
    %v3197 = vld [vmem:[#allocation7 + $0x294] sm:$0xf]
    %v3198 = vld [vmem:[%s4 + $0xc] sm:$0x1]
    %v3200 = vlaneseq
    %v3201 = vshrl.u32 %v3200, 7
    %v3202 = vsub.s32 0, %v3201
    %v3203 = vrot.slane %v3198, %v3202
    %v3221 = vunpack.c.l.b16 %v3182
    %v3222 = vunpack.c.l.b16 %v3183
    %v3223 = vunpack.c.l.b16 %v3184
    %v3224 = vunpack.c.l.b16 %v3185
    %v3225 = vunpack.c.l.b16 %v3186
    %v3226 = vunpack.c.l.b16 %v3187
    %v3227 = vunpack.c.l.b16 %v3188
    %v3228 = vunpack.c.l.b16 %v3189
    %v3229 = vunpack.c.l.b16 %v3190
    %v3230 = vunpack.c.l.b16 %v3191
    %v3231 = vunpack.c.l.b16 %v3192
    %v3232 = vunpack.c.l.b16 %v3193
    %v3233 = vunpack.c.l.b16 %v3194
    %v3234 = vunpack.c.l.b16 %v3195
    %v3235 = vunpack.c.l.b16 %v3196
    %v3236 = vunpack.c.l.b16 %v3197
    %v3237 = vpack.c.b16 %v3222, %v3221
    %v3238 = vpack.c.b16 %v3224, %v3223
    %v3239 = vpack.c.b16 %v3226, %v3225
    %v3240 = vpack.c.b16 %v3228, %v3227
    %v3241 = vpack.c.b16 %v3230, %v3229
    %v3242 = vpack.c.b16 %v3232, %v3231
    %v3243 = vpack.c.b16 %v3234, %v3233
    %v3244 = vpack.c.b16 %v3236, %v3235
    %3253 = vmatprep.subr.bf16.mxu0 0
    %3254 = vmatpush1.bf16.msra.mxu0 %v3237
    %3255 = vmatprep.subr.bf16.mxu0 0
    %3256 = vmatpush1.bf16.msra.mxu0 %v3238
    %3257 = vmatprep.subr.bf16.mxu0 0
    %3258 = vmatpush1.bf16.msra.mxu0 %v3239
    %3259 = vmatprep.subr.bf16.mxu0 0
    %3260 = vmatpush1.bf16.msra.mxu0 %v3240
    %3261 = vmatprep.subr.bf16.mxu0 0
    %3262 = vmatpush1.bf16.msra.mxu0 %v3241
    %3263 = vmatprep.subr.bf16.mxu0 0
    %3264 = vmatpush1.bf16.msra.mxu0 %v3242
    %3265 = vmatprep.subr.bf16.mxu0 0
    %3266 = vmatpush1.bf16.msra.mxu0 %v3243
    %3267 = vmatprep.subr.bf16.mxu0 0
    %3268 = vmatpush1.bf16.msra.mxu0 %v3244
    %3269 = vmatprep.subr.bf16.mxu0 0
    %3270 = vmatpush1.bf16.msra.mxu0 0
    %3271 = vmatprep.subr.bf16.mxu0 0
    %3272 = vmatpush1.bf16.msra.mxu0 0
    %3273 = vmatprep.subr.bf16.mxu0 0
    %3274 = vmatpush1.bf16.msra.mxu0 0
    %3275 = vmatprep.subr.bf16.mxu0 0
    %3276 = vmatpush1.bf16.msra.mxu0 0
    %3277 = vmatprep.subr.bf16.mxu0 0
    %3278 = vmatpush1.bf16.msra.mxu0 0
    %3279 = vmatprep.subr.bf16.mxu0 0
    %3280 = vmatpush1.bf16.msra.mxu0 0
    %3281 = vmatprep.subr.bf16.mxu0 0
    %3282 = vmatpush1.bf16.msra.mxu0 0
    %3283 = vmatprep.subr.bf16.mxu0 0
    %3284 = vmatpush1.bf16.msra.mxu0 0
    %3285 = vmatprep.mubr.bf16.mxu0 0
    %3286 = vmatmul.mubr.bf16.gmra.mrb[0].mxu0 %v2943
    %v3287 = vpop.f32.mrb[0].mxu0
    %v3288 = vadd.f32 %v3203, %v3287
    %v3289 = vpop.f32.mrb[0].mxu0
    %v3290 = vpop.f32.mrb[0].mxu0
    %v3291 = vadd.f32 %v3203, %v3290
    %v3292 = vpop.f32.mrb[0].mxu0
    %3293 = vmatprep.mubr.bf16.mxu0 0
    %3294 = vmatmul.mubr.bf16.gmra.mrb[0].mxu0 %v3181
    %v3295 = vpop.f32.mrb[0].mxu0
    %v3296 = vadd.f32 %v3203, %v3295
    %v3297 = vpop.f32.mrb[0].mxu0
    %v3298 = vpop.f32.mrb[0].mxu0
    %v3299 = vpop.f32.mrb[0].mxu0
    %3300 = vdwg.mxu0
    %3301 = vst [vmem:[#allocation10] sm:$0xff] %v3288
    %3302 = vst [vmem:[#allocation10 + $0x8] sm:$0xff] %v3291
    %3303 = vst [vmem:[#allocation10 + $0x10] sm:$0xff] %v3296
    // Predicated region
    $region38: #{tpu_custom_call.1} parent=1 // pred_check
      _
    $region39: #{tpu_custom_call.1} parent=1 // pred_check_branch
      %3305 = sbr.rel (0) target = $region41
    $region40: #{tpu_custom_call.1} parent=1 // pred_region
      %s3307 = ssub.s32 384, 384
      %3308 = vsyncadd [#allocation4], %s3307
      %s3309 = sshll.u32 [#allocation10], 4
      %s3310 = int_to_ptr.vmem [resolvable:$true] %s3309
      %3315 = dma.vmem_to_hbm [thread:$0]  %s3310, 384, %s5, [#allocation4], 128, 128, 8
    $region41: #{tpu_custom_call.1} parent=1 // pred_fallthru
      _
    // Predicated region
    $region42: #{tpu_custom_call.1} parent=1 // pred_check
      _
    $region43: #{tpu_custom_call.1} parent=1 // pred_check_branch
      %3317 = sbr.rel (0) target = $region45
    $region44: #{tpu_custom_call.1} parent=1 // pred_region
      %3318 = dma.done [#allocation4], 384
    $region45: #{tpu_custom_call.1} parent=1 // pred_fallthru
      _
    %3319 = vsyncpa [#allocation3], 1
    %3320 = vsyncpa [#allocation6], 1
    %3321 = vsyncpa [#allocation9], 1
    %3322 = vsyncpa [#allocation4], 1

</llo_original>
